<compile_context>
chip_gen: v6e
topology: v6e:2x2x1
jax: 0.10.0
libtpu: 0.0.40
codegen_flags: <defaults>
</compile_context>

<pallas_src>
import jax
import jax.numpy as jnp
from jax import lax
from jax.experimental import pallas as pl
from jax.experimental.pallas import tpu as pltpu


def _rup8(n):
    return (n + 7) // 8 * 8


# ---------------------------------------------------------------------------
# Parameter init (deterministic, synthetic) — mirrors the PyTorch module layout
# ---------------------------------------------------------------------------

def init_params(key, flat_dim, graph_dim, ts_dim, hidden):
    ks = jax.random.split(key, 12)

    def u(k, shape, fan_in):
        bound = 1.0 / jnp.sqrt(jnp.float32(fan_in))
        return jax.random.uniform(k, shape, jnp.float32, -bound, bound)

    return dict(
        # FlatFeatureEncoder (weights stored transposed: (in, out))
        flat_w=u(ks[0], (flat_dim, hidden), flat_dim),
        flat_b=u(ks[1], (1, hidden), flat_dim),
        # GraphEncoder (GCNConv biases init to zero, like PyG)
        gcn_w1=u(ks[2], (graph_dim, hidden), graph_dim),
        gcn_b1=jnp.zeros((1, hidden), jnp.float32),
        gcn_w2=u(ks[3], (hidden, hidden), hidden),
        gcn_b2=jnp.zeros((1, hidden), jnp.float32),
        # LSTM (transposed: (in, 4H) / (H, 4H)); b = b_ih + b_hh, gate order i,f,g,o
        lstm_wih=u(ks[4], (ts_dim, 4 * hidden), hidden),
        lstm_whh=u(ks[5], (hidden, 4 * hidden), hidden),
        lstm_b=u(ks[6], (1, 4 * hidden), hidden) + u(ks[7], (1, 4 * hidden), hidden),
        # RiskPredictor fc1: (3H, H) transposed, row order [flat | graph | ts]; fc2: (H, 1) transposed
        fc1_w=u(ks[8], (3 * hidden, hidden), 3 * hidden),
        fc1_b=u(ks[9], (1, hidden), 3 * hidden),
        fc2_w=u(ks[10], (hidden, 1), hidden),
        fc2_b=u(ks[11], (1, 1), hidden),
    )


# ---------------------------------------------------------------------------
# One-time prep (NOT in the per-call hot path)
# ---------------------------------------------------------------------------

def pack_params(params):
    """Pack all weights into 3 arrays; fold BatchNorm eval scale into gcn1."""
    H = params['gcn_w2'].shape[0]
    graph_dim = params['gcn_w1'].shape[0]
    flat_dim = params['flat_w'].shape[0]
    bn_scale = 1.0 / jnp.sqrt(1.0 + 1e-5)   # BN eval with default running stats / affine

    def pad_rows(m, rows):
        return jnp.pad(m, ((0, rows - m.shape[0]), (0, 0)))

    def pad_lanes(v, width):
        return jnp.pad(v, ((0, 0), (0, width - v.shape[1])))

    # All H-lane-wide matrices stacked along sublanes (starts 8-aligned).
    wh_pack = jnp.concatenate([
        pad_rows(params['gcn_w1'] * bn_scale, _rup8(graph_dim)),   # rows [0 : graph_dim]
        pad_rows(params['flat_w'], _rup8(flat_dim)),               # rows [rup8(gd) : +flat_dim]
        params['gcn_w2'],                                          # H rows
        params['fc1_w'],                                           # 3H rows ([flat|graph|ts])
    ], axis=0)
    # Both LSTM matrices (4H lanes wide).
    lstm_pack = jnp.concatenate([params['lstm_whh'], params['lstm_wih']], axis=0)
    # Every bias / fc2 row / fc2 scalar in one (7, 4H) slab.
    W4 = 4 * H
    bias_pack = jnp.concatenate([
        pad_lanes(params['gcn_b1'] * bn_scale, W4),   # row 0
        pad_lanes(params['gcn_b2'], W4),              # row 1
        pad_lanes(params['flat_b'], W4),              # row 2
        pad_lanes(params['fc1_b'], W4),               # row 3
        params['lstm_b'],                             # row 4 (full 4H)
        pad_lanes(params['fc2_w'].reshape(1, H), W4),  # row 5: fc2 weight as a lane row
        pad_lanes(params['fc2_b'], W4),               # row 6: fc2 bias at lane 0
    ], axis=0)
    return dict(wh=wh_pack, lstm=lstm_pack, bias=bias_pack)


def build_normalized_adjacency(edge_index, num_nodes):
    """GCN-normalized dense adjacency with self loops: D^-1/2 (A + I) D^-1/2 (one-time)."""
    src, dst = edge_index[0], edge_index[1]
    A = jnp.zeros((num_nodes, num_nodes), jnp.float32).at[dst, src].add(1.0)
    A = A + jnp.eye(num_nodes, dtype=jnp.float32)
    deg = A.sum(axis=1)
    dinv = lax.rsqrt(deg)
    return dinv[:, None] * A * dinv[None, :]


def match_patient_index(graph_patient_ids, patient_ids):
    # TODO(synk): first-match semantics; silently maps to node 0 when a patient id has no match
    # (the PyTorch torch.where lookup would raise instead).
    match = graph_patient_ids[None, :] == patient_ids[:, None]
    return jnp.argmax(match, axis=1).astype(jnp.int32)


# ---------------------------------------------------------------------------
# Forward pass: one fused pallas_call, everything VMEM/SMEM resident
# ---------------------------------------------------------------------------

@jax.jit
def patient_outcome_forward(packed, A_hat, graph_x, batch_idx, flat_data, ts_data, lengths):
    f32 = jnp.float32
    B, T, D = ts_data.shape
    N, graph_dim = graph_x.shape
    flat_dim = flat_data.shape[1]
    H = packed['lstm'].shape[1] // 4
    off_fw = _rup8(graph_dim)
    off_gw2 = off_fw + _rup8(flat_dim)
    off_fc1 = off_gw2 + H

    def kernel(bidx_ref, len_ref, a_ref, gx_ref, flat_ref, ts_ref,
               wh_ref, lstm_ref, bias_ref, risk_ref, comb_ref):
        # ---- packed weights / biases via static ref slices
        gw1 = wh_ref[0:graph_dim, :]
        fw = wh_ref[off_fw:off_fw + flat_dim, :]
        gw2 = wh_ref[off_gw2:off_gw2 + H, :]
        w1_fg = wh_ref[off_fc1:off_fc1 + 2 * H, :]          # fc1 rows for [flat | graph]
        w1_t = wh_ref[off_fc1 + 2 * H:off_fc1 + 3 * H, :]   # fc1 rows for ts
        whh = lstm_ref[0:H, :]
        wih = lstm_ref[H:H + D, :]
        gb1 = bias_ref[0:1, 0:H]
        gb2 = bias_ref[1:2, 0:H]
        flat_b = bias_ref[2:3, 0:H]
        fc1_b = bias_ref[3:4, 0:H]
        lstm_b = bias_ref[4:5, :]
        w2row = bias_ref[5:6, 0:H]
        b2 = bias_ref[6:7, 0:1]

        # ---- GraphEncoder: GCNConv -> BN(eval; folded into gw1/gb1) -> ReLU -> Dropout(id) -> GCNConv
        a = a_ref[...]
        h1 = jnp.maximum(
            jnp.dot(a, jnp.dot(gx_ref[...], gw1, preferred_element_type=f32),
                    preferred_element_type=f32) + gb1, 0.0)
        node_emb = jnp.dot(a, jnp.dot(h1, gw2, preferred_element_type=f32),
                           preferred_element_type=f32) + gb2                   # (N, H)

        # ---- node_embeddings[batch_idx]: one-hot selector built in-kernel from SMEM scalars
        b_iota_n = lax.broadcasted_iota(jnp.int32, (B, N), 0)
        n_iota = lax.broadcasted_iota(jnp.int32, (B, N), 1)
        sel = jnp.zeros((B, N), f32)
        for b in range(B):
            sel = jnp.where((b_iota_n == b) & (n_iota == bidx_ref[b]), 1.0, sel)
        graph_emb = jnp.dot(sel, node_emb, preferred_element_type=f32)          # (B, H)

        # ---- FlatFeatureEncoder: relu(x @ W + b)
        flat_emb = jnp.maximum(
            jnp.dot(flat_ref[...], fw, preferred_element_type=f32) + flat_b, 0.0)

        # ---- fc1 contribution of [flat | graph] (time-invariant): one fused matmul
        fg = jnp.dot(jnp.concatenate([flat_emb, graph_emb], axis=1), w1_fg,
                     preferred_element_type=f32) + fc1_b                        # (B, H)

        # ---- LSTM: input projection hoisted out of the recurrence as one (B*T,D)@(D,4H) matmul
        x2d = ts_ref[...].reshape(B * T, D)
        xg = (jnp.dot(x2d, wih, preferred_element_type=f32) + lstm_b).reshape(B, T, 4 * H)

        t_iota = lax.broadcasted_iota(jnp.int32, (B, T, 1), 1)
        h = jnp.zeros((B, H), f32)
        c = jnp.zeros((B, H), f32)
        hs3 = jnp.zeros((B, T, H), f32)
        for t in range(T):                       # static unroll (T known at trace time)
            gates = xg[:, t, :] + jnp.dot(h, whh, preferred_element_type=f32)   # (B, 4H)
            sg = jax.nn.sigmoid(gates)                         # full-vreg EUP (i, f, o used)
            g_g = jnp.tanh(gates[:, 2 * H:3 * H])              # tanh only on the g lane-block
            c = sg[:, H:2 * H] * c + sg[:, 0:H] * g_g
            h = sg[:, 3 * H:4 * H] * jnp.tanh(c)
            # collect h_t in registers (no VMEM scratch): off the recurrence critical path
            hs3 = jnp.where(t_iota == t, h[:, None, :], hs3)
        # TODO(synk): h/c keep updating past lengths[b]; outputs at valid steps match PyTorch's
        # packed-sequence LSTM, but (h_n, c_n) (never consumed here) would differ.

        # ---- pack/pad_packed semantics: zero LSTM outputs where t >= lengths[b] (mask built in-kernel)
        b_iota_t = lax.broadcasted_iota(jnp.int32, (B, T, 1), 0)
        valid = jnp.zeros((B, T, 1), f32)
        for b in range(B):
            valid = jnp.where((b_iota_t == b) & (t_iota < len_ref[b]), 1.0, valid)
        hs3 = hs3 * valid

        # ---- RiskPredictor: single (B*T,H)@(H,H) matmul + VPU multiply / lane-reduce for fc2
        ts_part = jnp.dot(hs3.reshape(B * T, H), w1_t, preferred_element_type=f32)
        combined = jnp.maximum(ts_part.reshape(B, T, H) + fg[:, None, :], 0.0)   # (B, T, H)
        comb_ref[...] = combined.reshape(B * T, H)        # layout-preserving store slab
        logit = jnp.sum(combined * w2row.reshape(1, 1, H), axis=-1) + b2         # (B, T)
        risk_ref[...] = jax.nn.sigmoid(logit)

    smem_spec = pl.BlockSpec(memory_space=pltpu.MemorySpace.SMEM)
    vmem_spec = pl.BlockSpec(memory_space=pltpu.MemorySpace.VMEM)

    risk, comb2d = pl.pallas_call(
        kernel,
        out_shape=(jax.ShapeDtypeStruct((B, T), jnp.float32),
                   jax.ShapeDtypeStruct((B * T, H), jnp.float32)),
        in_specs=[smem_spec, smem_spec] + [vmem_spec] * 7,
        out_specs=(pl.BlockSpec(memory_space=pltpu.MemorySpace.VMEM),
                   pl.BlockSpec(memory_space=pltpu.MemorySpace.VMEM)),
    )(batch_idx, lengths, A_hat, graph_x, flat_data, ts_data,
      packed['wh'], packed['lstm'], packed['bias'])

    losses = {}   # som=None -> SOMLayer skipped
    return risk, comb2d.reshape(B, T, H), losses


# ---------------------------------------------------------------------------
# Example run
# ---------------------------------------------------------------------------

if __name__ == "__main__":
    B, T, hidden = 4, 8, 32
    flat_dim, graph_dim, ts_dim = 12, 6, 10
    N = 8  # graph nodes

    key = jax.random.PRNGKey(0)
    kp, k1, k2, k3 = jax.random.split(key, 4)
    params = init_params(kp, flat_dim, graph_dim, ts_dim, hidden)

    flat_data = jax.random.normal(k1, (B, flat_dim), jnp.float32)
    graph_x = jax.random.normal(k2, (N, graph_dim), jnp.float32)
    ts_data = jax.random.normal(k3, (B, T, ts_dim), jnp.float32)

    # simple ring graph (both directions)
    src = jnp.array([0, 1, 2, 3, 4, 5, 6, 7, 1, 2, 3, 4, 5, 6, 7, 0], jnp.int32)
    dst = jnp.array([1, 2, 3, 4, 5, 6, 7, 0, 0, 1, 2, 3, 4, 5, 6, 7], jnp.int32)
    edge_index = jnp.stack([src, dst])

    graph_patient_ids = jnp.array([10, 11, 12, 13, 14, 15, 16, 17], jnp.int32)
    patient_ids = jnp.array([13, 10, 17, 15], jnp.int32)
    lengths = jnp.array([8, 6, 4, 8], jnp.int32)   # max(lengths) == T
    # TODO(synk): pad_packed_sequence truncates to max(lengths); this kernel assumes
    # max(lengths) == T so the output time dimension matches ts_data.shape[1].

    # One-time prep (cached across calls; not in the per-call hot path).
    packed = pack_params(params)
    A_hat = build_normalized_adjacency(edge_index, N)
    batch_idx = match_patient_index(graph_patient_ids, patient_ids)

    risk, combined, losses = patient_outcome_forward(
        packed, A_hat, graph_x, batch_idx, flat_data, ts_data, lengths)
    jax.block_until_ready((risk, combined))

    assert risk.shape == (B, T)
    assert combined.shape == (B, T, hidden)
    assert losses == {}
    print("KERNEL_OK")
</pallas_src>

<mosaic_0001>
module attributes {stable_mosaic.version = 11 : i64} {
  func.func @kernel(%arg0: memref<4xi32, #tpu.memory_space<smem>>, %arg1: memref<4xi32, #tpu.memory_space<smem>>, %arg2: memref<8x8xf32, #tpu.memory_space<vmem>>, %arg3: memref<8x6xf32, #tpu.memory_space<vmem>>, %arg4: memref<4x12xf32, #tpu.memory_space<vmem>>, %arg5: memref<4x8x10xf32, #tpu.memory_space<vmem>>, %arg6: memref<152x32xf32, #tpu.memory_space<vmem>>, %arg7: memref<42x128xf32, #tpu.memory_space<vmem>>, %arg8: memref<7x128xf32, #tpu.memory_space<vmem>>, %arg9: memref<4x8xf32, #tpu.memory_space<vmem>>, %arg10: memref<32x32xf32, #tpu.memory_space<vmem>>) attributes {dimension_semantics = [], scalar_prefetch = 0 : i64, scratch_operands = 0 : i64, tpu.core_type = #tpu.core_type<tc>} {
    %c0 = arith.constant 0 : index
    %c0_0 = arith.constant 0 : index
    %0 = vector.load %arg6[%c0, %c0_0] : memref<152x32xf32, #tpu.memory_space<vmem>>, vector<6x32xf32>
    %c8 = arith.constant 8 : index
    %c0_1 = arith.constant 0 : index
    %1 = vector.load %arg6[%c8, %c0_1] : memref<152x32xf32, #tpu.memory_space<vmem>>, vector<12x32xf32>
    %c24 = arith.constant 24 : index
    %c0_2 = arith.constant 0 : index
    %2 = vector.load %arg6[%c24, %c0_2] : memref<152x32xf32, #tpu.memory_space<vmem>>, vector<32x32xf32>
    %c56 = arith.constant 56 : index
    %c0_3 = arith.constant 0 : index
    %3 = vector.load %arg6[%c56, %c0_3] : memref<152x32xf32, #tpu.memory_space<vmem>>, vector<64x32xf32>
    %c120 = arith.constant 120 : index
    %c0_4 = arith.constant 0 : index
    %4 = vector.load %arg6[%c120, %c0_4] : memref<152x32xf32, #tpu.memory_space<vmem>>, vector<32x32xf32>
    %c0_5 = arith.constant 0 : index
    %c0_6 = arith.constant 0 : index
    %5 = vector.load %arg7[%c0_5, %c0_6] : memref<42x128xf32, #tpu.memory_space<vmem>>, vector<32x128xf32>
    %c32 = arith.constant 32 : index
    %c0_7 = arith.constant 0 : index
    %6 = vector.load %arg7[%c32, %c0_7] : memref<42x128xf32, #tpu.memory_space<vmem>>, vector<10x128xf32>
    %c0_8 = arith.constant 0 : index
    %c0_9 = arith.constant 0 : index
    %7 = vector.load %arg8[%c0_8, %c0_9] : memref<7x128xf32, #tpu.memory_space<vmem>>, vector<1x32xf32>
    %c1 = arith.constant 1 : index
    %c0_10 = arith.constant 0 : index
    %8 = vector.load %arg8[%c1, %c0_10] : memref<7x128xf32, #tpu.memory_space<vmem>>, vector<1x32xf32>
    %c2 = arith.constant 2 : index
    %c0_11 = arith.constant 0 : index
    %9 = vector.load %arg8[%c2, %c0_11] : memref<7x128xf32, #tpu.memory_space<vmem>>, vector<1x32xf32>
    %c3 = arith.constant 3 : index
    %c0_12 = arith.constant 0 : index
    %10 = vector.load %arg8[%c3, %c0_12] : memref<7x128xf32, #tpu.memory_space<vmem>>, vector<1x32xf32>
    %c4 = arith.constant 4 : index
    %c0_13 = arith.constant 0 : index
    %11 = vector.load %arg8[%c4, %c0_13] : memref<7x128xf32, #tpu.memory_space<vmem>>, vector<1x128xf32>
    %c5 = arith.constant 5 : index
    %c0_14 = arith.constant 0 : index
    %12 = vector.load %arg8[%c5, %c0_14] : memref<7x128xf32, #tpu.memory_space<vmem>>, vector<1x32xf32>
    %c6 = arith.constant 6 : index
    %c0_15 = arith.constant 0 : index
    %13 = vector.load %arg8[%c6, %c0_15] : memref<7x128xf32, #tpu.memory_space<vmem>>, vector<1x1xf32>
    %c0_16 = arith.constant 0 : index
    %c0_17 = arith.constant 0 : index
    %14 = vector.load %arg2[%c0_16, %c0_17] : memref<8x8xf32, #tpu.memory_space<vmem>>, vector<8x8xf32>
    %c0_18 = arith.constant 0 : index
    %c0_19 = arith.constant 0 : index
    %15 = vector.load %arg3[%c0_18, %c0_19] : memref<8x6xf32, #tpu.memory_space<vmem>>, vector<8x6xf32>
    %cst = arith.constant dense<0.000000e+00> : vector<8x32xf32>
    %16 = tpu.matmul %15, %0, %cst {dimension_numbers = #tpu.dot_dimension_numbers<[1], [0], [0], [1], [0, 0, 1, 1], [], []>} : vector<8x6xf32>, vector<6x32xf32>, vector<8x32xf32> -> vector<8x32xf32>
    %cst_20 = arith.constant dense<0.000000e+00> : vector<8x32xf32>
    %17 = tpu.matmul %14, %16, %cst_20 {dimension_numbers = #tpu.dot_dimension_numbers<[1], [0], [0], [1], [0, 0, 1, 1], [], []>} : vector<8x8xf32>, vector<8x32xf32>, vector<8x32xf32> -> vector<8x32xf32>
    %18 = vector.broadcast %7 : vector<1x32xf32> to vector<8x32xf32>
    %19 = arith.addf %17, %18 : vector<8x32xf32>
    %cst_21 = arith.constant 0.000000e+00 : f32
    %20 = vector.broadcast %cst_21 : f32 to vector<8x32xf32>
    %21 = arith.maximumf %19, %20 : vector<8x32xf32>
    %cst_22 = arith.constant dense<0.000000e+00> : vector<8x32xf32>
    %22 = tpu.matmul %21, %2, %cst_22 {dimension_numbers = #tpu.dot_dimension_numbers<[1], [0], [0], [1], [0, 0, 1, 1], [], []>} : vector<8x32xf32>, vector<32x32xf32>, vector<8x32xf32> -> vector<8x32xf32>
    %cst_23 = arith.constant dense<0.000000e+00> : vector<8x32xf32>
    %23 = tpu.matmul %14, %22, %cst_23 {dimension_numbers = #tpu.dot_dimension_numbers<[1], [0], [0], [1], [0, 0, 1, 1], [], []>} : vector<8x8xf32>, vector<8x32xf32>, vector<8x32xf32> -> vector<8x32xf32>
    %24 = vector.broadcast %8 : vector<1x32xf32> to vector<8x32xf32>
    %25 = arith.addf %23, %24 : vector<8x32xf32>
    %26 = tpu.iota {dimensions = array<i32: 0>} : vector<4x8xi32>
    %27 = tpu.iota {dimensions = array<i32: 1>} : vector<4x8xi32>
    %cst_24 = arith.constant 0.000000e+00 : f32
    %28 = vector.broadcast %cst_24 : f32 to vector<4x8xf32>
    %c0_i32 = arith.constant 0 : i32
    %29 = vector.broadcast %c0_i32 : i32 to vector<4x8xi32>
    %30 = arith.cmpi eq, %26, %29 : vector<4x8xi32>
    %c0_25 = arith.constant 0 : index
    %31 = memref.load %arg0[%c0_25] : memref<4xi32, #tpu.memory_space<smem>>
    %32 = vector.broadcast %31 : i32 to vector<4x8xi32>
    %33 = arith.cmpi eq, %27, %32 : vector<4x8xi32>
    %34 = arith.andi %30, %33 : vector<4x8xi1>
    %cst_26 = arith.constant 1.000000e+00 : f32
    %35 = vector.broadcast %cst_26 : f32 to vector<4x8xf32>
    %36 = arith.select %34, %35, %28 : vector<4x8xi1>, vector<4x8xf32>
    %c1_i32 = arith.constant 1 : i32
    %37 = vector.broadcast %c1_i32 : i32 to vector<4x8xi32>
    %38 = arith.cmpi eq, %26, %37 : vector<4x8xi32>
    %c1_27 = arith.constant 1 : index
    %39 = memref.load %arg0[%c1_27] : memref<4xi32, #tpu.memory_space<smem>>
    %40 = vector.broadcast %39 : i32 to vector<4x8xi32>
    %41 = arith.cmpi eq, %27, %40 : vector<4x8xi32>
    %42 = arith.andi %38, %41 : vector<4x8xi1>
    %cst_28 = arith.constant 1.000000e+00 : f32
    %43 = vector.broadcast %cst_28 : f32 to vector<4x8xf32>
    %44 = arith.select %42, %43, %36 : vector<4x8xi1>, vector<4x8xf32>
    %c2_i32 = arith.constant 2 : i32
    %45 = vector.broadcast %c2_i32 : i32 to vector<4x8xi32>
    %46 = arith.cmpi eq, %26, %45 : vector<4x8xi32>
    %c2_29 = arith.constant 2 : index
    %47 = memref.load %arg0[%c2_29] : memref<4xi32, #tpu.memory_space<smem>>
    %48 = vector.broadcast %47 : i32 to vector<4x8xi32>
    %49 = arith.cmpi eq, %27, %48 : vector<4x8xi32>
    %50 = arith.andi %46, %49 : vector<4x8xi1>
    %cst_30 = arith.constant 1.000000e+00 : f32
    %51 = vector.broadcast %cst_30 : f32 to vector<4x8xf32>
    %52 = arith.select %50, %51, %44 : vector<4x8xi1>, vector<4x8xf32>
    %c3_i32 = arith.constant 3 : i32
    %53 = vector.broadcast %c3_i32 : i32 to vector<4x8xi32>
    %54 = arith.cmpi eq, %26, %53 : vector<4x8xi32>
    %c3_31 = arith.constant 3 : index
    %55 = memref.load %arg0[%c3_31] : memref<4xi32, #tpu.memory_space<smem>>
    %56 = vector.broadcast %55 : i32 to vector<4x8xi32>
    %57 = arith.cmpi eq, %27, %56 : vector<4x8xi32>
    %58 = arith.andi %54, %57 : vector<4x8xi1>
    %cst_32 = arith.constant 1.000000e+00 : f32
    %59 = vector.broadcast %cst_32 : f32 to vector<4x8xf32>
    %60 = arith.select %58, %59, %52 : vector<4x8xi1>, vector<4x8xf32>
    %cst_33 = arith.constant dense<0.000000e+00> : vector<4x32xf32>
    %61 = tpu.matmul %60, %25, %cst_33 {dimension_numbers = #tpu.dot_dimension_numbers<[1], [0], [0], [1], [0, 0, 1, 1], [], []>} : vector<4x8xf32>, vector<8x32xf32>, vector<4x32xf32> -> vector<4x32xf32>
    %c0_34 = arith.constant 0 : index
    %c0_35 = arith.constant 0 : index
    %62 = vector.load %arg4[%c0_34, %c0_35] : memref<4x12xf32, #tpu.memory_space<vmem>>, vector<4x12xf32>
    %cst_36 = arith.constant dense<0.000000e+00> : vector<4x32xf32>
    %63 = tpu.matmul %62, %1, %cst_36 {dimension_numbers = #tpu.dot_dimension_numbers<[1], [0], [0], [1], [0, 0, 1, 1], [], []>} : vector<4x12xf32>, vector<12x32xf32>, vector<4x32xf32> -> vector<4x32xf32>
    %64 = vector.broadcast %9 : vector<1x32xf32> to vector<4x32xf32>
    %65 = arith.addf %63, %64 : vector<4x32xf32>
    %cst_37 = arith.constant 0.000000e+00 : f32
    %66 = vector.broadcast %cst_37 : f32 to vector<4x32xf32>
    %67 = arith.maximumf %65, %66 : vector<4x32xf32>
    %68 = tpu.concatenate %67, %61 in 1 : vector<4x32xf32>, vector<4x32xf32> -> vector<4x64xf32>
    %cst_38 = arith.constant dense<0.000000e+00> : vector<4x32xf32>
    %69 = tpu.matmul %68, %3, %cst_38 {dimension_numbers = #tpu.dot_dimension_numbers<[1], [0], [0], [1], [0, 0, 1, 1], [], []>} : vector<4x64xf32>, vector<64x32xf32>, vector<4x32xf32> -> vector<4x32xf32>
    %70 = vector.broadcast %10 : vector<1x32xf32> to vector<4x32xf32>
    %71 = arith.addf %69, %70 : vector<4x32xf32>
    %c0_39 = arith.constant 0 : index
    %c0_40 = arith.constant 0 : index
    %c0_41 = arith.constant 0 : index
    %72 = vector.load %arg5[%c0_39, %c0_40, %c0_41] : memref<4x8x10xf32, #tpu.memory_space<vmem>>, vector<4x8x10xf32>
    %73 = vector.shape_cast %72 : vector<4x8x10xf32> to vector<32x10xf32>
    %cst_42 = arith.constant dense<0.000000e+00> : vector<32x128xf32>
    %74 = tpu.matmul %73, %6, %cst_42 {dimension_numbers = #tpu.dot_dimension_numbers<[1], [0], [0], [1], [0, 0, 1, 1], [], []>} : vector<32x10xf32>, vector<10x128xf32>, vector<32x128xf32> -> vector<32x128xf32>
    %75 = vector.broadcast %11 : vector<1x128xf32> to vector<32x128xf32>
    %76 = arith.addf %74, %75 : vector<32x128xf32>
    %77 = vector.shape_cast %76 : vector<32x128xf32> to vector<4x8x128xf32>
    %78 = tpu.iota {dimensions = array<i32: 1>} : vector<4x8x1xi32>
    %cst_43 = arith.constant 0.000000e+00 : f32
    %79 = vector.broadcast %cst_43 : f32 to vector<4x32xf32>
    %cst_44 = arith.constant 0.000000e+00 : f32
    %80 = vector.broadcast %cst_44 : f32 to vector<4x32xf32>
    %cst_45 = arith.constant 0.000000e+00 : f32
    %81 = vector.broadcast %cst_45 : f32 to vector<4x8x32xf32>
    %82 = vector.extract_strided_slice %77 {offsets = [0, 0, 0], sizes = [4, 1, 128], strides = [1, 1, 1]} : vector<4x8x128xf32> to vector<4x1x128xf32>
    %83 = vector.shape_cast %82 : vector<4x1x128xf32> to vector<4x128xf32>
    %cst_46 = arith.constant dense<0.000000e+00> : vector<4x128xf32>
    %84 = tpu.matmul %79, %5, %cst_46 {dimension_numbers = #tpu.dot_dimension_numbers<[1], [0], [0], [1], [0, 0, 1, 1], [], []>} : vector<4x32xf32>, vector<32x128xf32>, vector<4x128xf32> -> vector<4x128xf32>
    %85 = arith.addf %83, %84 : vector<4x128xf32>
    %86 = arith.negf %85 : vector<4x128xf32>
    %87 = math.exp %86 : vector<4x128xf32>
    %cst_47 = arith.constant 1.000000e+00 : f32
    %88 = vector.broadcast %cst_47 : f32 to vector<4x128xf32>
    %89 = arith.addf %88, %87 : vector<4x128xf32>
    %90 = arith.divf %88, %89 : vector<4x128xf32>
    %91 = vector.extract_strided_slice %85 {offsets = [0, 64], sizes = [4, 32], strides = [1, 1]} : vector<4x128xf32> to vector<4x32xf32>
    %92 = math.tanh %91 : vector<4x32xf32>
    %93 = vector.extract_strided_slice %90 {offsets = [0, 32], sizes = [4, 32], strides = [1, 1]} : vector<4x128xf32> to vector<4x32xf32>
    %94 = arith.mulf %93, %80 : vector<4x32xf32>
    %95 = vector.extract_strided_slice %90 {offsets = [0, 0], sizes = [4, 32], strides = [1, 1]} : vector<4x128xf32> to vector<4x32xf32>
    %96 = arith.mulf %95, %92 : vector<4x32xf32>
    %97 = arith.addf %94, %96 : vector<4x32xf32>
    %98 = vector.extract_strided_slice %90 {offsets = [0, 96], sizes = [4, 32], strides = [1, 1]} : vector<4x128xf32> to vector<4x32xf32>
    %99 = math.tanh %97 : vector<4x32xf32>
    %100 = arith.mulf %98, %99 : vector<4x32xf32>
    %c0_i32_48 = arith.constant 0 : i32
    %101 = vector.broadcast %c0_i32_48 : i32 to vector<4x8x1xi32>
    %102 = arith.cmpi eq, %78, %101 : vector<4x8x1xi32>
    %103 = vector.shape_cast %100 : vector<4x32xf32> to vector<4x1x32xf32>
    %104 = vector.shape_cast %102 : vector<4x8x1xi1> to vector<4x8x1xi1>
    %105 = vector.broadcast %104 : vector<4x8x1xi1> to vector<4x8x32xi1>
    %106 = vector.shape_cast %103 : vector<4x1x32xf32> to vector<4x1x32xf32>
    %107 = vector.broadcast %106 : vector<4x1x32xf32> to vector<4x8x32xf32>
    %108 = arith.select %105, %107, %81 : vector<4x8x32xi1>, vector<4x8x32xf32>
    %109 = vector.extract_strided_slice %77 {offsets = [0, 1, 0], sizes = [4, 1, 128], strides = [1, 1, 1]} : vector<4x8x128xf32> to vector<4x1x128xf32>
    %110 = vector.shape_cast %109 : vector<4x1x128xf32> to vector<4x128xf32>
    %cst_49 = arith.constant dense<0.000000e+00> : vector<4x128xf32>
    %111 = tpu.matmul %100, %5, %cst_49 {dimension_numbers = #tpu.dot_dimension_numbers<[1], [0], [0], [1], [0, 0, 1, 1], [], []>} : vector<4x32xf32>, vector<32x128xf32>, vector<4x128xf32> -> vector<4x128xf32>
    %112 = arith.addf %110, %111 : vector<4x128xf32>
    %113 = arith.negf %112 : vector<4x128xf32>
    %114 = math.exp %113 : vector<4x128xf32>
    %cst_50 = arith.constant 1.000000e+00 : f32
    %115 = vector.broadcast %cst_50 : f32 to vector<4x128xf32>
    %116 = arith.addf %115, %114 : vector<4x128xf32>
    %117 = arith.divf %115, %116 : vector<4x128xf32>
    %118 = vector.extract_strided_slice %112 {offsets = [0, 64], sizes = [4, 32], strides = [1, 1]} : vector<4x128xf32> to vector<4x32xf32>
    %119 = math.tanh %118 : vector<4x32xf32>
    %120 = vector.extract_strided_slice %117 {offsets = [0, 32], sizes = [4, 32], strides = [1, 1]} : vector<4x128xf32> to vector<4x32xf32>
    %121 = arith.mulf %120, %97 : vector<4x32xf32>
    %122 = vector.extract_strided_slice %117 {offsets = [0, 0], sizes = [4, 32], strides = [1, 1]} : vector<4x128xf32> to vector<4x32xf32>
    %123 = arith.mulf %122, %119 : vector<4x32xf32>
    %124 = arith.addf %121, %123 : vector<4x32xf32>
    %125 = vector.extract_strided_slice %117 {offsets = [0, 96], sizes = [4, 32], strides = [1, 1]} : vector<4x128xf32> to vector<4x32xf32>
    %126 = math.tanh %124 : vector<4x32xf32>
    %127 = arith.mulf %125, %126 : vector<4x32xf32>
    %c1_i32_51 = arith.constant 1 : i32
    %128 = vector.broadcast %c1_i32_51 : i32 to vector<4x8x1xi32>
    %129 = arith.cmpi eq, %78, %128 : vector<4x8x1xi32>
    %130 = vector.shape_cast %127 : vector<4x32xf32> to vector<4x1x32xf32>
    %131 = vector.shape_cast %129 : vector<4x8x1xi1> to vector<4x8x1xi1>
    %132 = vector.broadcast %131 : vector<4x8x1xi1> to vector<4x8x32xi1>
    %133 = vector.shape_cast %130 : vector<4x1x32xf32> to vector<4x1x32xf32>
    %134 = vector.broadcast %133 : vector<4x1x32xf32> to vector<4x8x32xf32>
    %135 = arith.select %132, %134, %108 : vector<4x8x32xi1>, vector<4x8x32xf32>
    %136 = vector.extract_strided_slice %77 {offsets = [0, 2, 0], sizes = [4, 1, 128], strides = [1, 1, 1]} : vector<4x8x128xf32> to vector<4x1x128xf32>
    %137 = vector.shape_cast %136 : vector<4x1x128xf32> to vector<4x128xf32>
    %cst_52 = arith.constant dense<0.000000e+00> : vector<4x128xf32>
    %138 = tpu.matmul %127, %5, %cst_52 {dimension_numbers = #tpu.dot_dimension_numbers<[1], [0], [0], [1], [0, 0, 1, 1], [], []>} : vector<4x32xf32>, vector<32x128xf32>, vector<4x128xf32> -> vector<4x128xf32>
    %139 = arith.addf %137, %138 : vector<4x128xf32>
    %140 = arith.negf %139 : vector<4x128xf32>
    %141 = math.exp %140 : vector<4x128xf32>
    %cst_53 = arith.constant 1.000000e+00 : f32
    %142 = vector.broadcast %cst_53 : f32 to vector<4x128xf32>
    %143 = arith.addf %142, %141 : vector<4x128xf32>
    %144 = arith.divf %142, %143 : vector<4x128xf32>
    %145 = vector.extract_strided_slice %139 {offsets = [0, 64], sizes = [4, 32], strides = [1, 1]} : vector<4x128xf32> to vector<4x32xf32>
    %146 = math.tanh %145 : vector<4x32xf32>
    %147 = vector.extract_strided_slice %144 {offsets = [0, 32], sizes = [4, 32], strides = [1, 1]} : vector<4x128xf32> to vector<4x32xf32>
    %148 = arith.mulf %147, %124 : vector<4x32xf32>
    %149 = vector.extract_strided_slice %144 {offsets = [0, 0], sizes = [4, 32], strides = [1, 1]} : vector<4x128xf32> to vector<4x32xf32>
    %150 = arith.mulf %149, %146 : vector<4x32xf32>
    %151 = arith.addf %148, %150 : vector<4x32xf32>
    %152 = vector.extract_strided_slice %144 {offsets = [0, 96], sizes = [4, 32], strides = [1, 1]} : vector<4x128xf32> to vector<4x32xf32>
    %153 = math.tanh %151 : vector<4x32xf32>
    %154 = arith.mulf %152, %153 : vector<4x32xf32>
    %c2_i32_54 = arith.constant 2 : i32
    %155 = vector.broadcast %c2_i32_54 : i32 to vector<4x8x1xi32>
    %156 = arith.cmpi eq, %78, %155 : vector<4x8x1xi32>
    %157 = vector.shape_cast %154 : vector<4x32xf32> to vector<4x1x32xf32>
    %158 = vector.shape_cast %156 : vector<4x8x1xi1> to vector<4x8x1xi1>
    %159 = vector.broadcast %158 : vector<4x8x1xi1> to vector<4x8x32xi1>
    %160 = vector.shape_cast %157 : vector<4x1x32xf32> to vector<4x1x32xf32>
    %161 = vector.broadcast %160 : vector<4x1x32xf32> to vector<4x8x32xf32>
    %162 = arith.select %159, %161, %135 : vector<4x8x32xi1>, vector<4x8x32xf32>
    %163 = vector.extract_strided_slice %77 {offsets = [0, 3, 0], sizes = [4, 1, 128], strides = [1, 1, 1]} : vector<4x8x128xf32> to vector<4x1x128xf32>
    %164 = vector.shape_cast %163 : vector<4x1x128xf32> to vector<4x128xf32>
    %cst_55 = arith.constant dense<0.000000e+00> : vector<4x128xf32>
    %165 = tpu.matmul %154, %5, %cst_55 {dimension_numbers = #tpu.dot_dimension_numbers<[1], [0], [0], [1], [0, 0, 1, 1], [], []>} : vector<4x32xf32>, vector<32x128xf32>, vector<4x128xf32> -> vector<4x128xf32>
    %166 = arith.addf %164, %165 : vector<4x128xf32>
    %167 = arith.negf %166 : vector<4x128xf32>
    %168 = math.exp %167 : vector<4x128xf32>
    %cst_56 = arith.constant 1.000000e+00 : f32
    %169 = vector.broadcast %cst_56 : f32 to vector<4x128xf32>
    %170 = arith.addf %169, %168 : vector<4x128xf32>
    %171 = arith.divf %169, %170 : vector<4x128xf32>
    %172 = vector.extract_strided_slice %166 {offsets = [0, 64], sizes = [4, 32], strides = [1, 1]} : vector<4x128xf32> to vector<4x32xf32>
    %173 = math.tanh %172 : vector<4x32xf32>
    %174 = vector.extract_strided_slice %171 {offsets = [0, 32], sizes = [4, 32], strides = [1, 1]} : vector<4x128xf32> to vector<4x32xf32>
    %175 = arith.mulf %174, %151 : vector<4x32xf32>
    %176 = vector.extract_strided_slice %171 {offsets = [0, 0], sizes = [4, 32], strides = [1, 1]} : vector<4x128xf32> to vector<4x32xf32>
    %177 = arith.mulf %176, %173 : vector<4x32xf32>
    %178 = arith.addf %175, %177 : vector<4x32xf32>
    %179 = vector.extract_strided_slice %171 {offsets = [0, 96], sizes = [4, 32], strides = [1, 1]} : vector<4x128xf32> to vector<4x32xf32>
    %180 = math.tanh %178 : vector<4x32xf32>
    %181 = arith.mulf %179, %180 : vector<4x32xf32>
    %c3_i32_57 = arith.constant 3 : i32
    %182 = vector.broadcast %c3_i32_57 : i32 to vector<4x8x1xi32>
    %183 = arith.cmpi eq, %78, %182 : vector<4x8x1xi32>
    %184 = vector.shape_cast %181 : vector<4x32xf32> to vector<4x1x32xf32>
    %185 = vector.shape_cast %183 : vector<4x8x1xi1> to vector<4x8x1xi1>
    %186 = vector.broadcast %185 : vector<4x8x1xi1> to vector<4x8x32xi1>
    %187 = vector.shape_cast %184 : vector<4x1x32xf32> to vector<4x1x32xf32>
    %188 = vector.broadcast %187 : vector<4x1x32xf32> to vector<4x8x32xf32>
    %189 = arith.select %186, %188, %162 : vector<4x8x32xi1>, vector<4x8x32xf32>
    %190 = vector.extract_strided_slice %77 {offsets = [0, 4, 0], sizes = [4, 1, 128], strides = [1, 1, 1]} : vector<4x8x128xf32> to vector<4x1x128xf32>
    %191 = vector.shape_cast %190 : vector<4x1x128xf32> to vector<4x128xf32>
    %cst_58 = arith.constant dense<0.000000e+00> : vector<4x128xf32>
    %192 = tpu.matmul %181, %5, %cst_58 {dimension_numbers = #tpu.dot_dimension_numbers<[1], [0], [0], [1], [0, 0, 1, 1], [], []>} : vector<4x32xf32>, vector<32x128xf32>, vector<4x128xf32> -> vector<4x128xf32>
    %193 = arith.addf %191, %192 : vector<4x128xf32>
    %194 = arith.negf %193 : vector<4x128xf32>
    %195 = math.exp %194 : vector<4x128xf32>
    %cst_59 = arith.constant 1.000000e+00 : f32
    %196 = vector.broadcast %cst_59 : f32 to vector<4x128xf32>
    %197 = arith.addf %196, %195 : vector<4x128xf32>
    %198 = arith.divf %196, %197 : vector<4x128xf32>
    %199 = vector.extract_strided_slice %193 {offsets = [0, 64], sizes = [4, 32], strides = [1, 1]} : vector<4x128xf32> to vector<4x32xf32>
    %200 = math.tanh %199 : vector<4x32xf32>
    %201 = vector.extract_strided_slice %198 {offsets = [0, 32], sizes = [4, 32], strides = [1, 1]} : vector<4x128xf32> to vector<4x32xf32>
    %202 = arith.mulf %201, %178 : vector<4x32xf32>
    %203 = vector.extract_strided_slice %198 {offsets = [0, 0], sizes = [4, 32], strides = [1, 1]} : vector<4x128xf32> to vector<4x32xf32>
    %204 = arith.mulf %203, %200 : vector<4x32xf32>
    %205 = arith.addf %202, %204 : vector<4x32xf32>
    %206 = vector.extract_strided_slice %198 {offsets = [0, 96], sizes = [4, 32], strides = [1, 1]} : vector<4x128xf32> to vector<4x32xf32>
    %207 = math.tanh %205 : vector<4x32xf32>
    %208 = arith.mulf %206, %207 : vector<4x32xf32>
    %c4_i32 = arith.constant 4 : i32
    %209 = vector.broadcast %c4_i32 : i32 to vector<4x8x1xi32>
    %210 = arith.cmpi eq, %78, %209 : vector<4x8x1xi32>
    %211 = vector.shape_cast %208 : vector<4x32xf32> to vector<4x1x32xf32>
    %212 = vector.shape_cast %210 : vector<4x8x1xi1> to vector<4x8x1xi1>
    %213 = vector.broadcast %212 : vector<4x8x1xi1> to vector<4x8x32xi1>
    %214 = vector.shape_cast %211 : vector<4x1x32xf32> to vector<4x1x32xf32>
    %215 = vector.broadcast %214 : vector<4x1x32xf32> to vector<4x8x32xf32>
    %216 = arith.select %213, %215, %189 : vector<4x8x32xi1>, vector<4x8x32xf32>
    %217 = vector.extract_strided_slice %77 {offsets = [0, 5, 0], sizes = [4, 1, 128], strides = [1, 1, 1]} : vector<4x8x128xf32> to vector<4x1x128xf32>
    %218 = vector.shape_cast %217 : vector<4x1x128xf32> to vector<4x128xf32>
    %cst_60 = arith.constant dense<0.000000e+00> : vector<4x128xf32>
    %219 = tpu.matmul %208, %5, %cst_60 {dimension_numbers = #tpu.dot_dimension_numbers<[1], [0], [0], [1], [0, 0, 1, 1], [], []>} : vector<4x32xf32>, vector<32x128xf32>, vector<4x128xf32> -> vector<4x128xf32>
    %220 = arith.addf %218, %219 : vector<4x128xf32>
    %221 = arith.negf %220 : vector<4x128xf32>
    %222 = math.exp %221 : vector<4x128xf32>
    %cst_61 = arith.constant 1.000000e+00 : f32
    %223 = vector.broadcast %cst_61 : f32 to vector<4x128xf32>
    %224 = arith.addf %223, %222 : vector<4x128xf32>
    %225 = arith.divf %223, %224 : vector<4x128xf32>
    %226 = vector.extract_strided_slice %220 {offsets = [0, 64], sizes = [4, 32], strides = [1, 1]} : vector<4x128xf32> to vector<4x32xf32>
    %227 = math.tanh %226 : vector<4x32xf32>
    %228 = vector.extract_strided_slice %225 {offsets = [0, 32], sizes = [4, 32], strides = [1, 1]} : vector<4x128xf32> to vector<4x32xf32>
    %229 = arith.mulf %228, %205 : vector<4x32xf32>
    %230 = vector.extract_strided_slice %225 {offsets = [0, 0], sizes = [4, 32], strides = [1, 1]} : vector<4x128xf32> to vector<4x32xf32>
    %231 = arith.mulf %230, %227 : vector<4x32xf32>
    %232 = arith.addf %229, %231 : vector<4x32xf32>
    %233 = vector.extract_strided_slice %225 {offsets = [0, 96], sizes = [4, 32], strides = [1, 1]} : vector<4x128xf32> to vector<4x32xf32>
    %234 = math.tanh %232 : vector<4x32xf32>
    %235 = arith.mulf %233, %234 : vector<4x32xf32>
    %c5_i32 = arith.constant 5 : i32
    %236 = vector.broadcast %c5_i32 : i32 to vector<4x8x1xi32>
    %237 = arith.cmpi eq, %78, %236 : vector<4x8x1xi32>
    %238 = vector.shape_cast %235 : vector<4x32xf32> to vector<4x1x32xf32>
    %239 = vector.shape_cast %237 : vector<4x8x1xi1> to vector<4x8x1xi1>
    %240 = vector.broadcast %239 : vector<4x8x1xi1> to vector<4x8x32xi1>
    %241 = vector.shape_cast %238 : vector<4x1x32xf32> to vector<4x1x32xf32>
    %242 = vector.broadcast %241 : vector<4x1x32xf32> to vector<4x8x32xf32>
    %243 = arith.select %240, %242, %216 : vector<4x8x32xi1>, vector<4x8x32xf32>
    %244 = vector.extract_strided_slice %77 {offsets = [0, 6, 0], sizes = [4, 1, 128], strides = [1, 1, 1]} : vector<4x8x128xf32> to vector<4x1x128xf32>
    %245 = vector.shape_cast %244 : vector<4x1x128xf32> to vector<4x128xf32>
    %cst_62 = arith.constant dense<0.000000e+00> : vector<4x128xf32>
    %246 = tpu.matmul %235, %5, %cst_62 {dimension_numbers = #tpu.dot_dimension_numbers<[1], [0], [0], [1], [0, 0, 1, 1], [], []>} : vector<4x32xf32>, vector<32x128xf32>, vector<4x128xf32> -> vector<4x128xf32>
    %247 = arith.addf %245, %246 : vector<4x128xf32>
    %248 = arith.negf %247 : vector<4x128xf32>
    %249 = math.exp %248 : vector<4x128xf32>
    %cst_63 = arith.constant 1.000000e+00 : f32
    %250 = vector.broadcast %cst_63 : f32 to vector<4x128xf32>
    %251 = arith.addf %250, %249 : vector<4x128xf32>
    %252 = arith.divf %250, %251 : vector<4x128xf32>
    %253 = vector.extract_strided_slice %247 {offsets = [0, 64], sizes = [4, 32], strides = [1, 1]} : vector<4x128xf32> to vector<4x32xf32>
    %254 = math.tanh %253 : vector<4x32xf32>
    %255 = vector.extract_strided_slice %252 {offsets = [0, 32], sizes = [4, 32], strides = [1, 1]} : vector<4x128xf32> to vector<4x32xf32>
    %256 = arith.mulf %255, %232 : vector<4x32xf32>
    %257 = vector.extract_strided_slice %252 {offsets = [0, 0], sizes = [4, 32], strides = [1, 1]} : vector<4x128xf32> to vector<4x32xf32>
    %258 = arith.mulf %257, %254 : vector<4x32xf32>
    %259 = arith.addf %256, %258 : vector<4x32xf32>
    %260 = vector.extract_strided_slice %252 {offsets = [0, 96], sizes = [4, 32], strides = [1, 1]} : vector<4x128xf32> to vector<4x32xf32>
    %261 = math.tanh %259 : vector<4x32xf32>
    %262 = arith.mulf %260, %261 : vector<4x32xf32>
    %c6_i32 = arith.constant 6 : i32
    %263 = vector.broadcast %c6_i32 : i32 to vector<4x8x1xi32>
    %264 = arith.cmpi eq, %78, %263 : vector<4x8x1xi32>
    %265 = vector.shape_cast %262 : vector<4x32xf32> to vector<4x1x32xf32>
    %266 = vector.shape_cast %264 : vector<4x8x1xi1> to vector<4x8x1xi1>
    %267 = vector.broadcast %266 : vector<4x8x1xi1> to vector<4x8x32xi1>
    %268 = vector.shape_cast %265 : vector<4x1x32xf32> to vector<4x1x32xf32>
    %269 = vector.broadcast %268 : vector<4x1x32xf32> to vector<4x8x32xf32>
    %270 = arith.select %267, %269, %243 : vector<4x8x32xi1>, vector<4x8x32xf32>
    %271 = vector.extract_strided_slice %77 {offsets = [0, 7, 0], sizes = [4, 1, 128], strides = [1, 1, 1]} : vector<4x8x128xf32> to vector<4x1x128xf32>
    %272 = vector.shape_cast %271 : vector<4x1x128xf32> to vector<4x128xf32>
    %cst_64 = arith.constant dense<0.000000e+00> : vector<4x128xf32>
    %273 = tpu.matmul %262, %5, %cst_64 {dimension_numbers = #tpu.dot_dimension_numbers<[1], [0], [0], [1], [0, 0, 1, 1], [], []>} : vector<4x32xf32>, vector<32x128xf32>, vector<4x128xf32> -> vector<4x128xf32>
    %274 = arith.addf %272, %273 : vector<4x128xf32>
    %275 = arith.negf %274 : vector<4x128xf32>
    %276 = math.exp %275 : vector<4x128xf32>
    %cst_65 = arith.constant 1.000000e+00 : f32
    %277 = vector.broadcast %cst_65 : f32 to vector<4x128xf32>
    %278 = arith.addf %277, %276 : vector<4x128xf32>
    %279 = arith.divf %277, %278 : vector<4x128xf32>
    %280 = vector.extract_strided_slice %274 {offsets = [0, 64], sizes = [4, 32], strides = [1, 1]} : vector<4x128xf32> to vector<4x32xf32>
    %281 = math.tanh %280 : vector<4x32xf32>
    %282 = vector.extract_strided_slice %279 {offsets = [0, 32], sizes = [4, 32], strides = [1, 1]} : vector<4x128xf32> to vector<4x32xf32>
    %283 = arith.mulf %282, %259 : vector<4x32xf32>
    %284 = vector.extract_strided_slice %279 {offsets = [0, 0], sizes = [4, 32], strides = [1, 1]} : vector<4x128xf32> to vector<4x32xf32>
    %285 = arith.mulf %284, %281 : vector<4x32xf32>
    %286 = arith.addf %283, %285 : vector<4x32xf32>
    %287 = vector.extract_strided_slice %279 {offsets = [0, 96], sizes = [4, 32], strides = [1, 1]} : vector<4x128xf32> to vector<4x32xf32>
    %288 = math.tanh %286 : vector<4x32xf32>
    %289 = arith.mulf %287, %288 : vector<4x32xf32>
    %c7_i32 = arith.constant 7 : i32
    %290 = vector.broadcast %c7_i32 : i32 to vector<4x8x1xi32>
    %291 = arith.cmpi eq, %78, %290 : vector<4x8x1xi32>
    %292 = vector.shape_cast %289 : vector<4x32xf32> to vector<4x1x32xf32>
    %293 = vector.shape_cast %291 : vector<4x8x1xi1> to vector<4x8x1xi1>
    %294 = vector.broadcast %293 : vector<4x8x1xi1> to vector<4x8x32xi1>
    %295 = vector.shape_cast %292 : vector<4x1x32xf32> to vector<4x1x32xf32>
    %296 = vector.broadcast %295 : vector<4x1x32xf32> to vector<4x8x32xf32>
    %297 = arith.select %294, %296, %270 : vector<4x8x32xi1>, vector<4x8x32xf32>
    %298 = tpu.iota {dimensions = array<i32: 0>} : vector<4x8x1xi32>
    %cst_66 = arith.constant 0.000000e+00 : f32
    %299 = vector.broadcast %cst_66 : f32 to vector<4x8x1xf32>
    %c0_i32_67 = arith.constant 0 : i32
    %300 = vector.broadcast %c0_i32_67 : i32 to vector<4x8x1xi32>
    %301 = arith.cmpi eq, %298, %300 : vector<4x8x1xi32>
    %c0_68 = arith.constant 0 : index
    %302 = memref.load %arg1[%c0_68] : memref<4xi32, #tpu.memory_space<smem>>
    %303 = vector.broadcast %302 : i32 to vector<4x8x1xi32>
    %304 = arith.cmpi slt, %78, %303 : vector<4x8x1xi32>
    %305 = arith.andi %301, %304 : vector<4x8x1xi1>
    %cst_69 = arith.constant 1.000000e+00 : f32
    %306 = vector.broadcast %cst_69 : f32 to vector<4x8x1xf32>
    %307 = arith.select %305, %306, %299 : vector<4x8x1xi1>, vector<4x8x1xf32>
    %c1_i32_70 = arith.constant 1 : i32
    %308 = vector.broadcast %c1_i32_70 : i32 to vector<4x8x1xi32>
    %309 = arith.cmpi eq, %298, %308 : vector<4x8x1xi32>
    %c1_71 = arith.constant 1 : index
    %310 = memref.load %arg1[%c1_71] : memref<4xi32, #tpu.memory_space<smem>>
    %311 = vector.broadcast %310 : i32 to vector<4x8x1xi32>
    %312 = arith.cmpi slt, %78, %311 : vector<4x8x1xi32>
    %313 = arith.andi %309, %312 : vector<4x8x1xi1>
    %cst_72 = arith.constant 1.000000e+00 : f32
    %314 = vector.broadcast %cst_72 : f32 to vector<4x8x1xf32>
    %315 = arith.select %313, %314, %307 : vector<4x8x1xi1>, vector<4x8x1xf32>
    %c2_i32_73 = arith.constant 2 : i32
    %316 = vector.broadcast %c2_i32_73 : i32 to vector<4x8x1xi32>
    %317 = arith.cmpi eq, %298, %316 : vector<4x8x1xi32>
    %c2_74 = arith.constant 2 : index
    %318 = memref.load %arg1[%c2_74] : memref<4xi32, #tpu.memory_space<smem>>
    %319 = vector.broadcast %318 : i32 to vector<4x8x1xi32>
    %320 = arith.cmpi slt, %78, %319 : vector<4x8x1xi32>
    %321 = arith.andi %317, %320 : vector<4x8x1xi1>
    %cst_75 = arith.constant 1.000000e+00 : f32
    %322 = vector.broadcast %cst_75 : f32 to vector<4x8x1xf32>
    %323 = arith.select %321, %322, %315 : vector<4x8x1xi1>, vector<4x8x1xf32>
    %c3_i32_76 = arith.constant 3 : i32
    %324 = vector.broadcast %c3_i32_76 : i32 to vector<4x8x1xi32>
    %325 = arith.cmpi eq, %298, %324 : vector<4x8x1xi32>
    %c3_77 = arith.constant 3 : index
    %326 = memref.load %arg1[%c3_77] : memref<4xi32, #tpu.memory_space<smem>>
    %327 = vector.broadcast %326 : i32 to vector<4x8x1xi32>
    %328 = arith.cmpi slt, %78, %327 : vector<4x8x1xi32>
    %329 = arith.andi %325, %328 : vector<4x8x1xi1>
    %cst_78 = arith.constant 1.000000e+00 : f32
    %330 = vector.broadcast %cst_78 : f32 to vector<4x8x1xf32>
    %331 = arith.select %329, %330, %323 : vector<4x8x1xi1>, vector<4x8x1xf32>
    %332 = vector.broadcast %331 : vector<4x8x1xf32> to vector<4x8x32xf32>
    %333 = arith.mulf %297, %332 : vector<4x8x32xf32>
    %334 = vector.shape_cast %333 : vector<4x8x32xf32> to vector<32x32xf32>
    %cst_79 = arith.constant dense<0.000000e+00> : vector<32x32xf32>
    %335 = tpu.matmul %334, %4, %cst_79 {dimension_numbers = #tpu.dot_dimension_numbers<[1], [0], [0], [1], [0, 0, 1, 1], [], []>} : vector<32x32xf32>, vector<32x32xf32>, vector<32x32xf32> -> vector<32x32xf32>
    %336 = vector.shape_cast %335 : vector<32x32xf32> to vector<4x8x32xf32>
    %337 = vector.shape_cast %71 : vector<4x32xf32> to vector<4x1x32xf32>
    %338 = vector.broadcast %337 : vector<4x1x32xf32> to vector<4x8x32xf32>
    %339 = arith.addf %336, %338 : vector<4x8x32xf32>
    %cst_80 = arith.constant 0.000000e+00 : f32
    %340 = vector.broadcast %cst_80 : f32 to vector<4x8x32xf32>
    %341 = arith.maximumf %339, %340 : vector<4x8x32xf32>
    %342 = vector.shape_cast %341 : vector<4x8x32xf32> to vector<32x32xf32>
    %c0_81 = arith.constant 0 : index
    %c0_82 = arith.constant 0 : index
    %343 = vector.load %arg10[%c0_81, %c0_82] : memref<32x32xf32, #tpu.memory_space<vmem>>, vector<32x32xf32>
    tpu.vector_store %arg10[%c0_81, %c0_82], %342 {strides = array<i32>} : memref<32x32xf32, #tpu.memory_space<vmem>>, vector<32x32xf32>,
    %344 = vector.shape_cast %12 : vector<1x32xf32> to vector<1x1x32xf32>
    %345 = vector.broadcast %344 : vector<1x1x32xf32> to vector<4x8x32xf32>
    %346 = arith.mulf %341, %345 : vector<4x8x32xf32>
    %cst_83 = arith.constant dense<0.000000e+00> : vector<4x8xf32>
    %347 = vector.multi_reduction <add>, %346, %cst_83 [2] : vector<4x8x32xf32> to vector<4x8xf32>
    %348 = vector.broadcast %13 : vector<1x1xf32> to vector<4x8xf32>
    %349 = arith.addf %347, %348 : vector<4x8xf32>
    %350 = arith.negf %349 : vector<4x8xf32>
    %351 = math.exp %350 : vector<4x8xf32>
    %cst_84 = arith.constant 1.000000e+00 : f32
    %352 = vector.broadcast %cst_84 : f32 to vector<4x8xf32>
    %353 = arith.addf %352, %351 : vector<4x8xf32>
    %354 = arith.divf %352, %353 : vector<4x8xf32>
    %c0_85 = arith.constant 0 : index
    %c0_86 = arith.constant 0 : index
    %355 = vector.load %arg9[%c0_85, %c0_86] : memref<4x8xf32, #tpu.memory_space<vmem>>, vector<4x8xf32>
    tpu.vector_store %arg9[%c0_85, %c0_86], %354 {strides = array<i32>} : memref<4x8xf32, #tpu.memory_space<vmem>>, vector<4x8xf32>,
    return
  }
}

</mosaic_0001>

<llo_original>
// kernel: patient_outcome_forward.1
$region0: #{patient_outcome_forward.1}
  #allocation0 [shape = 'u32[]', space=smem, size = 0x4, offset = 0x4, fixed_abs, tag = 'smem constant byte address 0x4 - core index']
  #allocation1 [shape = 'u32[144,128]{1,0:T(1,128)}', space=vmem, size = 0x12000, scoped, tag = 'internal scratch']
  %s0 = inlined_call_operand.vmem [shape: s32[4], index: 0, kind: input, shape index: {}]
  %s1 = inlined_call_operand.vmem [shape: s32[4], index: 1, kind: input, shape index: {}]
  %s2 = inlined_call_operand.vmem [shape: f32[8,8], index: 2, kind: input, shape index: {}]
  %s3 = inlined_call_operand.vmem [shape: f32[8,6], index: 3, kind: input, shape index: {}]
  %s4 = inlined_call_operand.vmem [shape: f32[4,12], index: 4, kind: input, shape index: {}]
  %s5 = inlined_call_operand.vmem [shape: f32[4,8,10], index: 5, kind: input, shape index: {}]
  %s6 = inlined_call_operand.vmem [shape: f32[152,32], index: 6, kind: input, shape index: {}]
  %s7 = inlined_call_operand.vmem [shape: f32[42,128], index: 7, kind: input, shape index: {}]
  %s8 = inlined_call_operand.vmem [shape: f32[7,128], index: 8, kind: input, shape index: {}]
  %s9 = inlined_call_operand.hbm [shape: f32[4,8], index: 9, kind: output, shape index: {0}]
  %s10 = inlined_call_operand.hbm [shape: f32[32,32], index: 10, kind: output, shape index: {1}]
  %11 = xla_tuple %s9, %s10
  %s12 = sld [smem:[#allocation0]]
  $region62: #{patient_outcome_forward.1} parent=0
    _
  %s14 = ssub.s32 1, %s12
  %s15 = scalar_select 0, %s14, %s12
  $region1: #{patient_outcome_forward.1} parent=0
    #allocation2 [shape = 'u8[512]{0}', space=smem, size = 0x200, scoped, tag = 'input window, operand 0, single buffered']
    #allocation3 [shape = 's32[1]{0}', space=sflag, size = 0x4, scoped, tag = 'scoped memory for patient_outcome_forward.1']
    #allocation4 [shape = 's32[1]{0}', space=sflag, size = 0x4, scoped, tag = 'scoped memory for patient_outcome_forward.1']
    #allocation5 [shape = 'u8[512]{0}', space=smem, size = 0x200, scoped, tag = 'input window, operand 1, single buffered']
    #allocation6 [shape = 's32[1]{0}', space=sflag, size = 0x4, scoped, tag = 'scoped memory for patient_outcome_forward.1']
    #allocation7 [shape = 'u8[2048]{0}', space=vmem, size = 0x800, scoped, tag = 'output window, operand 0, single buffered']
    #allocation8 [shape = 'u8[16384]{0}', space=vmem, size = 0x4000, scoped, tag = 'output window, operand 1, single buffered']
    #allocation9 [shape = 's32[1]{0}', space=sflag, size = 0x4, scoped, tag = 'scoped memory for patient_outcome_forward.1']
    %16 = vsyncpa [#allocation4], 0
    %17 = vsyncpa [#allocation6], 0
    %18 = vsyncpa [#allocation3], 0
    %19 = vsyncpa [#allocation9], 0
    // Predicated region
    $region2: #{patient_outcome_forward.1} parent=1 // pred_check
      _
    $region3: #{patient_outcome_forward.1} parent=1 // pred_check_branch
      %21 = sbr.rel (0) target = $region5
    $region4: #{patient_outcome_forward.1} parent=1 // pred_region
      %s23 = ssub.s32 16, 16
      %24 = vsyncadd [#allocation4], %s23
      %s26 = sshll.u32 %s0, 4
      %s27 = int_to_ptr.vmem [resolvable:$true] %s26
      %29 = dma.vmem_to_smem %s27, 16, [#allocation2], [#allocation4]
    $region5: #{patient_outcome_forward.1} parent=1 // pred_fallthru
      _
    // Predicated region
    $region6: #{patient_outcome_forward.1} parent=1 // pred_check
      _
    $region7: #{patient_outcome_forward.1} parent=1 // pred_check_branch
      %31 = sbr.rel (0) target = $region9
    $region8: #{patient_outcome_forward.1} parent=1 // pred_region
      %s33 = ssub.s32 16, 16
      %34 = vsyncadd [#allocation6], %s33
      %s36 = sshll.u32 %s1, 4
      %s37 = int_to_ptr.vmem [resolvable:$true] %s36
      %39 = dma.vmem_to_smem %s37, 16, [#allocation5], [#allocation6]
    $region9: #{patient_outcome_forward.1} parent=1 // pred_fallthru
      _
    // Predicated region
    $region10: #{patient_outcome_forward.1} parent=1 // pred_check
      _
    $region11: #{patient_outcome_forward.1} parent=1 // pred_check_branch
      %41 = sbr.rel (0) target = $region13
    $region12: #{patient_outcome_forward.1} parent=1 // pred_region
      _
    $region13: #{patient_outcome_forward.1} parent=1 // pred_fallthru
      _
    // Predicated region
    $region14: #{patient_outcome_forward.1} parent=1 // pred_check
      _
    $region15: #{patient_outcome_forward.1} parent=1 // pred_check_branch
      %43 = sbr.rel (0) target = $region17
    $region16: #{patient_outcome_forward.1} parent=1 // pred_region
      _
    $region17: #{patient_outcome_forward.1} parent=1 // pred_fallthru
      _
    // Predicated region
    $region18: #{patient_outcome_forward.1} parent=1 // pred_check
      _
    $region19: #{patient_outcome_forward.1} parent=1 // pred_check_branch
      %45 = sbr.rel (0) target = $region21
    $region20: #{patient_outcome_forward.1} parent=1 // pred_region
      _
    $region21: #{patient_outcome_forward.1} parent=1 // pred_fallthru
      _
    // Predicated region
    $region22: #{patient_outcome_forward.1} parent=1 // pred_check
      _
    $region23: #{patient_outcome_forward.1} parent=1 // pred_check_branch
      %47 = sbr.rel (0) target = $region25
    $region24: #{patient_outcome_forward.1} parent=1 // pred_region
      _
    $region25: #{patient_outcome_forward.1} parent=1 // pred_fallthru
      _
    // Predicated region
    $region26: #{patient_outcome_forward.1} parent=1 // pred_check
      _
    $region27: #{patient_outcome_forward.1} parent=1 // pred_check_branch
      %49 = sbr.rel (0) target = $region29
    $region28: #{patient_outcome_forward.1} parent=1 // pred_region
      _
    $region29: #{patient_outcome_forward.1} parent=1 // pred_fallthru
      _
    // Predicated region
    $region30: #{patient_outcome_forward.1} parent=1 // pred_check
      _
    $region31: #{patient_outcome_forward.1} parent=1 // pred_check_branch
      %51 = sbr.rel (0) target = $region33
    $region32: #{patient_outcome_forward.1} parent=1 // pred_region
      _
    $region33: #{patient_outcome_forward.1} parent=1 // pred_fallthru
      _
    // Predicated region
    $region34: #{patient_outcome_forward.1} parent=1 // pred_check
      _
    $region35: #{patient_outcome_forward.1} parent=1 // pred_check_branch
      %53 = sbr.rel (0) target = $region37
    $region36: #{patient_outcome_forward.1} parent=1 // pred_region
      _
    $region37: #{patient_outcome_forward.1} parent=1 // pred_fallthru
      _
    // Predicated region
    $region38: #{patient_outcome_forward.1} parent=1 // pred_check
      _
    $region39: #{patient_outcome_forward.1} parent=1 // pred_check_branch
      %55 = sbr.rel (0) target = $region41
    $region40: #{patient_outcome_forward.1} parent=1 // pred_region
      %56 = dma.done [#allocation4], 16
    $region41: #{patient_outcome_forward.1} parent=1 // pred_fallthru
      _
    // Predicated region
    $region42: #{patient_outcome_forward.1} parent=1 // pred_check
      _
    $region43: #{patient_outcome_forward.1} parent=1 // pred_check_branch
      %58 = sbr.rel (0) target = $region45
    $region44: #{patient_outcome_forward.1} parent=1 // pred_region
      %59 = dma.done [#allocation6], 16
    $region45: #{patient_outcome_forward.1} parent=1 // pred_fallthru
      _
    %60 = sfence
    %v61 = vld [vmem:[%s6] sm:$0x3f]
    %v62 = vld [vmem:[%s6 + $0x8] sm:$0xff]
    %v63 = vld [vmem:[%s6 + $0x10] sm:$0xf]
    %v64 = vld [vmem:[%s6 + $0x18] sm:$0xff]
    %v65 = vld [vmem:[%s6 + $0x20] sm:$0xff]
    %v66 = vld [vmem:[%s6 + $0x28] sm:$0xff]
    %v67 = vld [vmem:[%s6 + $0x30] sm:$0xff]
    %v68 = vld [vmem:[%s6 + $0x38] sm:$0xff]
    %v69 = vld [vmem:[%s6 + $0x40] sm:$0xff]
    %v70 = vld [vmem:[%s6 + $0x48] sm:$0xff]
    %v71 = vld [vmem:[%s6 + $0x50] sm:$0xff]
    %v72 = vld [vmem:[%s6 + $0x58] sm:$0xff]
    %v73 = vld [vmem:[%s6 + $0x60] sm:$0xff]
    %v74 = vld [vmem:[%s6 + $0x68] sm:$0xff]
    %v75 = vld [vmem:[%s6 + $0x70] sm:$0xff]
    %v76 = vld [vmem:[%s6 + $0x78] sm:$0xff]
    %v77 = vld [vmem:[%s6 + $0x80] sm:$0xff]
    %v78 = vld [vmem:[%s6 + $0x88] sm:$0xff]
    %v79 = vld [vmem:[%s6 + $0x90] sm:$0xff]
    %v80 = vld [vmem:[%s7] sm:$0xff]
    %v81 = vld [vmem:[%s7 + $0x8] sm:$0xff]
    %v82 = vld [vmem:[%s7 + $0x10] sm:$0xff]
    %v83 = vld [vmem:[%s7 + $0x18] sm:$0xff]
    %v84 = vld [vmem:[%s7 + $0x20] sm:$0xff]
    %v85 = vld [vmem:[%s7 + $0x28] sm:$0x3]
    %v86 = vld [vmem:[%s8] sm:$0x1]
    %v87 = vld [vmem:[%s8 + $0x1] sm:$0x1]
    %v88 = vld [vmem:[%s8 + $0x2] sm:$0x1]
    %v89 = vld [vmem:[%s8 + $0x3] sm:$0x1]
    %v90 = vld [vmem:[%s8 + $0x4] sm:$0x1]
    %v91 = vld [vmem:[%s8 + $0x5] sm:$0x1]
    %v92 = vld [vmem:[%s8 + $0x6] sm:$0x1]
    %v93 = vld [vmem:[%s2] sm:$0xff]
    %v94 = vld [vmem:[%s3] sm:$0xff]
    %vm95 = vcmask 48128
    %v97 = vsel %vm95, %v94, 0
    %vm99 = vcmask 1045504
    %v101 = vsel %vm99, %v61, 0
    %103 = vmatprep.subr.mxu0 0.0
    %104 = vmatpush1.msra.mxu0 0.0
    %105 = vmatprep.subr.mxu0 0.0
    %106 = vmatpush1.msra.mxu0 0.0
    %107 = vmatprep.subr.mxu0 0.0
    %108 = vmatpush1.msra.mxu0 0.0
    %109 = vmatprep.subr.mxu0 0.0
    %110 = vmatpush1.msra.mxu0 0.0
    %111 = vmatprep.subr.mxu0 0.0
    %112 = vmatpush1.msra.mxu0 0.0
    %113 = vmatprep.subr.mxu0 0.0
    %114 = vmatpush1.msra.mxu0 0.0
    %115 = vmatprep.subr.mxu0 0.0
    %116 = vmatpush1.msra.mxu0 0.0
    %117 = vmatprep.subr.mxu0 0.0
    %118 = vmatpush1.msra.mxu0 0.0
    %119 = vmatprep.subr.mxu0 0.0
    %120 = vmatpush1.msra.mxu0 0.0
    %121 = vmatprep.subr.mxu0 0.0
    %122 = vmatpush1.msra.mxu0 0.0
    %123 = vmatprep.subr.mxu0 0.0
    %124 = vmatpush1.msra.mxu0 0.0
    %125 = vmatprep.subr.mxu0 0.0
    %126 = vmatpush1.msra.mxu0 0.0
    %127 = vmatprep.subr.mxu0 0.0
    %128 = vmatpush1.msra.mxu0 0.0
    %129 = vmatprep.subr.mxu0 0.0
    %130 = vmatpush1.msra.mxu0 0.0
    %131 = vmatprep.subr.mxu0 0.0
    %132 = vmatpush1.msra.mxu0 0.0
    %133 = vmatprep.subr.mxu0 0.0
    %134 = vmatpush1.msra.mxu0 %v101
    %135 = vmatprep.subr.mxu0 0.0
    %136 = vmatpush2.msra.mxu0 0.0
    %137 = vmatprep.subr.mxu0 0.0
    %138 = vmatpush2.msra.mxu0 0.0
    %139 = vmatprep.subr.mxu0 0.0
    %140 = vmatpush2.msra.mxu0 0.0
    %141 = vmatprep.subr.mxu0 0.0
    %142 = vmatpush2.msra.mxu0 0.0
    %143 = vmatprep.subr.mxu0 0.0
    %144 = vmatpush2.msra.mxu0 0.0
    %145 = vmatprep.subr.mxu0 0.0
    %146 = vmatpush2.msra.mxu0 0.0
    %147 = vmatprep.subr.mxu0 0.0
    %148 = vmatpush2.msra.mxu0 0.0
    %149 = vmatprep.subr.mxu0 0.0
    %150 = vmatpush2.msra.mxu0 0.0
    %151 = vmatprep.subr.mxu0 0.0
    %152 = vmatpush2.msra.mxu0 0.0
    %153 = vmatprep.subr.mxu0 0.0
    %154 = vmatpush2.msra.mxu0 0.0
    %155 = vmatprep.subr.mxu0 0.0
    %156 = vmatpush2.msra.mxu0 0.0
    %157 = vmatprep.subr.mxu0 0.0
    %158 = vmatpush2.msra.mxu0 0.0
    %159 = vmatprep.subr.mxu0 0.0
    %160 = vmatpush2.msra.mxu0 0.0
    %161 = vmatprep.subr.mxu0 0.0
    %162 = vmatpush2.msra.mxu0 0.0
    %163 = vmatprep.subr.mxu0 0.0
    %164 = vmatpush2.msra.mxu0 0.0
    %165 = vmatprep.subr.mxu0 0.0
    %166 = vmatpush2.msra.mxu0 0.0
    %167 = vmatprep.mubr.f32.mxu0 0.0
    %168 = vmatmul.mubr.f32.gmra.mxu0 %v97
    %v169 = vpop.f32.mrf.mxu0
    %v170 = vadd.f32 0.0, %v169
    %v171 = vpop.f32.mrf.mxu0
    %172 = vdwg.mxu0
    %v173 = vlaneseq
    %v174 = vshrl.u32 %v173, 7
    %v175 = vsub.s32 0, %v174
    %v176 = vrot.slane %v86, %v175
    %vm177 = vcmask 64512
    %v179 = vsel %vm177, %v93, 0
    %181 = vmatprep.subr.mxu0 0.0
    %182 = vmatpush1.msra.mxu0 0.0
    %183 = vmatprep.subr.mxu0 0.0
    %184 = vmatpush1.msra.mxu0 0.0
    %185 = vmatprep.subr.mxu0 0.0
    %186 = vmatpush1.msra.mxu0 0.0
    %187 = vmatprep.subr.mxu0 0.0
    %188 = vmatpush1.msra.mxu0 0.0
    %189 = vmatprep.subr.mxu0 0.0
    %190 = vmatpush1.msra.mxu0 0.0
    %191 = vmatprep.subr.mxu0 0.0
    %192 = vmatpush1.msra.mxu0 0.0
    %193 = vmatprep.subr.mxu0 0.0
    %194 = vmatpush1.msra.mxu0 0.0
    %195 = vmatprep.subr.mxu0 0.0
    %196 = vmatpush1.msra.mxu0 0.0
    %197 = vmatprep.subr.mxu0 0.0
    %198 = vmatpush1.msra.mxu0 0.0
    %199 = vmatprep.subr.mxu0 0.0
    %200 = vmatpush1.msra.mxu0 0.0
    %201 = vmatprep.subr.mxu0 0.0
    %202 = vmatpush1.msra.mxu0 0.0
    %203 = vmatprep.subr.mxu0 0.0
    %204 = vmatpush1.msra.mxu0 0.0
    %205 = vmatprep.subr.mxu0 0.0
    %206 = vmatpush1.msra.mxu0 0.0
    %207 = vmatprep.subr.mxu0 0.0
    %208 = vmatpush1.msra.mxu0 0.0
    %209 = vmatprep.subr.mxu0 0.0
    %210 = vmatpush1.msra.mxu0 0.0
    %211 = vmatprep.subr.mxu0 0.0
    %212 = vmatpush1.msra.mxu0 %v170
    %213 = vmatprep.subr.mxu0 0.0
    %214 = vmatpush2.msra.mxu0 0.0
    %215 = vmatprep.subr.mxu0 0.0
    %216 = vmatpush2.msra.mxu0 0.0
    %217 = vmatprep.subr.mxu0 0.0
    %218 = vmatpush2.msra.mxu0 0.0
    %219 = vmatprep.subr.mxu0 0.0
    %220 = vmatpush2.msra.mxu0 0.0
    %221 = vmatprep.subr.mxu0 0.0
    %222 = vmatpush2.msra.mxu0 0.0
    %223 = vmatprep.subr.mxu0 0.0
    %224 = vmatpush2.msra.mxu0 0.0
    %225 = vmatprep.subr.mxu0 0.0
    %226 = vmatpush2.msra.mxu0 0.0
    %227 = vmatprep.subr.mxu0 0.0
    %228 = vmatpush2.msra.mxu0 0.0
    %229 = vmatprep.subr.mxu0 0.0
    %230 = vmatpush2.msra.mxu0 0.0
    %231 = vmatprep.subr.mxu0 0.0
    %232 = vmatpush2.msra.mxu0 0.0
    %233 = vmatprep.subr.mxu0 0.0
    %234 = vmatpush2.msra.mxu0 0.0
    %235 = vmatprep.subr.mxu0 0.0
    %236 = vmatpush2.msra.mxu0 0.0
    %237 = vmatprep.subr.mxu0 0.0
    %238 = vmatpush2.msra.mxu0 0.0
    %239 = vmatprep.subr.mxu0 0.0
    %240 = vmatpush2.msra.mxu0 0.0
    %241 = vmatprep.subr.mxu0 0.0
    %242 = vmatpush2.msra.mxu0 0.0
    %243 = vmatprep.subr.mxu0 0.0
    %244 = vmatpush2.msra.mxu0 0.0
    %245 = vmatprep.mubr.f32.mxu0 0.0
    %246 = vmatmul.mubr.f32.gmra.mxu0 %v179
    %v247 = vpop.f32.mrf.mxu0
    %v248 = vadd.f32 %v176, %v247
    %v249 = vpop.f32.mrf.mxu0
    %250 = vdwg.mxu0
    %v251 = vmax.f32 %v248, 0.0
    %vm252 = vcmask 261120
    %v254 = vsel %vm252, %v251, 0
    %256 = vmatprep.subr.mxu0 0.0
    %257 = vmatpush1.msra.mxu0 0.0
    %258 = vmatprep.subr.mxu0 0.0
    %259 = vmatpush1.msra.mxu0 0.0
    %260 = vmatprep.subr.mxu0 0.0
    %261 = vmatpush1.msra.mxu0 0.0
    %262 = vmatprep.subr.mxu0 0.0
    %263 = vmatpush1.msra.mxu0 0.0
    %264 = vmatprep.subr.mxu0 0.0
    %265 = vmatpush1.msra.mxu0 0.0
    %266 = vmatprep.subr.mxu0 0.0
    %267 = vmatpush1.msra.mxu0 0.0
    %268 = vmatprep.subr.mxu0 0.0
    %269 = vmatpush1.msra.mxu0 0.0
    %270 = vmatprep.subr.mxu0 0.0
    %271 = vmatpush1.msra.mxu0 0.0
    %272 = vmatprep.subr.mxu0 0.0
    %273 = vmatpush1.msra.mxu0 0.0
    %274 = vmatprep.subr.mxu0 0.0
    %275 = vmatpush1.msra.mxu0 0.0
    %276 = vmatprep.subr.mxu0 0.0
    %277 = vmatpush1.msra.mxu0 0.0
    %278 = vmatprep.subr.mxu0 0.0
    %279 = vmatpush1.msra.mxu0 0.0
    %280 = vmatprep.subr.mxu0 0.0
    %281 = vmatpush1.msra.mxu0 %v67
    %282 = vmatprep.subr.mxu0 0.0
    %283 = vmatpush1.msra.mxu0 %v66
    %284 = vmatprep.subr.mxu0 0.0
    %285 = vmatpush1.msra.mxu0 %v65
    %286 = vmatprep.subr.mxu0 0.0
    %287 = vmatpush1.msra.mxu0 %v64
    %288 = vmatprep.subr.mxu0 0.0
    %289 = vmatpush2.msra.mxu0 0.0
    %290 = vmatprep.subr.mxu0 0.0
    %291 = vmatpush2.msra.mxu0 0.0
    %292 = vmatprep.subr.mxu0 0.0
    %293 = vmatpush2.msra.mxu0 0.0
    %294 = vmatprep.subr.mxu0 0.0
    %295 = vmatpush2.msra.mxu0 0.0
    %296 = vmatprep.subr.mxu0 0.0
    %297 = vmatpush2.msra.mxu0 0.0
    %298 = vmatprep.subr.mxu0 0.0
    %299 = vmatpush2.msra.mxu0 0.0
    %300 = vmatprep.subr.mxu0 0.0
    %301 = vmatpush2.msra.mxu0 0.0
    %302 = vmatprep.subr.mxu0 0.0
    %303 = vmatpush2.msra.mxu0 0.0
    %304 = vmatprep.subr.mxu0 0.0
    %305 = vmatpush2.msra.mxu0 0.0
    %306 = vmatprep.subr.mxu0 0.0
    %307 = vmatpush2.msra.mxu0 0.0
    %308 = vmatprep.subr.mxu0 0.0
    %309 = vmatpush2.msra.mxu0 0.0
    %310 = vmatprep.subr.mxu0 0.0
    %311 = vmatpush2.msra.mxu0 0.0
    %312 = vmatprep.subr.mxu0 0.0
    %313 = vmatpush2.msra.mxu0 0.0
    %314 = vmatprep.subr.mxu0 0.0
    %315 = vmatpush2.msra.mxu0 0.0
    %316 = vmatprep.subr.mxu0 0.0
    %317 = vmatpush2.msra.mxu0 0.0
    %318 = vmatprep.subr.mxu0 0.0
    %319 = vmatpush2.msra.mxu0 0.0
    %320 = vmatprep.mubr.f32.mxu0 0.0
    %321 = vmatmul.mubr.f32.gmra.mxu0 %v254
    %v322 = vpop.f32.mrf.mxu0
    %v323 = vadd.f32 0.0, %v322
    %v324 = vpop.f32.mrf.mxu0
    %325 = vdwg.mxu0
    %v326 = vlaneseq
    %v327 = vshrl.u32 %v326, 7
    %v328 = vsub.s32 0, %v327
    %v329 = vrot.slane %v87, %v328
    %330 = vmatprep.subr.mxu0 0.0
    %331 = vmatpush1.msra.mxu0 0.0
    %332 = vmatprep.subr.mxu0 0.0
    %333 = vmatpush1.msra.mxu0 0.0
    %334 = vmatprep.subr.mxu0 0.0
    %335 = vmatpush1.msra.mxu0 0.0
    %336 = vmatprep.subr.mxu0 0.0
    %337 = vmatpush1.msra.mxu0 0.0
    %338 = vmatprep.subr.mxu0 0.0
    %339 = vmatpush1.msra.mxu0 0.0
    %340 = vmatprep.subr.mxu0 0.0
    %341 = vmatpush1.msra.mxu0 0.0
    %342 = vmatprep.subr.mxu0 0.0
    %343 = vmatpush1.msra.mxu0 0.0
    %344 = vmatprep.subr.mxu0 0.0
    %345 = vmatpush1.msra.mxu0 0.0
    %346 = vmatprep.subr.mxu0 0.0
    %347 = vmatpush1.msra.mxu0 0.0
    %348 = vmatprep.subr.mxu0 0.0
    %349 = vmatpush1.msra.mxu0 0.0
    %350 = vmatprep.subr.mxu0 0.0
    %351 = vmatpush1.msra.mxu0 0.0
    %352 = vmatprep.subr.mxu0 0.0
    %353 = vmatpush1.msra.mxu0 0.0
    %354 = vmatprep.subr.mxu0 0.0
    %355 = vmatpush1.msra.mxu0 0.0
    %356 = vmatprep.subr.mxu0 0.0
    %357 = vmatpush1.msra.mxu0 0.0
    %358 = vmatprep.subr.mxu0 0.0
    %359 = vmatpush1.msra.mxu0 0.0
    %360 = vmatprep.subr.mxu0 0.0
    %361 = vmatpush1.msra.mxu0 %v323
    %362 = vmatprep.subr.mxu0 0.0
    %363 = vmatpush2.msra.mxu0 0.0
    %364 = vmatprep.subr.mxu0 0.0
    %365 = vmatpush2.msra.mxu0 0.0
    %366 = vmatprep.subr.mxu0 0.0
    %367 = vmatpush2.msra.mxu0 0.0
    %368 = vmatprep.subr.mxu0 0.0
    %369 = vmatpush2.msra.mxu0 0.0
    %370 = vmatprep.subr.mxu0 0.0
    %371 = vmatpush2.msra.mxu0 0.0
    %372 = vmatprep.subr.mxu0 0.0
    %373 = vmatpush2.msra.mxu0 0.0
    %374 = vmatprep.subr.mxu0 0.0
    %375 = vmatpush2.msra.mxu0 0.0
    %376 = vmatprep.subr.mxu0 0.0
    %377 = vmatpush2.msra.mxu0 0.0
    %378 = vmatprep.subr.mxu0 0.0
    %379 = vmatpush2.msra.mxu0 0.0
    %380 = vmatprep.subr.mxu0 0.0
    %381 = vmatpush2.msra.mxu0 0.0
    %382 = vmatprep.subr.mxu0 0.0
    %383 = vmatpush2.msra.mxu0 0.0
    %384 = vmatprep.subr.mxu0 0.0
    %385 = vmatpush2.msra.mxu0 0.0
    %386 = vmatprep.subr.mxu0 0.0
    %387 = vmatpush2.msra.mxu0 0.0
    %388 = vmatprep.subr.mxu0 0.0
    %389 = vmatpush2.msra.mxu0 0.0
    %390 = vmatprep.subr.mxu0 0.0
    %391 = vmatpush2.msra.mxu0 0.0
    %392 = vmatprep.subr.mxu0 0.0
    %393 = vmatpush2.msra.mxu0 0.0
    %394 = vmatprep.mubr.f32.mxu0 0.0
    %395 = vmatmul.mubr.f32.gmra.mxu0 %v179
    %v396 = vpop.f32.mrf.mxu0
    %v397 = vadd.f32 %v329, %v396
    %v398 = vpop.f32.mrf.mxu0
    %399 = vdwg.mxu0
    %v400 = vlaneseq
    %v401 = vshrl.u32 %v400, 7
    %v402 = vlaneseq
    %v403 = vand.u32 %v402, 127
    %vm404 = vcmp.eq.s32.totalorder %v401, 0
    %s405 = sld [smem:[#allocation2]]
    %v406 = vstv %s405
    %vm407 = vcmp.eq.s32.totalorder %v403, %v406
    %vm408 = vmand %vm404, %vm407
    %v409 = vsel %vm408, 1.0, 0.0
    %vm410 = vcmp.eq.s32.totalorder %v401, 1
    %s411 = sld [smem:[#allocation2 + $0x1]]
    %v412 = vstv %s411
    %vm413 = vcmp.eq.s32.totalorder %v403, %v412
    %vm414 = vmand %vm410, %vm413
    %v415 = vsel %vm414, 1.0, %v409
    %vm416 = vcmp.eq.s32.totalorder %v401, 2
    %s417 = sld [smem:[#allocation2 + $0x2]]
    %v418 = vstv %s417
    %vm419 = vcmp.eq.s32.totalorder %v403, %v418
    %vm420 = vmand %vm416, %vm419
    %v421 = vsel %vm420, 1.0, %v415
    %vm422 = vcmp.eq.s32.totalorder %v401, 3
    %s423 = sld [smem:[#allocation2 + $0x3]]
    %v424 = vstv %s423
    %vm425 = vcmp.eq.s32.totalorder %v403, %v424
    %vm426 = vmand %vm422, %vm425
    %v427 = vsel %vm426, 1.0, %v421
    %v429 = vsel %vm177, %v427, 0
    %431 = vmatprep.subr.mxu0 0.0
    %432 = vmatpush1.msra.mxu0 0.0
    %433 = vmatprep.subr.mxu0 0.0
    %434 = vmatpush1.msra.mxu0 0.0
    %435 = vmatprep.subr.mxu0 0.0
    %436 = vmatpush1.msra.mxu0 0.0
    %437 = vmatprep.subr.mxu0 0.0
    %438 = vmatpush1.msra.mxu0 0.0
    %439 = vmatprep.subr.mxu0 0.0
    %440 = vmatpush1.msra.mxu0 0.0
    %441 = vmatprep.subr.mxu0 0.0
    %442 = vmatpush1.msra.mxu0 0.0
    %443 = vmatprep.subr.mxu0 0.0
    %444 = vmatpush1.msra.mxu0 0.0
    %445 = vmatprep.subr.mxu0 0.0
    %446 = vmatpush1.msra.mxu0 0.0
    %447 = vmatprep.subr.mxu0 0.0
    %448 = vmatpush1.msra.mxu0 0.0
    %449 = vmatprep.subr.mxu0 0.0
    %450 = vmatpush1.msra.mxu0 0.0
    %451 = vmatprep.subr.mxu0 0.0
    %452 = vmatpush1.msra.mxu0 0.0
    %453 = vmatprep.subr.mxu0 0.0
    %454 = vmatpush1.msra.mxu0 0.0
    %455 = vmatprep.subr.mxu0 0.0
    %456 = vmatpush1.msra.mxu0 0.0
    %457 = vmatprep.subr.mxu0 0.0
    %458 = vmatpush1.msra.mxu0 0.0
    %459 = vmatprep.subr.mxu0 0.0
    %460 = vmatpush1.msra.mxu0 0.0
    %461 = vmatprep.subr.mxu0 0.0
    %462 = vmatpush1.msra.mxu0 %v397
    %463 = vmatprep.subr.mxu0 0.0
    %464 = vmatpush2.msra.mxu0 0.0
    %465 = vmatprep.subr.mxu0 0.0
    %466 = vmatpush2.msra.mxu0 0.0
    %467 = vmatprep.subr.mxu0 0.0
    %468 = vmatpush2.msra.mxu0 0.0
    %469 = vmatprep.subr.mxu0 0.0
    %470 = vmatpush2.msra.mxu0 0.0
    %471 = vmatprep.subr.mxu0 0.0
    %472 = vmatpush2.msra.mxu0 0.0
    %473 = vmatprep.subr.mxu0 0.0
    %474 = vmatpush2.msra.mxu0 0.0
    %475 = vmatprep.subr.mxu0 0.0
    %476 = vmatpush2.msra.mxu0 0.0
    %477 = vmatprep.subr.mxu0 0.0
    %478 = vmatpush2.msra.mxu0 0.0
    %479 = vmatprep.subr.mxu0 0.0
    %480 = vmatpush2.msra.mxu0 0.0
    %481 = vmatprep.subr.mxu0 0.0
    %482 = vmatpush2.msra.mxu0 0.0
    %483 = vmatprep.subr.mxu0 0.0
    %484 = vmatpush2.msra.mxu0 0.0
    %485 = vmatprep.subr.mxu0 0.0
    %486 = vmatpush2.msra.mxu0 0.0
    %487 = vmatprep.subr.mxu0 0.0
    %488 = vmatpush2.msra.mxu0 0.0
    %489 = vmatprep.subr.mxu0 0.0
    %490 = vmatpush2.msra.mxu0 0.0
    %491 = vmatprep.subr.mxu0 0.0
    %492 = vmatpush2.msra.mxu0 0.0
    %493 = vmatprep.subr.mxu0 0.0
    %494 = vmatpush2.msra.mxu0 0.0
    %495 = vmatprep.mubr.f32.mxu0 0.0
    %496 = vmatmul.mubr.f32.gmra.mxu0 %v429
    %v497 = vpop.f32.mrf.mxu0
    %v498 = vadd.f32 0.0, %v497
    %v499 = vpop.f32.mrf.mxu0
    %500 = vdwg.mxu0
    %v501 = vld [vmem:[%s4] sm:$0xf]
    %v502 = vlaneseq
    %v503 = vshrl.u32 %v502, 7
    %v504 = vsub.s32 0, %v503
    %v505 = vrot.slane %v88, %v504
    %vm506 = vcmask 97280
    %v508 = vsel %vm506, %v501, 0
    %vm510 = vcmask 1043456
    %v512 = vsel %vm510, %v63, 0
    %514 = vmatprep.subr.mxu0 0.0
    %515 = vmatpush1.msra.mxu0 0.0
    %516 = vmatprep.subr.mxu0 0.0
    %517 = vmatpush1.msra.mxu0 0.0
    %518 = vmatprep.subr.mxu0 0.0
    %519 = vmatpush1.msra.mxu0 0.0
    %520 = vmatprep.subr.mxu0 0.0
    %521 = vmatpush1.msra.mxu0 0.0
    %522 = vmatprep.subr.mxu0 0.0
    %523 = vmatpush1.msra.mxu0 0.0
    %524 = vmatprep.subr.mxu0 0.0
    %525 = vmatpush1.msra.mxu0 0.0
    %526 = vmatprep.subr.mxu0 0.0
    %527 = vmatpush1.msra.mxu0 0.0
    %528 = vmatprep.subr.mxu0 0.0
    %529 = vmatpush1.msra.mxu0 0.0
    %530 = vmatprep.subr.mxu0 0.0
    %531 = vmatpush1.msra.mxu0 0.0
    %532 = vmatprep.subr.mxu0 0.0
    %533 = vmatpush1.msra.mxu0 0.0
    %534 = vmatprep.subr.mxu0 0.0
    %535 = vmatpush1.msra.mxu0 0.0
    %536 = vmatprep.subr.mxu0 0.0
    %537 = vmatpush1.msra.mxu0 0.0
    %538 = vmatprep.subr.mxu0 0.0
    %539 = vmatpush1.msra.mxu0 0.0
    %540 = vmatprep.subr.mxu0 0.0
    %541 = vmatpush1.msra.mxu0 0.0
    %542 = vmatprep.subr.mxu0 0.0
    %543 = vmatpush1.msra.mxu0 %v512
    %544 = vmatprep.subr.mxu0 0.0
    %545 = vmatpush1.msra.mxu0 %v62
    %546 = vmatprep.subr.mxu0 0.0
    %547 = vmatpush2.msra.mxu0 0.0
    %548 = vmatprep.subr.mxu0 0.0
    %549 = vmatpush2.msra.mxu0 0.0
    %550 = vmatprep.subr.mxu0 0.0
    %551 = vmatpush2.msra.mxu0 0.0
    %552 = vmatprep.subr.mxu0 0.0
    %553 = vmatpush2.msra.mxu0 0.0
    %554 = vmatprep.subr.mxu0 0.0
    %555 = vmatpush2.msra.mxu0 0.0
    %556 = vmatprep.subr.mxu0 0.0
    %557 = vmatpush2.msra.mxu0 0.0
    %558 = vmatprep.subr.mxu0 0.0
    %559 = vmatpush2.msra.mxu0 0.0
    %560 = vmatprep.subr.mxu0 0.0
    %561 = vmatpush2.msra.mxu0 0.0
    %562 = vmatprep.subr.mxu0 0.0
    %563 = vmatpush2.msra.mxu0 0.0
    %564 = vmatprep.subr.mxu0 0.0
    %565 = vmatpush2.msra.mxu0 0.0
    %566 = vmatprep.subr.mxu0 0.0
    %567 = vmatpush2.msra.mxu0 0.0
    %568 = vmatprep.subr.mxu0 0.0
    %569 = vmatpush2.msra.mxu0 0.0
    %570 = vmatprep.subr.mxu0 0.0
    %571 = vmatpush2.msra.mxu0 0.0
    %572 = vmatprep.subr.mxu0 0.0
    %573 = vmatpush2.msra.mxu0 0.0
    %574 = vmatprep.subr.mxu0 0.0
    %575 = vmatpush2.msra.mxu0 0.0
    %576 = vmatprep.subr.mxu0 0.0
    %577 = vmatpush2.msra.mxu0 0.0
    %578 = vmatprep.mubr.f32.mxu0 0.0
    %579 = vmatmul.mubr.f32.gmra.mxu0 %v508
    %v580 = vpop.f32.mrf.mxu0
    %v581 = vadd.f32 %v505, %v580
    %v582 = vpop.f32.mrf.mxu0
    %583 = vdwg.mxu0
    %v584 = vmax.f32 %v581, 0.0
    %586 = vrot.lane.b32.xlu0 %v498, 32
    %v587 = vpop.permute.xlu0 %586
    %v589 = vsel %vm252, %v584, %v587
    %v590 = vlaneseq
    %v591 = vshrl.u32 %v590, 7
    %v592 = vsub.s32 0, %v591
    %v593 = vrot.slane %v89, %v592
    %vm594 = vcmask 523264
    %v596 = vsel %vm594, %v589, 0
    %598 = vmatprep.subr.mxu0 0.0
    %599 = vmatpush1.msra.mxu0 0.0
    %600 = vmatprep.subr.mxu0 0.0
    %601 = vmatpush1.msra.mxu0 0.0
    %602 = vmatprep.subr.mxu0 0.0
    %603 = vmatpush1.msra.mxu0 0.0
    %604 = vmatprep.subr.mxu0 0.0
    %605 = vmatpush1.msra.mxu0 0.0
    %606 = vmatprep.subr.mxu0 0.0
    %607 = vmatpush1.msra.mxu0 0.0
    %608 = vmatprep.subr.mxu0 0.0
    %609 = vmatpush1.msra.mxu0 0.0
    %610 = vmatprep.subr.mxu0 0.0
    %611 = vmatpush1.msra.mxu0 0.0
    %612 = vmatprep.subr.mxu0 0.0
    %613 = vmatpush1.msra.mxu0 0.0
    %614 = vmatprep.subr.mxu0 0.0
    %615 = vmatpush1.msra.mxu0 %v75
    %616 = vmatprep.subr.mxu0 0.0
    %617 = vmatpush1.msra.mxu0 %v74
    %618 = vmatprep.subr.mxu0 0.0
    %619 = vmatpush1.msra.mxu0 %v73
    %620 = vmatprep.subr.mxu0 0.0
    %621 = vmatpush1.msra.mxu0 %v72
    %622 = vmatprep.subr.mxu0 0.0
    %623 = vmatpush1.msra.mxu0 %v71
    %624 = vmatprep.subr.mxu0 0.0
    %625 = vmatpush1.msra.mxu0 %v70
    %626 = vmatprep.subr.mxu0 0.0
    %627 = vmatpush1.msra.mxu0 %v69
    %628 = vmatprep.subr.mxu0 0.0
    %629 = vmatpush1.msra.mxu0 %v68
    %630 = vmatprep.subr.mxu0 0.0
    %631 = vmatpush2.msra.mxu0 0.0
    %632 = vmatprep.subr.mxu0 0.0
    %633 = vmatpush2.msra.mxu0 0.0
    %634 = vmatprep.subr.mxu0 0.0
    %635 = vmatpush2.msra.mxu0 0.0
    %636 = vmatprep.subr.mxu0 0.0
    %637 = vmatpush2.msra.mxu0 0.0
    %638 = vmatprep.subr.mxu0 0.0
    %639 = vmatpush2.msra.mxu0 0.0
    %640 = vmatprep.subr.mxu0 0.0
    %641 = vmatpush2.msra.mxu0 0.0
    %642 = vmatprep.subr.mxu0 0.0
    %643 = vmatpush2.msra.mxu0 0.0
    %644 = vmatprep.subr.mxu0 0.0
    %645 = vmatpush2.msra.mxu0 0.0
    %646 = vmatprep.subr.mxu0 0.0
    %647 = vmatpush2.msra.mxu0 0.0
    %648 = vmatprep.subr.mxu0 0.0
    %649 = vmatpush2.msra.mxu0 0.0
    %650 = vmatprep.subr.mxu0 0.0
    %651 = vmatpush2.msra.mxu0 0.0
    %652 = vmatprep.subr.mxu0 0.0
    %653 = vmatpush2.msra.mxu0 0.0
    %654 = vmatprep.subr.mxu0 0.0
    %655 = vmatpush2.msra.mxu0 0.0
    %656 = vmatprep.subr.mxu0 0.0
    %657 = vmatpush2.msra.mxu0 0.0
    %658 = vmatprep.subr.mxu0 0.0
    %659 = vmatpush2.msra.mxu0 0.0
    %660 = vmatprep.subr.mxu0 0.0
    %661 = vmatpush2.msra.mxu0 0.0
    %662 = vmatprep.mubr.f32.mxu0 0.0
    %663 = vmatmul.mubr.f32.gmra.mxu0 %v596
    %v664 = vpop.f32.mrf.mxu0
    %v665 = vadd.f32 %v593, %v664
    %v666 = vpop.f32.mrf.mxu0
    %667 = vdwg.mxu0
    %v668 = vld [vmem:[%s5] sm:$0xff]
    %v669 = vld [vmem:[%s5 + $0x8] sm:$0xff]
    %v670 = vld [vmem:[%s5 + $0x10] sm:$0xff]
    %v671 = vld [vmem:[%s5 + $0x18] sm:$0xff]
    %v672 = vlaneseq
    %v673 = vshrl.u32 %v672, 7
    %v674 = vsub.s32 0, %v673
    %v675 = vrot.slane %v90, %v674
    %vm676 = vcmask 80896
    %v678 = vsel %vm676, %v668, 0
    %v681 = vsel %vm676, %v669, 0
    %v684 = vsel %vm676, %v670, 0
    %v687 = vsel %vm676, %v671, 0
    %vm689 = vcmask 1041408
    %v691 = vsel %vm689, %v85, 0
    %693 = vmatprep.subr.mxu0 0.0
    %694 = vmatpush1.msra.mxu0 0.0
    %695 = vmatprep.subr.mxu0 0.0
    %696 = vmatpush1.msra.mxu0 0.0
    %697 = vmatprep.subr.mxu0 0.0
    %698 = vmatpush1.msra.mxu0 0.0
    %699 = vmatprep.subr.mxu0 0.0
    %700 = vmatpush1.msra.mxu0 0.0
    %701 = vmatprep.subr.mxu0 0.0
    %702 = vmatpush1.msra.mxu0 0.0
    %703 = vmatprep.subr.mxu0 0.0
    %704 = vmatpush1.msra.mxu0 0.0
    %705 = vmatprep.subr.mxu0 0.0
    %706 = vmatpush1.msra.mxu0 0.0
    %707 = vmatprep.subr.mxu0 0.0
    %708 = vmatpush1.msra.mxu0 0.0
    %709 = vmatprep.subr.mxu0 0.0
    %710 = vmatpush1.msra.mxu0 0.0
    %711 = vmatprep.subr.mxu0 0.0
    %712 = vmatpush1.msra.mxu0 0.0
    %713 = vmatprep.subr.mxu0 0.0
    %714 = vmatpush1.msra.mxu0 0.0
    %715 = vmatprep.subr.mxu0 0.0
    %716 = vmatpush1.msra.mxu0 0.0
    %717 = vmatprep.subr.mxu0 0.0
    %718 = vmatpush1.msra.mxu0 0.0
    %719 = vmatprep.subr.mxu0 0.0
    %720 = vmatpush1.msra.mxu0 0.0
    %721 = vmatprep.subr.mxu0 0.0
    %722 = vmatpush1.msra.mxu0 %v691
    %723 = vmatprep.subr.mxu0 0.0
    %724 = vmatpush1.msra.mxu0 %v84
    %725 = vmatprep.subr.mxu0 0.0
    %726 = vmatpush2.msra.mxu0 0.0
    %727 = vmatprep.subr.mxu0 0.0
    %728 = vmatpush2.msra.mxu0 0.0
    %729 = vmatprep.subr.mxu0 0.0
    %730 = vmatpush2.msra.mxu0 0.0
    %731 = vmatprep.subr.mxu0 0.0
    %732 = vmatpush2.msra.mxu0 0.0
    %733 = vmatprep.subr.mxu0 0.0
    %734 = vmatpush2.msra.mxu0 0.0
    %735 = vmatprep.subr.mxu0 0.0
    %736 = vmatpush2.msra.mxu0 0.0
    %737 = vmatprep.subr.mxu0 0.0
    %738 = vmatpush2.msra.mxu0 0.0
    %739 = vmatprep.subr.mxu0 0.0
    %740 = vmatpush2.msra.mxu0 0.0
    %741 = vmatprep.subr.mxu0 0.0
    %742 = vmatpush2.msra.mxu0 0.0
    %743 = vmatprep.subr.mxu0 0.0
    %744 = vmatpush2.msra.mxu0 0.0
    %745 = vmatprep.subr.mxu0 0.0
    %746 = vmatpush2.msra.mxu0 0.0
    %747 = vmatprep.subr.mxu0 0.0
    %748 = vmatpush2.msra.mxu0 0.0
    %749 = vmatprep.subr.mxu0 0.0
    %750 = vmatpush2.msra.mxu0 0.0
    %751 = vmatprep.subr.mxu0 0.0
    %752 = vmatpush2.msra.mxu0 0.0
    %753 = vmatprep.subr.mxu0 0.0
    %754 = vmatpush2.msra.mxu0 0.0
    %755 = vmatprep.subr.mxu0 0.0
    %756 = vmatpush2.msra.mxu0 0.0
    %757 = vmatprep.mubr.f32.mxu0 0.0
    %758 = vmatmul.mubr.f32.gmra.mxu0 %v678
    %v759 = vpop.f32.mrf.mxu0
    %v760 = vadd.f32 %v675, %v759
    %v761 = vpop.f32.mrf.mxu0
    %762 = vmatprep.mubr.f32.mxu0 0.0
    %763 = vmatmul.mubr.f32.gmra.mxu0 %v681
    %v764 = vpop.f32.mrf.mxu0
    %v765 = vadd.f32 %v675, %v764
    %v766 = vpop.f32.mrf.mxu0
    %767 = vmatprep.mubr.f32.mxu0 0.0
    %768 = vmatmul.mubr.f32.gmra.mxu0 %v684
    %v769 = vpop.f32.mrf.mxu0
    %v770 = vadd.f32 %v675, %v769
    %v771 = vpop.f32.mrf.mxu0
    %772 = vmatprep.mubr.f32.mxu0 0.0
    %773 = vmatmul.mubr.f32.gmra.mxu0 %v687
    %v774 = vpop.f32.mrf.mxu0
    %v775 = vadd.f32 %v675, %v774
    %v776 = vpop.f32.mrf.mxu0
    %777 = vdwg.mxu0
    %v779 = vsel %vm252, 0.0, 0
    %781 = vmatprep.subr.mxu0 0.0
    %782 = vmatpush1.msra.mxu0 0.0
    %783 = vmatprep.subr.mxu0 0.0
    %784 = vmatpush1.msra.mxu0 0.0
    %785 = vmatprep.subr.mxu0 0.0
    %786 = vmatpush1.msra.mxu0 0.0
    %787 = vmatprep.subr.mxu0 0.0
    %788 = vmatpush1.msra.mxu0 0.0
    %789 = vmatprep.subr.mxu0 0.0
    %790 = vmatpush1.msra.mxu0 0.0
    %791 = vmatprep.subr.mxu0 0.0
    %792 = vmatpush1.msra.mxu0 0.0
    %793 = vmatprep.subr.mxu0 0.0
    %794 = vmatpush1.msra.mxu0 0.0
    %795 = vmatprep.subr.mxu0 0.0
    %796 = vmatpush1.msra.mxu0 0.0
    %797 = vmatprep.subr.mxu0 0.0
    %798 = vmatpush1.msra.mxu0 0.0
    %799 = vmatprep.subr.mxu0 0.0
    %800 = vmatpush1.msra.mxu0 0.0
    %801 = vmatprep.subr.mxu0 0.0
    %802 = vmatpush1.msra.mxu0 0.0
    %803 = vmatprep.subr.mxu0 0.0
    %804 = vmatpush1.msra.mxu0 0.0
    %805 = vmatprep.subr.mxu0 0.0
    %806 = vmatpush1.msra.mxu0 %v83
    %807 = vmatprep.subr.mxu0 0.0
    %808 = vmatpush1.msra.mxu0 %v82
    %809 = vmatprep.subr.mxu0 0.0
    %810 = vmatpush1.msra.mxu0 %v81
    %811 = vmatprep.subr.mxu0 0.0
    %812 = vmatpush1.msra.mxu0 %v80
    %813 = vmatprep.subr.mxu0 0.0
    %814 = vmatpush2.msra.mxu0 0.0
    %815 = vmatprep.subr.mxu0 0.0
    %816 = vmatpush2.msra.mxu0 0.0
    %817 = vmatprep.subr.mxu0 0.0
    %818 = vmatpush2.msra.mxu0 0.0
    %819 = vmatprep.subr.mxu0 0.0
    %820 = vmatpush2.msra.mxu0 0.0
    %821 = vmatprep.subr.mxu0 0.0
    %822 = vmatpush2.msra.mxu0 0.0
    %823 = vmatprep.subr.mxu0 0.0
    %824 = vmatpush2.msra.mxu0 0.0
    %825 = vmatprep.subr.mxu0 0.0
    %826 = vmatpush2.msra.mxu0 0.0
    %827 = vmatprep.subr.mxu0 0.0
    %828 = vmatpush2.msra.mxu0 0.0
    %829 = vmatprep.subr.mxu0 0.0
    %830 = vmatpush2.msra.mxu0 0.0
    %831 = vmatprep.subr.mxu0 0.0
    %832 = vmatpush2.msra.mxu0 0.0
    %833 = vmatprep.subr.mxu0 0.0
    %834 = vmatpush2.msra.mxu0 0.0
    %835 = vmatprep.subr.mxu0 0.0
    %836 = vmatpush2.msra.mxu0 0.0
    %837 = vmatprep.subr.mxu0 0.0
    %838 = vmatpush2.msra.mxu0 0.0
    %839 = vmatprep.subr.mxu0 0.0
    %840 = vmatpush2.msra.mxu0 0.0
    %841 = vmatprep.subr.mxu0 0.0
    %842 = vmatpush2.msra.mxu0 0.0
    %843 = vmatprep.subr.mxu0 0.0
    %844 = vmatpush2.msra.mxu0 0.0
    %845 = vmatprep.mubr.f32.mxu0 0.0
    %846 = vmatmul.mubr.f32.gmra.mxu0 %v779
    %v847 = vpop.f32.mrf.mxu0
    %v848 = vadd.f32 0.0, %v847
    %v849 = vpop.f32.mrf.mxu0
    %850 = vdwg.mxu0
    %v852 = vrot.slane %v848, 1
    %v853 = vrot.slane %v848, 2
    %v854 = vrot.slane %v848, 3
    %v859 = vadd.f32 %v760, %v848
    %v860 = vadd.f32 %v765, %v852
    %v861 = vadd.f32 %v770, %v853
    %v862 = vadd.f32 %v775, %v854
    %v863 = vxor.u32 %v859, 2147483648
    %v864 = vxor.u32 %v860, 2147483648
    %v865 = vxor.u32 %v861, 2147483648
    %v866 = vxor.u32 %v862, 2147483648
    %v867 = vmul.f32 %v863, 1.442695
    %v868 = vpow.pop %v867
    %v869 = vmul.f32 %v864, 1.442695
    %v870 = vpow.pop %v869
    %v871 = vmul.f32 %v865, 1.442695
    %v872 = vpow.pop %v871
    %v873 = vmul.f32 %v866, 1.442695
    %v874 = vpow.pop %v873
    %v875 = vadd.f32 %v868, 1.0
    %v876 = vadd.f32 %v870, 1.0
    %v877 = vadd.f32 %v872, 1.0
    %v878 = vadd.f32 %v874, 1.0
    %v879 = vrcp.pop %v875
    %v880 = vmul.f32 1.0, %v879
    %v881 = vrcp.pop %v876
    %v882 = vmul.f32 1.0, %v881
    %v883 = vrcp.pop %v877
    %v884 = vmul.f32 1.0, %v883
    %v885 = vrcp.pop %v878
    %v886 = vmul.f32 1.0, %v885
    %v887 = vtanh.pop %v859
    %v888 = vtanh.pop %v860
    %v889 = vtanh.pop %v861
    %v890 = vtanh.pop %v862
    %v891 = vmul.f32 %v880, 0.0
    %v892 = vmul.f32 %v882, 0.0
    %v893 = vmul.f32 %v884, 0.0
    %v894 = vmul.f32 %v886, 0.0
    %899 = vrot.lane.b32.xlu0 %v887, 64
    %v900 = vpop.permute.xlu0 %899
    %901 = vrot.lane.b32.xlu0 %v888, 64
    %v902 = vpop.permute.xlu0 %901
    %903 = vrot.lane.b32.xlu0 %v889, 64
    %v904 = vpop.permute.xlu0 %903
    %905 = vrot.lane.b32.xlu0 %v890, 64
    %v906 = vpop.permute.xlu0 %905
    %v911 = vmul.f32 %v880, %v900
    %v912 = vmul.f32 %v882, %v902
    %v913 = vmul.f32 %v884, %v904
    %v914 = vmul.f32 %v886, %v906
    %919 = vrot.lane.b32.xlu0 %v911, 32
    %v920 = vpop.permute.xlu0 %919
    %921 = vrot.lane.b32.xlu0 %v912, 32
    %v922 = vpop.permute.xlu0 %921
    %923 = vrot.lane.b32.xlu0 %v913, 32
    %v924 = vpop.permute.xlu0 %923
    %925 = vrot.lane.b32.xlu0 %v914, 32
    %v926 = vpop.permute.xlu0 %925
    %v931 = vadd.f32 %v891, %v920
    %v932 = vadd.f32 %v892, %v922
    %v933 = vadd.f32 %v893, %v924
    %v934 = vadd.f32 %v894, %v926
    %v935 = vtanh.pop %v931
    %v936 = vtanh.pop %v932
    %v937 = vtanh.pop %v933
    %v938 = vtanh.pop %v934
    %943 = vrot.lane.b32.xlu0 %v935, 64
    %v944 = vpop.permute.xlu0 %943
    %945 = vrot.lane.b32.xlu0 %v936, 64
    %v946 = vpop.permute.xlu0 %945
    %947 = vrot.lane.b32.xlu0 %v937, 64
    %v948 = vpop.permute.xlu0 %947
    %949 = vrot.lane.b32.xlu0 %v938, 64
    %v950 = vpop.permute.xlu0 %949
    %v955 = vmul.f32 %v880, %v944
    %v956 = vmul.f32 %v882, %v946
    %v957 = vmul.f32 %v884, %v948
    %v958 = vmul.f32 %v886, %v950
    %v959 = vsel %vm404, 1, 0
    %vm960 = vcmp.eq.s32.totalorder %v959, 1
    %v961 = vlaneseq
    %v962 = vshrl.u32 %v961, 7
    %v963 = vsub.s32 0, %v962
    %v964 = vrot.slane %v955, %v963
    %v965 = vlaneseq
    %v966 = vshrl.u32 %v965, 7
    %v967 = vsub.s32 0, %v966
    %v968 = vrot.slane %v956, %v967
    %v969 = vlaneseq
    %v970 = vshrl.u32 %v969, 7
    %v971 = vsub.s32 0, %v970
    %v972 = vrot.slane %v957, %v971
    %v973 = vlaneseq
    %v974 = vshrl.u32 %v973, 7
    %v975 = vsub.s32 0, %v974
    %v976 = vrot.slane %v958, %v975
    %v977 = vsel %vm960, %v964, 0.0
    %v978 = vsel %vm960, %v968, 0.0
    %v979 = vsel %vm960, %v972, 0.0
    %v980 = vsel %vm960, %v976, 0.0
    %v985 = vrot.slane %v956, 7
    %vm986 = vcmask 1041409
    %v987 = vsel %vm986, %v985, %v955
    %v988 = vrot.slane %v957, 6
    %vm989 = vcmask 1042434
    %v990 = vsel %vm989, %v988, %v987
    %v991 = vrot.slane %v958, 5
    %vm992 = vcmask 1043459
    %v993 = vsel %vm992, %v991, %v990
    %994 = vrot.lane.b32.xlu0 %v993, 32
    %v995 = vpop.permute.xlu0 %994
    %v996 = vsel %vm252, %v995, 0
    %998 = vmatprep.subr.mxu0 0.0
    %999 = vmatpush1.msra.mxu0 0.0
    %1000 = vmatprep.subr.mxu0 0.0
    %1001 = vmatpush1.msra.mxu0 0.0
    %1002 = vmatprep.subr.mxu0 0.0
    %1003 = vmatpush1.msra.mxu0 0.0
    %1004 = vmatprep.subr.mxu0 0.0
    %1005 = vmatpush1.msra.mxu0 0.0
    %1006 = vmatprep.subr.mxu0 0.0
    %1007 = vmatpush1.msra.mxu0 0.0
    %1008 = vmatprep.subr.mxu0 0.0
    %1009 = vmatpush1.msra.mxu0 0.0
    %1010 = vmatprep.subr.mxu0 0.0
    %1011 = vmatpush1.msra.mxu0 0.0
    %1012 = vmatprep.subr.mxu0 0.0
    %1013 = vmatpush1.msra.mxu0 0.0
    %1014 = vmatprep.subr.mxu0 0.0
    %1015 = vmatpush1.msra.mxu0 0.0
    %1016 = vmatprep.subr.mxu0 0.0
    %1017 = vmatpush1.msra.mxu0 0.0
    %1018 = vmatprep.subr.mxu0 0.0
    %1019 = vmatpush1.msra.mxu0 0.0
    %1020 = vmatprep.subr.mxu0 0.0
    %1021 = vmatpush1.msra.mxu0 0.0
    %1022 = vmatprep.subr.mxu0 0.0
    %1023 = vmatpush1.msra.mxu0 %v83
    %1024 = vmatprep.subr.mxu0 0.0
    %1025 = vmatpush1.msra.mxu0 %v82
    %1026 = vmatprep.subr.mxu0 0.0
    %1027 = vmatpush1.msra.mxu0 %v81
    %1028 = vmatprep.subr.mxu0 0.0
    %1029 = vmatpush1.msra.mxu0 %v80
    %1030 = vmatprep.subr.mxu0 0.0
    %1031 = vmatpush2.msra.mxu0 0.0
    %1032 = vmatprep.subr.mxu0 0.0
    %1033 = vmatpush2.msra.mxu0 0.0
    %1034 = vmatprep.subr.mxu0 0.0
    %1035 = vmatpush2.msra.mxu0 0.0
    %1036 = vmatprep.subr.mxu0 0.0
    %1037 = vmatpush2.msra.mxu0 0.0
    %1038 = vmatprep.subr.mxu0 0.0
    %1039 = vmatpush2.msra.mxu0 0.0
    %1040 = vmatprep.subr.mxu0 0.0
    %1041 = vmatpush2.msra.mxu0 0.0
    %1042 = vmatprep.subr.mxu0 0.0
    %1043 = vmatpush2.msra.mxu0 0.0
    %1044 = vmatprep.subr.mxu0 0.0
    %1045 = vmatpush2.msra.mxu0 0.0
    %1046 = vmatprep.subr.mxu0 0.0
    %1047 = vmatpush2.msra.mxu0 0.0
    %1048 = vmatprep.subr.mxu0 0.0
    %1049 = vmatpush2.msra.mxu0 0.0
    %1050 = vmatprep.subr.mxu0 0.0
    %1051 = vmatpush2.msra.mxu0 0.0
    %1052 = vmatprep.subr.mxu0 0.0
    %1053 = vmatpush2.msra.mxu0 0.0
    %1054 = vmatprep.subr.mxu0 0.0
    %1055 = vmatpush2.msra.mxu0 0.0
    %1056 = vmatprep.subr.mxu0 0.0
    %1057 = vmatpush2.msra.mxu0 0.0
    %1058 = vmatprep.subr.mxu0 0.0
    %1059 = vmatpush2.msra.mxu0 0.0
    %1060 = vmatprep.subr.mxu0 0.0
    %1061 = vmatpush2.msra.mxu0 0.0
    %1062 = vmatprep.mubr.f32.mxu0 0.0
    %1063 = vmatmul.mubr.f32.gmra.mxu0 %v996
    %v1064 = vpop.f32.mrf.mxu0
    %v1065 = vadd.f32 0.0, %v1064
    %v1066 = vpop.f32.mrf.mxu0
    %1067 = vdwg.mxu0
    %v1069 = vrot.slane %v1065, 7
    %v1070 = vrot.slane %v1065, 1
    %v1071 = vrot.slane %v1065, 2
    %v1076 = vadd.f32 %v760, %v1069
    %v1077 = vadd.f32 %v765, %v1065
    %v1078 = vadd.f32 %v770, %v1070
    %v1079 = vadd.f32 %v775, %v1071
    %v1080 = vxor.u32 %v1076, 2147483648
    %v1081 = vxor.u32 %v1077, 2147483648
    %v1082 = vxor.u32 %v1078, 2147483648
    %v1083 = vxor.u32 %v1079, 2147483648
    %v1084 = vmul.f32 %v1080, 1.442695
    %v1085 = vpow.pop %v1084
    %v1086 = vmul.f32 %v1081, 1.442695
    %v1087 = vpow.pop %v1086
    %v1088 = vmul.f32 %v1082, 1.442695
    %v1089 = vpow.pop %v1088
    %v1090 = vmul.f32 %v1083, 1.442695
    %v1091 = vpow.pop %v1090
    %v1092 = vadd.f32 %v1085, 1.0
    %v1093 = vadd.f32 %v1087, 1.0
    %v1094 = vadd.f32 %v1089, 1.0
    %v1095 = vadd.f32 %v1091, 1.0
    %v1096 = vrcp.pop %v1092
    %v1097 = vmul.f32 1.0, %v1096
    %v1098 = vrcp.pop %v1093
    %v1099 = vmul.f32 1.0, %v1098
    %v1100 = vrcp.pop %v1094
    %v1101 = vmul.f32 1.0, %v1100
    %v1102 = vrcp.pop %v1095
    %v1103 = vmul.f32 1.0, %v1102
    %v1104 = vtanh.pop %v1076
    %v1105 = vtanh.pop %v1077
    %v1106 = vtanh.pop %v1078
    %v1107 = vtanh.pop %v1079
    %v1112 = vrot.slane %v931, 7
    %v1113 = vrot.slane %v932, 7
    %v1114 = vrot.slane %v933, 7
    %v1115 = vrot.slane %v934, 7
    %v1120 = vmul.f32 %v1097, %v1112
    %v1121 = vmul.f32 %v1099, %v1113
    %v1122 = vmul.f32 %v1101, %v1114
    %v1123 = vmul.f32 %v1103, %v1115
    %1128 = vrot.lane.b32.xlu0 %v1104, 64
    %v1129 = vpop.permute.xlu0 %1128
    %1130 = vrot.lane.b32.xlu0 %v1105, 64
    %v1131 = vpop.permute.xlu0 %1130
    %1132 = vrot.lane.b32.xlu0 %v1106, 64
    %v1133 = vpop.permute.xlu0 %1132
    %1134 = vrot.lane.b32.xlu0 %v1107, 64
    %v1135 = vpop.permute.xlu0 %1134
    %v1140 = vmul.f32 %v1097, %v1129
    %v1141 = vmul.f32 %v1099, %v1131
    %v1142 = vmul.f32 %v1101, %v1133
    %v1143 = vmul.f32 %v1103, %v1135
    %1148 = vrot.lane.b32.xlu0 %v1140, 32
    %v1149 = vpop.permute.xlu0 %1148
    %1150 = vrot.lane.b32.xlu0 %v1141, 32
    %v1151 = vpop.permute.xlu0 %1150
    %1152 = vrot.lane.b32.xlu0 %v1142, 32
    %v1153 = vpop.permute.xlu0 %1152
    %1154 = vrot.lane.b32.xlu0 %v1143, 32
    %v1155 = vpop.permute.xlu0 %1154
    %v1160 = vadd.f32 %v1120, %v1149
    %v1161 = vadd.f32 %v1121, %v1151
    %v1162 = vadd.f32 %v1122, %v1153
    %v1163 = vadd.f32 %v1123, %v1155
    %v1164 = vtanh.pop %v1160
    %v1165 = vtanh.pop %v1161
    %v1166 = vtanh.pop %v1162
    %v1167 = vtanh.pop %v1163
    %1172 = vrot.lane.b32.xlu0 %v1164, 64
    %v1173 = vpop.permute.xlu0 %1172
    %1174 = vrot.lane.b32.xlu0 %v1165, 64
    %v1175 = vpop.permute.xlu0 %1174
    %1176 = vrot.lane.b32.xlu0 %v1166, 64
    %v1177 = vpop.permute.xlu0 %1176
    %1178 = vrot.lane.b32.xlu0 %v1167, 64
    %v1179 = vpop.permute.xlu0 %1178
    %v1184 = vmul.f32 %v1097, %v1173
    %v1185 = vmul.f32 %v1099, %v1175
    %v1186 = vmul.f32 %v1101, %v1177
    %v1187 = vmul.f32 %v1103, %v1179
    %v1188 = vsel %vm410, 1, 0
    %vm1189 = vcmp.eq.s32.totalorder %v1188, 1
    %v1190 = vlaneseq
    %v1191 = vshrl.u32 %v1190, 7
    %v1192 = vsub.s32 1, %v1191
    %v1193 = vrot.slane %v1184, %v1192
    %v1194 = vlaneseq
    %v1195 = vshrl.u32 %v1194, 7
    %v1196 = vsub.s32 1, %v1195
    %v1197 = vrot.slane %v1185, %v1196
    %v1198 = vlaneseq
    %v1199 = vshrl.u32 %v1198, 7
    %v1200 = vsub.s32 1, %v1199
    %v1201 = vrot.slane %v1186, %v1200
    %v1202 = vlaneseq
    %v1203 = vshrl.u32 %v1202, 7
    %v1204 = vsub.s32 1, %v1203
    %v1205 = vrot.slane %v1187, %v1204
    %v1206 = vsel %vm1189, %v1193, %v977
    %v1207 = vsel %vm1189, %v1197, %v978
    %v1208 = vsel %vm1189, %v1201, %v979
    %v1209 = vsel %vm1189, %v1205, %v980
    %v1214 = vrot.slane %v1184, 1
    %v1215 = vsel %vm986, %v1185, %v1214
    %v1216 = vrot.slane %v1186, 7
    %v1217 = vsel %vm989, %v1216, %v1215
    %v1218 = vrot.slane %v1187, 6
    %v1219 = vsel %vm992, %v1218, %v1217
    %1220 = vrot.lane.b32.xlu0 %v1219, 32
    %v1221 = vpop.permute.xlu0 %1220
    %v1222 = vsel %vm252, %v1221, 0
    %1224 = vmatprep.subr.mxu0 0.0
    %1225 = vmatpush1.msra.mxu0 0.0
    %1226 = vmatprep.subr.mxu0 0.0
    %1227 = vmatpush1.msra.mxu0 0.0
    %1228 = vmatprep.subr.mxu0 0.0
    %1229 = vmatpush1.msra.mxu0 0.0
    %1230 = vmatprep.subr.mxu0 0.0
    %1231 = vmatpush1.msra.mxu0 0.0
    %1232 = vmatprep.subr.mxu0 0.0
    %1233 = vmatpush1.msra.mxu0 0.0
    %1234 = vmatprep.subr.mxu0 0.0
    %1235 = vmatpush1.msra.mxu0 0.0
    %1236 = vmatprep.subr.mxu0 0.0
    %1237 = vmatpush1.msra.mxu0 0.0
    %1238 = vmatprep.subr.mxu0 0.0
    %1239 = vmatpush1.msra.mxu0 0.0
    %1240 = vmatprep.subr.mxu0 0.0
    %1241 = vmatpush1.msra.mxu0 0.0
    %1242 = vmatprep.subr.mxu0 0.0
    %1243 = vmatpush1.msra.mxu0 0.0
    %1244 = vmatprep.subr.mxu0 0.0
    %1245 = vmatpush1.msra.mxu0 0.0
    %1246 = vmatprep.subr.mxu0 0.0
    %1247 = vmatpush1.msra.mxu0 0.0
    %1248 = vmatprep.subr.mxu0 0.0
    %1249 = vmatpush1.msra.mxu0 %v83
    %1250 = vmatprep.subr.mxu0 0.0
    %1251 = vmatpush1.msra.mxu0 %v82
    %1252 = vmatprep.subr.mxu0 0.0
    %1253 = vmatpush1.msra.mxu0 %v81
    %1254 = vmatprep.subr.mxu0 0.0
    %1255 = vmatpush1.msra.mxu0 %v80
    %1256 = vmatprep.subr.mxu0 0.0
    %1257 = vmatpush2.msra.mxu0 0.0
    %1258 = vmatprep.subr.mxu0 0.0
    %1259 = vmatpush2.msra.mxu0 0.0
    %1260 = vmatprep.subr.mxu0 0.0
    %1261 = vmatpush2.msra.mxu0 0.0
    %1262 = vmatprep.subr.mxu0 0.0
    %1263 = vmatpush2.msra.mxu0 0.0
    %1264 = vmatprep.subr.mxu0 0.0
    %1265 = vmatpush2.msra.mxu0 0.0
    %1266 = vmatprep.subr.mxu0 0.0
    %1267 = vmatpush2.msra.mxu0 0.0
    %1268 = vmatprep.subr.mxu0 0.0
    %1269 = vmatpush2.msra.mxu0 0.0
    %1270 = vmatprep.subr.mxu0 0.0
    %1271 = vmatpush2.msra.mxu0 0.0
    %1272 = vmatprep.subr.mxu0 0.0
    %1273 = vmatpush2.msra.mxu0 0.0
    %1274 = vmatprep.subr.mxu0 0.0
    %1275 = vmatpush2.msra.mxu0 0.0
    %1276 = vmatprep.subr.mxu0 0.0
    %1277 = vmatpush2.msra.mxu0 0.0
    %1278 = vmatprep.subr.mxu0 0.0
    %1279 = vmatpush2.msra.mxu0 0.0
    %1280 = vmatprep.subr.mxu0 0.0
    %1281 = vmatpush2.msra.mxu0 0.0
    %1282 = vmatprep.subr.mxu0 0.0
    %1283 = vmatpush2.msra.mxu0 0.0
    %1284 = vmatprep.subr.mxu0 0.0
    %1285 = vmatpush2.msra.mxu0 0.0
    %1286 = vmatprep.subr.mxu0 0.0
    %1287 = vmatpush2.msra.mxu0 0.0
    %1288 = vmatprep.mubr.f32.mxu0 0.0
    %1289 = vmatmul.mubr.f32.gmra.mxu0 %v1222
    %v1290 = vpop.f32.mrf.mxu0
    %v1291 = vadd.f32 0.0, %v1290
    %v1292 = vpop.f32.mrf.mxu0
    %1293 = vdwg.mxu0
    %v1295 = vrot.slane %v1291, 6
    %v1296 = vrot.slane %v1291, 7
    %v1297 = vrot.slane %v1291, 1
    %v1302 = vadd.f32 %v760, %v1295
    %v1303 = vadd.f32 %v765, %v1296
    %v1304 = vadd.f32 %v770, %v1291
    %v1305 = vadd.f32 %v775, %v1297
    %v1306 = vxor.u32 %v1302, 2147483648
    %v1307 = vxor.u32 %v1303, 2147483648
    %v1308 = vxor.u32 %v1304, 2147483648
    %v1309 = vxor.u32 %v1305, 2147483648
    %v1310 = vmul.f32 %v1306, 1.442695
    %v1311 = vpow.pop %v1310
    %v1312 = vmul.f32 %v1307, 1.442695
    %v1313 = vpow.pop %v1312
    %v1314 = vmul.f32 %v1308, 1.442695
    %v1315 = vpow.pop %v1314
    %v1316 = vmul.f32 %v1309, 1.442695
    %v1317 = vpow.pop %v1316
    %v1318 = vadd.f32 %v1311, 1.0
    %v1319 = vadd.f32 %v1313, 1.0
    %v1320 = vadd.f32 %v1315, 1.0
    %v1321 = vadd.f32 %v1317, 1.0
    %v1322 = vrcp.pop %v1318
    %v1323 = vmul.f32 1.0, %v1322
    %v1324 = vrcp.pop %v1319
    %v1325 = vmul.f32 1.0, %v1324
    %v1326 = vrcp.pop %v1320
    %v1327 = vmul.f32 1.0, %v1326
    %v1328 = vrcp.pop %v1321
    %v1329 = vmul.f32 1.0, %v1328
    %v1330 = vtanh.pop %v1302
    %v1331 = vtanh.pop %v1303
    %v1332 = vtanh.pop %v1304
    %v1333 = vtanh.pop %v1305
    %v1338 = vrot.slane %v1160, 7
    %v1339 = vrot.slane %v1161, 7
    %v1340 = vrot.slane %v1162, 7
    %v1341 = vrot.slane %v1163, 7
    %v1346 = vmul.f32 %v1323, %v1338
    %v1347 = vmul.f32 %v1325, %v1339
    %v1348 = vmul.f32 %v1327, %v1340
    %v1349 = vmul.f32 %v1329, %v1341
    %1354 = vrot.lane.b32.xlu0 %v1330, 64
    %v1355 = vpop.permute.xlu0 %1354
    %1356 = vrot.lane.b32.xlu0 %v1331, 64
    %v1357 = vpop.permute.xlu0 %1356
    %1358 = vrot.lane.b32.xlu0 %v1332, 64
    %v1359 = vpop.permute.xlu0 %1358
    %1360 = vrot.lane.b32.xlu0 %v1333, 64
    %v1361 = vpop.permute.xlu0 %1360
    %v1366 = vmul.f32 %v1323, %v1355
    %v1367 = vmul.f32 %v1325, %v1357
    %v1368 = vmul.f32 %v1327, %v1359
    %v1369 = vmul.f32 %v1329, %v1361
    %1374 = vrot.lane.b32.xlu0 %v1366, 32
    %v1375 = vpop.permute.xlu0 %1374
    %1376 = vrot.lane.b32.xlu0 %v1367, 32
    %v1377 = vpop.permute.xlu0 %1376
    %1378 = vrot.lane.b32.xlu0 %v1368, 32
    %v1379 = vpop.permute.xlu0 %1378
    %1380 = vrot.lane.b32.xlu0 %v1369, 32
    %v1381 = vpop.permute.xlu0 %1380
    %v1386 = vadd.f32 %v1346, %v1375
    %v1387 = vadd.f32 %v1347, %v1377
    %v1388 = vadd.f32 %v1348, %v1379
    %v1389 = vadd.f32 %v1349, %v1381
    %v1390 = vtanh.pop %v1386
    %v1391 = vtanh.pop %v1387
    %v1392 = vtanh.pop %v1388
    %v1393 = vtanh.pop %v1389
    %1398 = vrot.lane.b32.xlu0 %v1390, 64
    %v1399 = vpop.permute.xlu0 %1398
    %1400 = vrot.lane.b32.xlu0 %v1391, 64
    %v1401 = vpop.permute.xlu0 %1400
    %1402 = vrot.lane.b32.xlu0 %v1392, 64
    %v1403 = vpop.permute.xlu0 %1402
    %1404 = vrot.lane.b32.xlu0 %v1393, 64
    %v1405 = vpop.permute.xlu0 %1404
    %v1410 = vmul.f32 %v1323, %v1399
    %v1411 = vmul.f32 %v1325, %v1401
    %v1412 = vmul.f32 %v1327, %v1403
    %v1413 = vmul.f32 %v1329, %v1405
    %v1414 = vsel %vm416, 1, 0
    %vm1415 = vcmp.eq.s32.totalorder %v1414, 1
    %v1416 = vlaneseq
    %v1417 = vshrl.u32 %v1416, 7
    %v1418 = vsub.s32 2, %v1417
    %v1419 = vrot.slane %v1410, %v1418
    %v1420 = vlaneseq
    %v1421 = vshrl.u32 %v1420, 7
    %v1422 = vsub.s32 2, %v1421
    %v1423 = vrot.slane %v1411, %v1422
    %v1424 = vlaneseq
    %v1425 = vshrl.u32 %v1424, 7
    %v1426 = vsub.s32 2, %v1425
    %v1427 = vrot.slane %v1412, %v1426
    %v1428 = vlaneseq
    %v1429 = vshrl.u32 %v1428, 7
    %v1430 = vsub.s32 2, %v1429
    %v1431 = vrot.slane %v1413, %v1430
    %v1432 = vsel %vm1415, %v1419, %v1206
    %v1433 = vsel %vm1415, %v1423, %v1207
    %v1434 = vsel %vm1415, %v1427, %v1208
    %v1435 = vsel %vm1415, %v1431, %v1209
    %v1440 = vrot.slane %v1410, 2
    %v1441 = vrot.slane %v1411, 1
    %v1442 = vsel %vm986, %v1441, %v1440
    %v1443 = vsel %vm989, %v1412, %v1442
    %v1444 = vrot.slane %v1413, 7
    %v1445 = vsel %vm992, %v1444, %v1443
    %1446 = vrot.lane.b32.xlu0 %v1445, 32
    %v1447 = vpop.permute.xlu0 %1446
    %v1448 = vsel %vm252, %v1447, 0
    %1450 = vmatprep.subr.mxu0 0.0
    %1451 = vmatpush1.msra.mxu0 0.0
    %1452 = vmatprep.subr.mxu0 0.0
    %1453 = vmatpush1.msra.mxu0 0.0
    %1454 = vmatprep.subr.mxu0 0.0
    %1455 = vmatpush1.msra.mxu0 0.0
    %1456 = vmatprep.subr.mxu0 0.0
    %1457 = vmatpush1.msra.mxu0 0.0
    %1458 = vmatprep.subr.mxu0 0.0
    %1459 = vmatpush1.msra.mxu0 0.0
    %1460 = vmatprep.subr.mxu0 0.0
    %1461 = vmatpush1.msra.mxu0 0.0
    %1462 = vmatprep.subr.mxu0 0.0
    %1463 = vmatpush1.msra.mxu0 0.0
    %1464 = vmatprep.subr.mxu0 0.0
    %1465 = vmatpush1.msra.mxu0 0.0
    %1466 = vmatprep.subr.mxu0 0.0
    %1467 = vmatpush1.msra.mxu0 0.0
    %1468 = vmatprep.subr.mxu0 0.0
    %1469 = vmatpush1.msra.mxu0 0.0
    %1470 = vmatprep.subr.mxu0 0.0
    %1471 = vmatpush1.msra.mxu0 0.0
    %1472 = vmatprep.subr.mxu0 0.0
    %1473 = vmatpush1.msra.mxu0 0.0
    %1474 = vmatprep.subr.mxu0 0.0
    %1475 = vmatpush1.msra.mxu0 %v83
    %1476 = vmatprep.subr.mxu0 0.0
    %1477 = vmatpush1.msra.mxu0 %v82
    %1478 = vmatprep.subr.mxu0 0.0
    %1479 = vmatpush1.msra.mxu0 %v81
    %1480 = vmatprep.subr.mxu0 0.0
    %1481 = vmatpush1.msra.mxu0 %v80
    %1482 = vmatprep.subr.mxu0 0.0
    %1483 = vmatpush2.msra.mxu0 0.0
    %1484 = vmatprep.subr.mxu0 0.0
    %1485 = vmatpush2.msra.mxu0 0.0
    %1486 = vmatprep.subr.mxu0 0.0
    %1487 = vmatpush2.msra.mxu0 0.0
    %1488 = vmatprep.subr.mxu0 0.0
    %1489 = vmatpush2.msra.mxu0 0.0
    %1490 = vmatprep.subr.mxu0 0.0
    %1491 = vmatpush2.msra.mxu0 0.0
    %1492 = vmatprep.subr.mxu0 0.0
    %1493 = vmatpush2.msra.mxu0 0.0
    %1494 = vmatprep.subr.mxu0 0.0
    %1495 = vmatpush2.msra.mxu0 0.0
    %1496 = vmatprep.subr.mxu0 0.0
    %1497 = vmatpush2.msra.mxu0 0.0
    %1498 = vmatprep.subr.mxu0 0.0
    %1499 = vmatpush2.msra.mxu0 0.0
    %1500 = vmatprep.subr.mxu0 0.0
    %1501 = vmatpush2.msra.mxu0 0.0
    %1502 = vmatprep.subr.mxu0 0.0
    %1503 = vmatpush2.msra.mxu0 0.0
    %1504 = vmatprep.subr.mxu0 0.0
    %1505 = vmatpush2.msra.mxu0 0.0
    %1506 = vmatprep.subr.mxu0 0.0
    %1507 = vmatpush2.msra.mxu0 0.0
    %1508 = vmatprep.subr.mxu0 0.0
    %1509 = vmatpush2.msra.mxu0 0.0
    %1510 = vmatprep.subr.mxu0 0.0
    %1511 = vmatpush2.msra.mxu0 0.0
    %1512 = vmatprep.subr.mxu0 0.0
    %1513 = vmatpush2.msra.mxu0 0.0
    %1514 = vmatprep.mubr.f32.mxu0 0.0
    %1515 = vmatmul.mubr.f32.gmra.mxu0 %v1448
    %v1516 = vpop.f32.mrf.mxu0
    %v1517 = vadd.f32 0.0, %v1516
    %v1518 = vpop.f32.mrf.mxu0
    %1519 = vdwg.mxu0
    %v1521 = vrot.slane %v1517, 5
    %v1522 = vrot.slane %v1517, 6
    %v1523 = vrot.slane %v1517, 7
    %v1528 = vadd.f32 %v760, %v1521
    %v1529 = vadd.f32 %v765, %v1522
    %v1530 = vadd.f32 %v770, %v1523
    %v1531 = vadd.f32 %v775, %v1517
    %v1532 = vxor.u32 %v1528, 2147483648
    %v1533 = vxor.u32 %v1529, 2147483648
    %v1534 = vxor.u32 %v1530, 2147483648
    %v1535 = vxor.u32 %v1531, 2147483648
    %v1536 = vmul.f32 %v1532, 1.442695
    %v1537 = vpow.pop %v1536
    %v1538 = vmul.f32 %v1533, 1.442695
    %v1539 = vpow.pop %v1538
    %v1540 = vmul.f32 %v1534, 1.442695
    %v1541 = vpow.pop %v1540
    %v1542 = vmul.f32 %v1535, 1.442695
    %v1543 = vpow.pop %v1542
    %v1544 = vadd.f32 %v1537, 1.0
    %v1545 = vadd.f32 %v1539, 1.0
    %v1546 = vadd.f32 %v1541, 1.0
    %v1547 = vadd.f32 %v1543, 1.0
    %v1548 = vrcp.pop %v1544
    %v1549 = vmul.f32 1.0, %v1548
    %v1550 = vrcp.pop %v1545
    %v1551 = vmul.f32 1.0, %v1550
    %v1552 = vrcp.pop %v1546
    %v1553 = vmul.f32 1.0, %v1552
    %v1554 = vrcp.pop %v1547
    %v1555 = vmul.f32 1.0, %v1554
    %v1556 = vtanh.pop %v1528
    %v1557 = vtanh.pop %v1529
    %v1558 = vtanh.pop %v1530
    %v1559 = vtanh.pop %v1531
    %v1564 = vrot.slane %v1386, 7
    %v1565 = vrot.slane %v1387, 7
    %v1566 = vrot.slane %v1388, 7
    %v1567 = vrot.slane %v1389, 7
    %v1572 = vmul.f32 %v1549, %v1564
    %v1573 = vmul.f32 %v1551, %v1565
    %v1574 = vmul.f32 %v1553, %v1566
    %v1575 = vmul.f32 %v1555, %v1567
    %1580 = vrot.lane.b32.xlu0 %v1556, 64
    %v1581 = vpop.permute.xlu0 %1580
    %1582 = vrot.lane.b32.xlu0 %v1557, 64
    %v1583 = vpop.permute.xlu0 %1582
    %1584 = vrot.lane.b32.xlu0 %v1558, 64
    %v1585 = vpop.permute.xlu0 %1584
    %1586 = vrot.lane.b32.xlu0 %v1559, 64
    %v1587 = vpop.permute.xlu0 %1586
    %v1592 = vmul.f32 %v1549, %v1581
    %v1593 = vmul.f32 %v1551, %v1583
    %v1594 = vmul.f32 %v1553, %v1585
    %v1595 = vmul.f32 %v1555, %v1587
    %1600 = vrot.lane.b32.xlu0 %v1592, 32
    %v1601 = vpop.permute.xlu0 %1600
    %1602 = vrot.lane.b32.xlu0 %v1593, 32
    %v1603 = vpop.permute.xlu0 %1602
    %1604 = vrot.lane.b32.xlu0 %v1594, 32
    %v1605 = vpop.permute.xlu0 %1604
    %1606 = vrot.lane.b32.xlu0 %v1595, 32
    %v1607 = vpop.permute.xlu0 %1606
    %v1612 = vadd.f32 %v1572, %v1601
    %v1613 = vadd.f32 %v1573, %v1603
    %v1614 = vadd.f32 %v1574, %v1605
    %v1615 = vadd.f32 %v1575, %v1607
    %v1616 = vtanh.pop %v1612
    %v1617 = vtanh.pop %v1613
    %v1618 = vtanh.pop %v1614
    %v1619 = vtanh.pop %v1615
    %1624 = vrot.lane.b32.xlu0 %v1616, 64
    %v1625 = vpop.permute.xlu0 %1624
    %1626 = vrot.lane.b32.xlu0 %v1617, 64
    %v1627 = vpop.permute.xlu0 %1626
    %1628 = vrot.lane.b32.xlu0 %v1618, 64
    %v1629 = vpop.permute.xlu0 %1628
    %1630 = vrot.lane.b32.xlu0 %v1619, 64
    %v1631 = vpop.permute.xlu0 %1630
    %v1636 = vmul.f32 %v1549, %v1625
    %v1637 = vmul.f32 %v1551, %v1627
    %v1638 = vmul.f32 %v1553, %v1629
    %v1639 = vmul.f32 %v1555, %v1631
    %v1640 = vsel %vm422, 1, 0
    %vm1641 = vcmp.eq.s32.totalorder %v1640, 1
    %v1642 = vlaneseq
    %v1643 = vshrl.u32 %v1642, 7
    %v1644 = vsub.s32 3, %v1643
    %v1645 = vrot.slane %v1636, %v1644
    %v1646 = vlaneseq
    %v1647 = vshrl.u32 %v1646, 7
    %v1648 = vsub.s32 3, %v1647
    %v1649 = vrot.slane %v1637, %v1648
    %v1650 = vlaneseq
    %v1651 = vshrl.u32 %v1650, 7
    %v1652 = vsub.s32 3, %v1651
    %v1653 = vrot.slane %v1638, %v1652
    %v1654 = vlaneseq
    %v1655 = vshrl.u32 %v1654, 7
    %v1656 = vsub.s32 3, %v1655
    %v1657 = vrot.slane %v1639, %v1656
    %v1658 = vsel %vm1641, %v1645, %v1432
    %v1659 = vsel %vm1641, %v1649, %v1433
    %v1660 = vsel %vm1641, %v1653, %v1434
    %v1661 = vsel %vm1641, %v1657, %v1435
    %v1666 = vrot.slane %v1636, 3
    %v1667 = vrot.slane %v1637, 2
    %v1668 = vsel %vm986, %v1667, %v1666
    %v1669 = vrot.slane %v1638, 1
    %v1670 = vsel %vm989, %v1669, %v1668
    %v1671 = vsel %vm992, %v1639, %v1670
    %1672 = vrot.lane.b32.xlu0 %v1671, 32
    %v1673 = vpop.permute.xlu0 %1672
    %v1674 = vsel %vm252, %v1673, 0
    %1676 = vmatprep.subr.mxu0 0.0
    %1677 = vmatpush1.msra.mxu0 0.0
    %1678 = vmatprep.subr.mxu0 0.0
    %1679 = vmatpush1.msra.mxu0 0.0
    %1680 = vmatprep.subr.mxu0 0.0
    %1681 = vmatpush1.msra.mxu0 0.0
    %1682 = vmatprep.subr.mxu0 0.0
    %1683 = vmatpush1.msra.mxu0 0.0
    %1684 = vmatprep.subr.mxu0 0.0
    %1685 = vmatpush1.msra.mxu0 0.0
    %1686 = vmatprep.subr.mxu0 0.0
    %1687 = vmatpush1.msra.mxu0 0.0
    %1688 = vmatprep.subr.mxu0 0.0
    %1689 = vmatpush1.msra.mxu0 0.0
    %1690 = vmatprep.subr.mxu0 0.0
    %1691 = vmatpush1.msra.mxu0 0.0
    %1692 = vmatprep.subr.mxu0 0.0
    %1693 = vmatpush1.msra.mxu0 0.0
    %1694 = vmatprep.subr.mxu0 0.0
    %1695 = vmatpush1.msra.mxu0 0.0
    %1696 = vmatprep.subr.mxu0 0.0
    %1697 = vmatpush1.msra.mxu0 0.0
    %1698 = vmatprep.subr.mxu0 0.0
    %1699 = vmatpush1.msra.mxu0 0.0
    %1700 = vmatprep.subr.mxu0 0.0
    %1701 = vmatpush1.msra.mxu0 %v83
    %1702 = vmatprep.subr.mxu0 0.0
    %1703 = vmatpush1.msra.mxu0 %v82
    %1704 = vmatprep.subr.mxu0 0.0
    %1705 = vmatpush1.msra.mxu0 %v81
    %1706 = vmatprep.subr.mxu0 0.0
    %1707 = vmatpush1.msra.mxu0 %v80
    %1708 = vmatprep.subr.mxu0 0.0
    %1709 = vmatpush2.msra.mxu0 0.0
    %1710 = vmatprep.subr.mxu0 0.0
    %1711 = vmatpush2.msra.mxu0 0.0
    %1712 = vmatprep.subr.mxu0 0.0
    %1713 = vmatpush2.msra.mxu0 0.0
    %1714 = vmatprep.subr.mxu0 0.0
    %1715 = vmatpush2.msra.mxu0 0.0
    %1716 = vmatprep.subr.mxu0 0.0
    %1717 = vmatpush2.msra.mxu0 0.0
    %1718 = vmatprep.subr.mxu0 0.0
    %1719 = vmatpush2.msra.mxu0 0.0
    %1720 = vmatprep.subr.mxu0 0.0
    %1721 = vmatpush2.msra.mxu0 0.0
    %1722 = vmatprep.subr.mxu0 0.0
    %1723 = vmatpush2.msra.mxu0 0.0
    %1724 = vmatprep.subr.mxu0 0.0
    %1725 = vmatpush2.msra.mxu0 0.0
    %1726 = vmatprep.subr.mxu0 0.0
    %1727 = vmatpush2.msra.mxu0 0.0
    %1728 = vmatprep.subr.mxu0 0.0
    %1729 = vmatpush2.msra.mxu0 0.0
    %1730 = vmatprep.subr.mxu0 0.0
    %1731 = vmatpush2.msra.mxu0 0.0
    %1732 = vmatprep.subr.mxu0 0.0
    %1733 = vmatpush2.msra.mxu0 0.0
    %1734 = vmatprep.subr.mxu0 0.0
    %1735 = vmatpush2.msra.mxu0 0.0
    %1736 = vmatprep.subr.mxu0 0.0
    %1737 = vmatpush2.msra.mxu0 0.0
    %1738 = vmatprep.subr.mxu0 0.0
    %1739 = vmatpush2.msra.mxu0 0.0
    %1740 = vmatprep.mubr.f32.mxu0 0.0
    %1741 = vmatmul.mubr.f32.gmra.mxu0 %v1674
    %v1742 = vpop.f32.mrf.mxu0
    %v1743 = vadd.f32 0.0, %v1742
    %v1744 = vpop.f32.mrf.mxu0
    %1745 = vdwg.mxu0
    %v1747 = vrot.slane %v1743, 4
    %v1748 = vrot.slane %v1743, 5
    %v1749 = vrot.slane %v1743, 6
    %v1750 = vrot.slane %v1743, 7
    %v1755 = vadd.f32 %v760, %v1747
    %v1756 = vadd.f32 %v765, %v1748
    %v1757 = vadd.f32 %v770, %v1749
    %v1758 = vadd.f32 %v775, %v1750
    %v1759 = vxor.u32 %v1755, 2147483648
    %v1760 = vxor.u32 %v1756, 2147483648
    %v1761 = vxor.u32 %v1757, 2147483648
    %v1762 = vxor.u32 %v1758, 2147483648
    %v1763 = vmul.f32 %v1759, 1.442695
    %v1764 = vpow.pop %v1763
    %v1765 = vmul.f32 %v1760, 1.442695
    %v1766 = vpow.pop %v1765
    %v1767 = vmul.f32 %v1761, 1.442695
    %v1768 = vpow.pop %v1767
    %v1769 = vmul.f32 %v1762, 1.442695
    %v1770 = vpow.pop %v1769
    %v1771 = vadd.f32 %v1764, 1.0
    %v1772 = vadd.f32 %v1766, 1.0
    %v1773 = vadd.f32 %v1768, 1.0
    %v1774 = vadd.f32 %v1770, 1.0
    %v1775 = vrcp.pop %v1771
    %v1776 = vmul.f32 1.0, %v1775
    %v1777 = vrcp.pop %v1772
    %v1778 = vmul.f32 1.0, %v1777
    %v1779 = vrcp.pop %v1773
    %v1780 = vmul.f32 1.0, %v1779
    %v1781 = vrcp.pop %v1774
    %v1782 = vmul.f32 1.0, %v1781
    %v1783 = vtanh.pop %v1755
    %v1784 = vtanh.pop %v1756
    %v1785 = vtanh.pop %v1757
    %v1786 = vtanh.pop %v1758
    %v1791 = vrot.slane %v1612, 7
    %v1792 = vrot.slane %v1613, 7
    %v1793 = vrot.slane %v1614, 7
    %v1794 = vrot.slane %v1615, 7
    %v1799 = vmul.f32 %v1776, %v1791
    %v1800 = vmul.f32 %v1778, %v1792
    %v1801 = vmul.f32 %v1780, %v1793
    %v1802 = vmul.f32 %v1782, %v1794
    %1807 = vrot.lane.b32.xlu0 %v1783, 64
    %v1808 = vpop.permute.xlu0 %1807
    %1809 = vrot.lane.b32.xlu0 %v1784, 64
    %v1810 = vpop.permute.xlu0 %1809
    %1811 = vrot.lane.b32.xlu0 %v1785, 64
    %v1812 = vpop.permute.xlu0 %1811
    %1813 = vrot.lane.b32.xlu0 %v1786, 64
    %v1814 = vpop.permute.xlu0 %1813
    %v1819 = vmul.f32 %v1776, %v1808
    %v1820 = vmul.f32 %v1778, %v1810
    %v1821 = vmul.f32 %v1780, %v1812
    %v1822 = vmul.f32 %v1782, %v1814
    %1827 = vrot.lane.b32.xlu0 %v1819, 32
    %v1828 = vpop.permute.xlu0 %1827
    %1829 = vrot.lane.b32.xlu0 %v1820, 32
    %v1830 = vpop.permute.xlu0 %1829
    %1831 = vrot.lane.b32.xlu0 %v1821, 32
    %v1832 = vpop.permute.xlu0 %1831
    %1833 = vrot.lane.b32.xlu0 %v1822, 32
    %v1834 = vpop.permute.xlu0 %1833
    %v1839 = vadd.f32 %v1799, %v1828
    %v1840 = vadd.f32 %v1800, %v1830
    %v1841 = vadd.f32 %v1801, %v1832
    %v1842 = vadd.f32 %v1802, %v1834
    %v1843 = vtanh.pop %v1839
    %v1844 = vtanh.pop %v1840
    %v1845 = vtanh.pop %v1841
    %v1846 = vtanh.pop %v1842
    %1851 = vrot.lane.b32.xlu0 %v1843, 64
    %v1852 = vpop.permute.xlu0 %1851
    %1853 = vrot.lane.b32.xlu0 %v1844, 64
    %v1854 = vpop.permute.xlu0 %1853
    %1855 = vrot.lane.b32.xlu0 %v1845, 64
    %v1856 = vpop.permute.xlu0 %1855
    %1857 = vrot.lane.b32.xlu0 %v1846, 64
    %v1858 = vpop.permute.xlu0 %1857
    %v1863 = vmul.f32 %v1776, %v1852
    %v1864 = vmul.f32 %v1778, %v1854
    %v1865 = vmul.f32 %v1780, %v1856
    %v1866 = vmul.f32 %v1782, %v1858
    %vm1867 = vcmp.eq.s32.totalorder %v401, 4
    %v1868 = vsel %vm1867, 1, 0
    %vm1869 = vcmp.eq.s32.totalorder %v1868, 1
    %v1870 = vlaneseq
    %v1871 = vshrl.u32 %v1870, 7
    %v1872 = vsub.s32 4, %v1871
    %v1873 = vrot.slane %v1863, %v1872
    %v1874 = vlaneseq
    %v1875 = vshrl.u32 %v1874, 7
    %v1876 = vsub.s32 4, %v1875
    %v1877 = vrot.slane %v1864, %v1876
    %v1878 = vlaneseq
    %v1879 = vshrl.u32 %v1878, 7
    %v1880 = vsub.s32 4, %v1879
    %v1881 = vrot.slane %v1865, %v1880
    %v1882 = vlaneseq
    %v1883 = vshrl.u32 %v1882, 7
    %v1884 = vsub.s32 4, %v1883
    %v1885 = vrot.slane %v1866, %v1884
    %v1886 = vsel %vm1869, %v1873, %v1658
    %v1887 = vsel %vm1869, %v1877, %v1659
    %v1888 = vsel %vm1869, %v1881, %v1660
    %v1889 = vsel %vm1869, %v1885, %v1661
    %v1894 = vrot.slane %v1863, 4
    %v1895 = vrot.slane %v1864, 3
    %v1896 = vsel %vm986, %v1895, %v1894
    %v1897 = vrot.slane %v1865, 2
    %v1898 = vsel %vm989, %v1897, %v1896
    %v1899 = vrot.slane %v1866, 1
    %v1900 = vsel %vm992, %v1899, %v1898
    %1901 = vrot.lane.b32.xlu0 %v1900, 32
    %v1902 = vpop.permute.xlu0 %1901
    %v1903 = vsel %vm252, %v1902, 0
    %1905 = vmatprep.subr.mxu0 0.0
    %1906 = vmatpush1.msra.mxu0 0.0
    %1907 = vmatprep.subr.mxu0 0.0
    %1908 = vmatpush1.msra.mxu0 0.0
    %1909 = vmatprep.subr.mxu0 0.0
    %1910 = vmatpush1.msra.mxu0 0.0
    %1911 = vmatprep.subr.mxu0 0.0
    %1912 = vmatpush1.msra.mxu0 0.0
    %1913 = vmatprep.subr.mxu0 0.0
    %1914 = vmatpush1.msra.mxu0 0.0
    %1915 = vmatprep.subr.mxu0 0.0
    %1916 = vmatpush1.msra.mxu0 0.0
    %1917 = vmatprep.subr.mxu0 0.0
    %1918 = vmatpush1.msra.mxu0 0.0
    %1919 = vmatprep.subr.mxu0 0.0
    %1920 = vmatpush1.msra.mxu0 0.0
    %1921 = vmatprep.subr.mxu0 0.0
    %1922 = vmatpush1.msra.mxu0 0.0
    %1923 = vmatprep.subr.mxu0 0.0
    %1924 = vmatpush1.msra.mxu0 0.0
    %1925 = vmatprep.subr.mxu0 0.0
    %1926 = vmatpush1.msra.mxu0 0.0
    %1927 = vmatprep.subr.mxu0 0.0
    %1928 = vmatpush1.msra.mxu0 0.0
    %1929 = vmatprep.subr.mxu0 0.0
    %1930 = vmatpush1.msra.mxu0 %v83
    %1931 = vmatprep.subr.mxu0 0.0
    %1932 = vmatpush1.msra.mxu0 %v82
    %1933 = vmatprep.subr.mxu0 0.0
    %1934 = vmatpush1.msra.mxu0 %v81
    %1935 = vmatprep.subr.mxu0 0.0
    %1936 = vmatpush1.msra.mxu0 %v80
    %1937 = vmatprep.subr.mxu0 0.0
    %1938 = vmatpush2.msra.mxu0 0.0
    %1939 = vmatprep.subr.mxu0 0.0
    %1940 = vmatpush2.msra.mxu0 0.0
    %1941 = vmatprep.subr.mxu0 0.0
    %1942 = vmatpush2.msra.mxu0 0.0
    %1943 = vmatprep.subr.mxu0 0.0
    %1944 = vmatpush2.msra.mxu0 0.0
    %1945 = vmatprep.subr.mxu0 0.0
    %1946 = vmatpush2.msra.mxu0 0.0
    %1947 = vmatprep.subr.mxu0 0.0
    %1948 = vmatpush2.msra.mxu0 0.0
    %1949 = vmatprep.subr.mxu0 0.0
    %1950 = vmatpush2.msra.mxu0 0.0
    %1951 = vmatprep.subr.mxu0 0.0
    %1952 = vmatpush2.msra.mxu0 0.0
    %1953 = vmatprep.subr.mxu0 0.0
    %1954 = vmatpush2.msra.mxu0 0.0
    %1955 = vmatprep.subr.mxu0 0.0
    %1956 = vmatpush2.msra.mxu0 0.0
    %1957 = vmatprep.subr.mxu0 0.0
    %1958 = vmatpush2.msra.mxu0 0.0
    %1959 = vmatprep.subr.mxu0 0.0
    %1960 = vmatpush2.msra.mxu0 0.0
    %1961 = vmatprep.subr.mxu0 0.0
    %1962 = vmatpush2.msra.mxu0 0.0
    %1963 = vmatprep.subr.mxu0 0.0
    %1964 = vmatpush2.msra.mxu0 0.0
    %1965 = vmatprep.subr.mxu0 0.0
    %1966 = vmatpush2.msra.mxu0 0.0
    %1967 = vmatprep.subr.mxu0 0.0
    %1968 = vmatpush2.msra.mxu0 0.0
    %1969 = vmatprep.mubr.f32.mxu0 0.0
    %1970 = vmatmul.mubr.f32.gmra.mxu0 %v1903
    %v1971 = vpop.f32.mrf.mxu0
    %v1972 = vadd.f32 0.0, %v1971
    %v1973 = vpop.f32.mrf.mxu0
    %1974 = vdwg.mxu0
    %v1976 = vrot.slane %v1972, 3
    %v1977 = vrot.slane %v1972, 4
    %v1978 = vrot.slane %v1972, 5
    %v1979 = vrot.slane %v1972, 6
    %v1984 = vadd.f32 %v760, %v1976
    %v1985 = vadd.f32 %v765, %v1977
    %v1986 = vadd.f32 %v770, %v1978
    %v1987 = vadd.f32 %v775, %v1979
    %v1988 = vxor.u32 %v1984, 2147483648
    %v1989 = vxor.u32 %v1985, 2147483648
    %v1990 = vxor.u32 %v1986, 2147483648
    %v1991 = vxor.u32 %v1987, 2147483648
    %v1992 = vmul.f32 %v1988, 1.442695
    %v1993 = vpow.pop %v1992
    %v1994 = vmul.f32 %v1989, 1.442695
    %v1995 = vpow.pop %v1994
    %v1996 = vmul.f32 %v1990, 1.442695
    %v1997 = vpow.pop %v1996
    %v1998 = vmul.f32 %v1991, 1.442695
    %v1999 = vpow.pop %v1998
    %v2000 = vadd.f32 %v1993, 1.0
    %v2001 = vadd.f32 %v1995, 1.0
    %v2002 = vadd.f32 %v1997, 1.0
    %v2003 = vadd.f32 %v1999, 1.0
    %v2004 = vrcp.pop %v2000
    %v2005 = vmul.f32 1.0, %v2004
    %v2006 = vrcp.pop %v2001
    %v2007 = vmul.f32 1.0, %v2006
    %v2008 = vrcp.pop %v2002
    %v2009 = vmul.f32 1.0, %v2008
    %v2010 = vrcp.pop %v2003
    %v2011 = vmul.f32 1.0, %v2010
    %v2012 = vtanh.pop %v1984
    %v2013 = vtanh.pop %v1985
    %v2014 = vtanh.pop %v1986
    %v2015 = vtanh.pop %v1987
    %v2020 = vrot.slane %v1839, 7
    %v2021 = vrot.slane %v1840, 7
    %v2022 = vrot.slane %v1841, 7
    %v2023 = vrot.slane %v1842, 7
    %v2028 = vmul.f32 %v2005, %v2020
    %v2029 = vmul.f32 %v2007, %v2021
    %v2030 = vmul.f32 %v2009, %v2022
    %v2031 = vmul.f32 %v2011, %v2023
    %2036 = vrot.lane.b32.xlu0 %v2012, 64
    %v2037 = vpop.permute.xlu0 %2036
    %2038 = vrot.lane.b32.xlu0 %v2013, 64
    %v2039 = vpop.permute.xlu0 %2038
    %2040 = vrot.lane.b32.xlu0 %v2014, 64
    %v2041 = vpop.permute.xlu0 %2040
    %2042 = vrot.lane.b32.xlu0 %v2015, 64
    %v2043 = vpop.permute.xlu0 %2042
    %v2048 = vmul.f32 %v2005, %v2037
    %v2049 = vmul.f32 %v2007, %v2039
    %v2050 = vmul.f32 %v2009, %v2041
    %v2051 = vmul.f32 %v2011, %v2043
    %2056 = vrot.lane.b32.xlu0 %v2048, 32
    %v2057 = vpop.permute.xlu0 %2056
    %2058 = vrot.lane.b32.xlu0 %v2049, 32
    %v2059 = vpop.permute.xlu0 %2058
    %2060 = vrot.lane.b32.xlu0 %v2050, 32
    %v2061 = vpop.permute.xlu0 %2060
    %2062 = vrot.lane.b32.xlu0 %v2051, 32
    %v2063 = vpop.permute.xlu0 %2062
    %v2068 = vadd.f32 %v2028, %v2057
    %v2069 = vadd.f32 %v2029, %v2059
    %v2070 = vadd.f32 %v2030, %v2061
    %v2071 = vadd.f32 %v2031, %v2063
    %v2072 = vtanh.pop %v2068
    %v2073 = vtanh.pop %v2069
    %v2074 = vtanh.pop %v2070
    %v2075 = vtanh.pop %v2071
    %2080 = vrot.lane.b32.xlu0 %v2072, 64
    %v2081 = vpop.permute.xlu0 %2080
    %2082 = vrot.lane.b32.xlu0 %v2073, 64
    %v2083 = vpop.permute.xlu0 %2082
    %2084 = vrot.lane.b32.xlu0 %v2074, 64
    %v2085 = vpop.permute.xlu0 %2084
    %2086 = vrot.lane.b32.xlu0 %v2075, 64
    %v2087 = vpop.permute.xlu0 %2086
    %v2092 = vmul.f32 %v2005, %v2081
    %v2093 = vmul.f32 %v2007, %v2083
    %v2094 = vmul.f32 %v2009, %v2085
    %v2095 = vmul.f32 %v2011, %v2087
    %vm2096 = vcmp.eq.s32.totalorder %v401, 5
    %v2097 = vsel %vm2096, 1, 0
    %vm2098 = vcmp.eq.s32.totalorder %v2097, 1
    %v2099 = vlaneseq
    %v2100 = vshrl.u32 %v2099, 7
    %v2101 = vsub.s32 5, %v2100
    %v2102 = vrot.slane %v2092, %v2101
    %v2103 = vlaneseq
    %v2104 = vshrl.u32 %v2103, 7
    %v2105 = vsub.s32 5, %v2104
    %v2106 = vrot.slane %v2093, %v2105
    %v2107 = vlaneseq
    %v2108 = vshrl.u32 %v2107, 7
    %v2109 = vsub.s32 5, %v2108
    %v2110 = vrot.slane %v2094, %v2109
    %v2111 = vlaneseq
    %v2112 = vshrl.u32 %v2111, 7
    %v2113 = vsub.s32 5, %v2112
    %v2114 = vrot.slane %v2095, %v2113
    %v2115 = vsel %vm2098, %v2102, %v1886
    %v2116 = vsel %vm2098, %v2106, %v1887
    %v2117 = vsel %vm2098, %v2110, %v1888
    %v2118 = vsel %vm2098, %v2114, %v1889
    %v2123 = vrot.slane %v2092, 5
    %v2124 = vrot.slane %v2093, 4
    %v2125 = vsel %vm986, %v2124, %v2123
    %v2126 = vrot.slane %v2094, 3
    %v2127 = vsel %vm989, %v2126, %v2125
    %v2128 = vrot.slane %v2095, 2
    %v2129 = vsel %vm992, %v2128, %v2127
    %2130 = vrot.lane.b32.xlu0 %v2129, 32
    %v2131 = vpop.permute.xlu0 %2130
    %v2132 = vsel %vm252, %v2131, 0
    %2134 = vmatprep.subr.mxu0 0.0
    %2135 = vmatpush1.msra.mxu0 0.0
    %2136 = vmatprep.subr.mxu0 0.0
    %2137 = vmatpush1.msra.mxu0 0.0
    %2138 = vmatprep.subr.mxu0 0.0
    %2139 = vmatpush1.msra.mxu0 0.0
    %2140 = vmatprep.subr.mxu0 0.0
    %2141 = vmatpush1.msra.mxu0 0.0
    %2142 = vmatprep.subr.mxu0 0.0
    %2143 = vmatpush1.msra.mxu0 0.0
    %2144 = vmatprep.subr.mxu0 0.0
    %2145 = vmatpush1.msra.mxu0 0.0
    %2146 = vmatprep.subr.mxu0 0.0
    %2147 = vmatpush1.msra.mxu0 0.0
    %2148 = vmatprep.subr.mxu0 0.0
    %2149 = vmatpush1.msra.mxu0 0.0
    %2150 = vmatprep.subr.mxu0 0.0
    %2151 = vmatpush1.msra.mxu0 0.0
    %2152 = vmatprep.subr.mxu0 0.0
    %2153 = vmatpush1.msra.mxu0 0.0
    %2154 = vmatprep.subr.mxu0 0.0
    %2155 = vmatpush1.msra.mxu0 0.0
    %2156 = vmatprep.subr.mxu0 0.0
    %2157 = vmatpush1.msra.mxu0 0.0
    %2158 = vmatprep.subr.mxu0 0.0
    %2159 = vmatpush1.msra.mxu0 %v83
    %2160 = vmatprep.subr.mxu0 0.0
    %2161 = vmatpush1.msra.mxu0 %v82
    %2162 = vmatprep.subr.mxu0 0.0
    %2163 = vmatpush1.msra.mxu0 %v81
    %2164 = vmatprep.subr.mxu0 0.0
    %2165 = vmatpush1.msra.mxu0 %v80
    %2166 = vmatprep.subr.mxu0 0.0
    %2167 = vmatpush2.msra.mxu0 0.0
    %2168 = vmatprep.subr.mxu0 0.0
    %2169 = vmatpush2.msra.mxu0 0.0
    %2170 = vmatprep.subr.mxu0 0.0
    %2171 = vmatpush2.msra.mxu0 0.0
    %2172 = vmatprep.subr.mxu0 0.0
    %2173 = vmatpush2.msra.mxu0 0.0
    %2174 = vmatprep.subr.mxu0 0.0
    %2175 = vmatpush2.msra.mxu0 0.0
    %2176 = vmatprep.subr.mxu0 0.0
    %2177 = vmatpush2.msra.mxu0 0.0
    %2178 = vmatprep.subr.mxu0 0.0
    %2179 = vmatpush2.msra.mxu0 0.0
    %2180 = vmatprep.subr.mxu0 0.0
    %2181 = vmatpush2.msra.mxu0 0.0
    %2182 = vmatprep.subr.mxu0 0.0
    %2183 = vmatpush2.msra.mxu0 0.0
    %2184 = vmatprep.subr.mxu0 0.0
    %2185 = vmatpush2.msra.mxu0 0.0
    %2186 = vmatprep.subr.mxu0 0.0
    %2187 = vmatpush2.msra.mxu0 0.0
    %2188 = vmatprep.subr.mxu0 0.0
    %2189 = vmatpush2.msra.mxu0 0.0
    %2190 = vmatprep.subr.mxu0 0.0
    %2191 = vmatpush2.msra.mxu0 0.0
    %2192 = vmatprep.subr.mxu0 0.0
    %2193 = vmatpush2.msra.mxu0 0.0
    %2194 = vmatprep.subr.mxu0 0.0
    %2195 = vmatpush2.msra.mxu0 0.0
    %2196 = vmatprep.subr.mxu0 0.0
    %2197 = vmatpush2.msra.mxu0 0.0
    %2198 = vmatprep.mubr.f32.mxu0 0.0
    %2199 = vmatmul.mubr.f32.gmra.mxu0 %v2132
    %v2200 = vpop.f32.mrf.mxu0
    %v2201 = vadd.f32 0.0, %v2200
    %v2202 = vpop.f32.mrf.mxu0
    %2203 = vdwg.mxu0
    %v2205 = vrot.slane %v2201, 2
    %v2206 = vrot.slane %v2201, 3
    %v2207 = vrot.slane %v2201, 4
    %v2208 = vrot.slane %v2201, 5
    %v2213 = vadd.f32 %v760, %v2205
    %v2214 = vadd.f32 %v765, %v2206
    %v2215 = vadd.f32 %v770, %v2207
    %v2216 = vadd.f32 %v775, %v2208
    %v2217 = vxor.u32 %v2213, 2147483648
    %v2218 = vxor.u32 %v2214, 2147483648
    %v2219 = vxor.u32 %v2215, 2147483648
    %v2220 = vxor.u32 %v2216, 2147483648
    %v2221 = vmul.f32 %v2217, 1.442695
    %v2222 = vpow.pop %v2221
    %v2223 = vmul.f32 %v2218, 1.442695
    %v2224 = vpow.pop %v2223
    %v2225 = vmul.f32 %v2219, 1.442695
    %v2226 = vpow.pop %v2225
    %v2227 = vmul.f32 %v2220, 1.442695
    %v2228 = vpow.pop %v2227
    %v2229 = vadd.f32 %v2222, 1.0
    %v2230 = vadd.f32 %v2224, 1.0
    %v2231 = vadd.f32 %v2226, 1.0
    %v2232 = vadd.f32 %v2228, 1.0
    %v2233 = vrcp.pop %v2229
    %v2234 = vmul.f32 1.0, %v2233
    %v2235 = vrcp.pop %v2230
    %v2236 = vmul.f32 1.0, %v2235
    %v2237 = vrcp.pop %v2231
    %v2238 = vmul.f32 1.0, %v2237
    %v2239 = vrcp.pop %v2232
    %v2240 = vmul.f32 1.0, %v2239
    %v2241 = vtanh.pop %v2213
    %v2242 = vtanh.pop %v2214
    %v2243 = vtanh.pop %v2215
    %v2244 = vtanh.pop %v2216
    %v2249 = vrot.slane %v2068, 7
    %v2250 = vrot.slane %v2069, 7
    %v2251 = vrot.slane %v2070, 7
    %v2252 = vrot.slane %v2071, 7
    %v2257 = vmul.f32 %v2234, %v2249
    %v2258 = vmul.f32 %v2236, %v2250
    %v2259 = vmul.f32 %v2238, %v2251
    %v2260 = vmul.f32 %v2240, %v2252
    %2265 = vrot.lane.b32.xlu0 %v2241, 64
    %v2266 = vpop.permute.xlu0 %2265
    %2267 = vrot.lane.b32.xlu0 %v2242, 64
    %v2268 = vpop.permute.xlu0 %2267
    %2269 = vrot.lane.b32.xlu0 %v2243, 64
    %v2270 = vpop.permute.xlu0 %2269
    %2271 = vrot.lane.b32.xlu0 %v2244, 64
    %v2272 = vpop.permute.xlu0 %2271
    %v2277 = vmul.f32 %v2234, %v2266
    %v2278 = vmul.f32 %v2236, %v2268
    %v2279 = vmul.f32 %v2238, %v2270
    %v2280 = vmul.f32 %v2240, %v2272
    %2285 = vrot.lane.b32.xlu0 %v2277, 32
    %v2286 = vpop.permute.xlu0 %2285
    %2287 = vrot.lane.b32.xlu0 %v2278, 32
    %v2288 = vpop.permute.xlu0 %2287
    %2289 = vrot.lane.b32.xlu0 %v2279, 32
    %v2290 = vpop.permute.xlu0 %2289
    %2291 = vrot.lane.b32.xlu0 %v2280, 32
    %v2292 = vpop.permute.xlu0 %2291
    %v2297 = vadd.f32 %v2257, %v2286
    %v2298 = vadd.f32 %v2258, %v2288
    %v2299 = vadd.f32 %v2259, %v2290
    %v2300 = vadd.f32 %v2260, %v2292
    %v2301 = vtanh.pop %v2297
    %v2302 = vtanh.pop %v2298
    %v2303 = vtanh.pop %v2299
    %v2304 = vtanh.pop %v2300
    %2309 = vrot.lane.b32.xlu0 %v2301, 64
    %v2310 = vpop.permute.xlu0 %2309
    %2311 = vrot.lane.b32.xlu0 %v2302, 64
    %v2312 = vpop.permute.xlu0 %2311
    %2313 = vrot.lane.b32.xlu0 %v2303, 64
    %v2314 = vpop.permute.xlu0 %2313
    %2315 = vrot.lane.b32.xlu0 %v2304, 64
    %v2316 = vpop.permute.xlu0 %2315
    %v2321 = vmul.f32 %v2234, %v2310
    %v2322 = vmul.f32 %v2236, %v2312
    %v2323 = vmul.f32 %v2238, %v2314
    %v2324 = vmul.f32 %v2240, %v2316
    %vm2325 = vcmp.eq.s32.totalorder %v401, 6
    %v2326 = vsel %vm2325, 1, 0
    %vm2327 = vcmp.eq.s32.totalorder %v2326, 1
    %v2328 = vlaneseq
    %v2329 = vshrl.u32 %v2328, 7
    %v2330 = vsub.s32 6, %v2329
    %v2331 = vrot.slane %v2321, %v2330
    %v2332 = vlaneseq
    %v2333 = vshrl.u32 %v2332, 7
    %v2334 = vsub.s32 6, %v2333
    %v2335 = vrot.slane %v2322, %v2334
    %v2336 = vlaneseq
    %v2337 = vshrl.u32 %v2336, 7
    %v2338 = vsub.s32 6, %v2337
    %v2339 = vrot.slane %v2323, %v2338
    %v2340 = vlaneseq
    %v2341 = vshrl.u32 %v2340, 7
    %v2342 = vsub.s32 6, %v2341
    %v2343 = vrot.slane %v2324, %v2342
    %v2344 = vsel %vm2327, %v2331, %v2115
    %v2345 = vsel %vm2327, %v2335, %v2116
    %v2346 = vsel %vm2327, %v2339, %v2117
    %v2347 = vsel %vm2327, %v2343, %v2118
    %v2352 = vrot.slane %v2321, 6
    %v2353 = vrot.slane %v2322, 5
    %v2354 = vsel %vm986, %v2353, %v2352
    %v2355 = vrot.slane %v2323, 4
    %v2356 = vsel %vm989, %v2355, %v2354
    %v2357 = vrot.slane %v2324, 3
    %v2358 = vsel %vm992, %v2357, %v2356
    %2359 = vrot.lane.b32.xlu0 %v2358, 32
    %v2360 = vpop.permute.xlu0 %2359
    %v2361 = vsel %vm252, %v2360, 0
    %2363 = vmatprep.subr.mxu0 0.0
    %2364 = vmatpush1.msra.mxu0 0.0
    %2365 = vmatprep.subr.mxu0 0.0
    %2366 = vmatpush1.msra.mxu0 0.0
    %2367 = vmatprep.subr.mxu0 0.0
    %2368 = vmatpush1.msra.mxu0 0.0
    %2369 = vmatprep.subr.mxu0 0.0
    %2370 = vmatpush1.msra.mxu0 0.0
    %2371 = vmatprep.subr.mxu0 0.0
    %2372 = vmatpush1.msra.mxu0 0.0
    %2373 = vmatprep.subr.mxu0 0.0
    %2374 = vmatpush1.msra.mxu0 0.0
    %2375 = vmatprep.subr.mxu0 0.0
    %2376 = vmatpush1.msra.mxu0 0.0
    %2377 = vmatprep.subr.mxu0 0.0
    %2378 = vmatpush1.msra.mxu0 0.0
    %2379 = vmatprep.subr.mxu0 0.0
    %2380 = vmatpush1.msra.mxu0 0.0
    %2381 = vmatprep.subr.mxu0 0.0
    %2382 = vmatpush1.msra.mxu0 0.0
    %2383 = vmatprep.subr.mxu0 0.0
    %2384 = vmatpush1.msra.mxu0 0.0
    %2385 = vmatprep.subr.mxu0 0.0
    %2386 = vmatpush1.msra.mxu0 0.0
    %2387 = vmatprep.subr.mxu0 0.0
    %2388 = vmatpush1.msra.mxu0 %v83
    %2389 = vmatprep.subr.mxu0 0.0
    %2390 = vmatpush1.msra.mxu0 %v82
    %2391 = vmatprep.subr.mxu0 0.0
    %2392 = vmatpush1.msra.mxu0 %v81
    %2393 = vmatprep.subr.mxu0 0.0
    %2394 = vmatpush1.msra.mxu0 %v80
    %2395 = vmatprep.subr.mxu0 0.0
    %2396 = vmatpush2.msra.mxu0 0.0
    %2397 = vmatprep.subr.mxu0 0.0
    %2398 = vmatpush2.msra.mxu0 0.0
    %2399 = vmatprep.subr.mxu0 0.0
    %2400 = vmatpush2.msra.mxu0 0.0
    %2401 = vmatprep.subr.mxu0 0.0
    %2402 = vmatpush2.msra.mxu0 0.0
    %2403 = vmatprep.subr.mxu0 0.0
    %2404 = vmatpush2.msra.mxu0 0.0
    %2405 = vmatprep.subr.mxu0 0.0
    %2406 = vmatpush2.msra.mxu0 0.0
    %2407 = vmatprep.subr.mxu0 0.0
    %2408 = vmatpush2.msra.mxu0 0.0
    %2409 = vmatprep.subr.mxu0 0.0
    %2410 = vmatpush2.msra.mxu0 0.0
    %2411 = vmatprep.subr.mxu0 0.0
    %2412 = vmatpush2.msra.mxu0 0.0
    %2413 = vmatprep.subr.mxu0 0.0
    %2414 = vmatpush2.msra.mxu0 0.0
    %2415 = vmatprep.subr.mxu0 0.0
    %2416 = vmatpush2.msra.mxu0 0.0
    %2417 = vmatprep.subr.mxu0 0.0
    %2418 = vmatpush2.msra.mxu0 0.0
    %2419 = vmatprep.subr.mxu0 0.0
    %2420 = vmatpush2.msra.mxu0 0.0
    %2421 = vmatprep.subr.mxu0 0.0
    %2422 = vmatpush2.msra.mxu0 0.0
    %2423 = vmatprep.subr.mxu0 0.0
    %2424 = vmatpush2.msra.mxu0 0.0
    %2425 = vmatprep.subr.mxu0 0.0
    %2426 = vmatpush2.msra.mxu0 0.0
    %2427 = vmatprep.mubr.f32.mxu0 0.0
    %2428 = vmatmul.mubr.f32.gmra.mxu0 %v2361
    %v2429 = vpop.f32.mrf.mxu0
    %v2430 = vadd.f32 0.0, %v2429
    %v2431 = vpop.f32.mrf.mxu0
    %2432 = vdwg.mxu0
    %v2434 = vrot.slane %v2430, 1
    %v2435 = vrot.slane %v2430, 2
    %v2436 = vrot.slane %v2430, 3
    %v2437 = vrot.slane %v2430, 4
    %v2442 = vadd.f32 %v760, %v2434
    %v2443 = vadd.f32 %v765, %v2435
    %v2444 = vadd.f32 %v770, %v2436
    %v2445 = vadd.f32 %v775, %v2437
    %v2446 = vxor.u32 %v2442, 2147483648
    %v2447 = vxor.u32 %v2443, 2147483648
    %v2448 = vxor.u32 %v2444, 2147483648
    %v2449 = vxor.u32 %v2445, 2147483648
    %v2450 = vmul.f32 %v2446, 1.442695
    %v2451 = vpow.pop %v2450
    %v2452 = vmul.f32 %v2447, 1.442695
    %v2453 = vpow.pop %v2452
    %v2454 = vmul.f32 %v2448, 1.442695
    %v2455 = vpow.pop %v2454
    %v2456 = vmul.f32 %v2449, 1.442695
    %v2457 = vpow.pop %v2456
    %v2458 = vadd.f32 %v2451, 1.0
    %v2459 = vadd.f32 %v2453, 1.0
    %v2460 = vadd.f32 %v2455, 1.0
    %v2461 = vadd.f32 %v2457, 1.0
    %v2462 = vrcp.pop %v2458
    %v2463 = vmul.f32 1.0, %v2462
    %v2464 = vrcp.pop %v2459
    %v2465 = vmul.f32 1.0, %v2464
    %v2466 = vrcp.pop %v2460
    %v2467 = vmul.f32 1.0, %v2466
    %v2468 = vrcp.pop %v2461
    %v2469 = vmul.f32 1.0, %v2468
    %v2470 = vtanh.pop %v2442
    %v2471 = vtanh.pop %v2443
    %v2472 = vtanh.pop %v2444
    %v2473 = vtanh.pop %v2445
    %v2478 = vrot.slane %v2297, 7
    %v2479 = vrot.slane %v2298, 7
    %v2480 = vrot.slane %v2299, 7
    %v2481 = vrot.slane %v2300, 7
    %v2486 = vmul.f32 %v2463, %v2478
    %v2487 = vmul.f32 %v2465, %v2479
    %v2488 = vmul.f32 %v2467, %v2480
    %v2489 = vmul.f32 %v2469, %v2481
    %2494 = vrot.lane.b32.xlu0 %v2470, 64
    %v2495 = vpop.permute.xlu0 %2494
    %2496 = vrot.lane.b32.xlu0 %v2471, 64
    %v2497 = vpop.permute.xlu0 %2496
    %2498 = vrot.lane.b32.xlu0 %v2472, 64
    %v2499 = vpop.permute.xlu0 %2498
    %2500 = vrot.lane.b32.xlu0 %v2473, 64
    %v2501 = vpop.permute.xlu0 %2500
    %v2506 = vmul.f32 %v2463, %v2495
    %v2507 = vmul.f32 %v2465, %v2497
    %v2508 = vmul.f32 %v2467, %v2499
    %v2509 = vmul.f32 %v2469, %v2501
    %2514 = vrot.lane.b32.xlu0 %v2506, 32
    %v2515 = vpop.permute.xlu0 %2514
    %2516 = vrot.lane.b32.xlu0 %v2507, 32
    %v2517 = vpop.permute.xlu0 %2516
    %2518 = vrot.lane.b32.xlu0 %v2508, 32
    %v2519 = vpop.permute.xlu0 %2518
    %2520 = vrot.lane.b32.xlu0 %v2509, 32
    %v2521 = vpop.permute.xlu0 %2520
    %v2526 = vadd.f32 %v2486, %v2515
    %v2527 = vadd.f32 %v2487, %v2517
    %v2528 = vadd.f32 %v2488, %v2519
    %v2529 = vadd.f32 %v2489, %v2521
    %v2530 = vtanh.pop %v2526
    %v2531 = vtanh.pop %v2527
    %v2532 = vtanh.pop %v2528
    %v2533 = vtanh.pop %v2529
    %2538 = vrot.lane.b32.xlu0 %v2530, 64
    %v2539 = vpop.permute.xlu0 %2538
    %2540 = vrot.lane.b32.xlu0 %v2531, 64
    %v2541 = vpop.permute.xlu0 %2540
    %2542 = vrot.lane.b32.xlu0 %v2532, 64
    %v2543 = vpop.permute.xlu0 %2542
    %2544 = vrot.lane.b32.xlu0 %v2533, 64
    %v2545 = vpop.permute.xlu0 %2544
    %v2550 = vmul.f32 %v2463, %v2539
    %v2551 = vmul.f32 %v2465, %v2541
    %v2552 = vmul.f32 %v2467, %v2543
    %v2553 = vmul.f32 %v2469, %v2545
    %vm2554 = vcmp.eq.s32.totalorder %v401, 7
    %v2555 = vsel %vm2554, 1, 0
    %vm2556 = vcmp.eq.s32.totalorder %v2555, 1
    %v2557 = vlaneseq
    %v2558 = vshrl.u32 %v2557, 7
    %v2559 = vsub.s32 7, %v2558
    %v2560 = vrot.slane %v2550, %v2559
    %v2561 = vlaneseq
    %v2562 = vshrl.u32 %v2561, 7
    %v2563 = vsub.s32 7, %v2562
    %v2564 = vrot.slane %v2551, %v2563
    %v2565 = vlaneseq
    %v2566 = vshrl.u32 %v2565, 7
    %v2567 = vsub.s32 7, %v2566
    %v2568 = vrot.slane %v2552, %v2567
    %v2569 = vlaneseq
    %v2570 = vshrl.u32 %v2569, 7
    %v2571 = vsub.s32 7, %v2570
    %v2572 = vrot.slane %v2553, %v2571
    %v2573 = vsel %vm2556, %v2560, %v2344
    %v2574 = vsel %vm2556, %v2564, %v2345
    %v2575 = vsel %vm2556, %v2568, %v2346
    %v2576 = vsel %vm2556, %v2572, %v2347
    %s2577 = sld [smem:[#allocation5]]
    %v2578 = vstv %s2577
    %vm2579 = vcmp.lt.s32.totalorder %v401, %v2578
    %vm2580 = vmand 1, %vm2579
    %vm2581 = vmand 0, %vm2579
    %v2582 = vsel %vm2580, 1.0, 0.0
    %v2583 = vsel %vm2581, 1.0, 0.0
    %s2584 = sld [smem:[#allocation5 + $0x1]]
    %v2585 = vstv %s2584
    %vm2586 = vcmp.lt.s32.totalorder %v401, %v2585
    %vm2587 = vmand 0, %vm2586
    %vm2588 = vmand 1, %vm2586
    %v2589 = vsel %vm2587, 1.0, %v2582
    %v2590 = vsel %vm2588, 1.0, %v2583
    %v2591 = vsel %vm2587, 1.0, %v2583
    %s2592 = sld [smem:[#allocation5 + $0x2]]
    %v2593 = vstv %s2592
    %vm2594 = vcmp.lt.s32.totalorder %v401, %v2593
    %vm2595 = vmand 0, %vm2594
    %vm2596 = vmand 1, %vm2594
    %v2597 = vsel %vm2595, 1.0, %v2589
    %v2598 = vsel %vm2595, 1.0, %v2590
    %v2599 = vsel %vm2596, 1.0, %v2591
    %v2600 = vsel %vm2595, 1.0, %v2591
    %s2601 = sld [smem:[#allocation5 + $0x3]]
    %v2602 = vstv %s2601
    %vm2603 = vcmp.lt.s32.totalorder %v401, %v2602
    %vm2604 = vmand 0, %vm2603
    %vm2605 = vmand 1, %vm2603
    %v2606 = vsel %vm2604, 1.0, %v2597
    %v2607 = vsel %vm2604, 1.0, %v2598
    %v2608 = vsel %vm2604, 1.0, %v2599
    %v2609 = vsel %vm2605, 1.0, %v2600
    %v2610 = vmul.f32 %v2573, %v2606
    %v2611 = vmul.f32 %v2574, %v2607
    %v2612 = vmul.f32 %v2575, %v2608
    %v2613 = vmul.f32 %v2576, %v2609
    %2618 = vrot.lane.b32.xlu0 %v2610, 32
    %v2619 = vpop.permute.xlu0 %2618
    %2620 = vrot.lane.b32.xlu0 %v2611, 32
    %v2621 = vpop.permute.xlu0 %2620
    %2622 = vrot.lane.b32.xlu0 %v2612, 32
    %v2623 = vpop.permute.xlu0 %2622
    %2624 = vrot.lane.b32.xlu0 %v2613, 32
    %v2625 = vpop.permute.xlu0 %2624
    %v2626 = vsel %vm252, %v2619, 0
    %v2628 = vsel %vm252, %v2621, 0
    %v2630 = vsel %vm252, %v2623, 0
    %v2632 = vsel %vm252, %v2625, 0
    %2634 = vmatprep.subr.mxu0 0.0
    %2635 = vmatpush1.msra.mxu0 0.0
    %2636 = vmatprep.subr.mxu0 0.0
    %2637 = vmatpush1.msra.mxu0 0.0
    %2638 = vmatprep.subr.mxu0 0.0
    %2639 = vmatpush1.msra.mxu0 0.0
    %2640 = vmatprep.subr.mxu0 0.0
    %2641 = vmatpush1.msra.mxu0 0.0
    %2642 = vmatprep.subr.mxu0 0.0
    %2643 = vmatpush1.msra.mxu0 0.0
    %2644 = vmatprep.subr.mxu0 0.0
    %2645 = vmatpush1.msra.mxu0 0.0
    %2646 = vmatprep.subr.mxu0 0.0
    %2647 = vmatpush1.msra.mxu0 0.0
    %2648 = vmatprep.subr.mxu0 0.0
    %2649 = vmatpush1.msra.mxu0 0.0
    %2650 = vmatprep.subr.mxu0 0.0
    %2651 = vmatpush1.msra.mxu0 0.0
    %2652 = vmatprep.subr.mxu0 0.0
    %2653 = vmatpush1.msra.mxu0 0.0
    %2654 = vmatprep.subr.mxu0 0.0
    %2655 = vmatpush1.msra.mxu0 0.0
    %2656 = vmatprep.subr.mxu0 0.0
    %2657 = vmatpush1.msra.mxu0 0.0
    %2658 = vmatprep.subr.mxu0 0.0
    %2659 = vmatpush1.msra.mxu0 %v79
    %2660 = vmatprep.subr.mxu0 0.0
    %2661 = vmatpush1.msra.mxu0 %v78
    %2662 = vmatprep.subr.mxu0 0.0
    %2663 = vmatpush1.msra.mxu0 %v77
    %2664 = vmatprep.subr.mxu0 0.0
    %2665 = vmatpush1.msra.mxu0 %v76
    %2666 = vmatprep.subr.mxu0 0.0
    %2667 = vmatpush2.msra.mxu0 0.0
    %2668 = vmatprep.subr.mxu0 0.0
    %2669 = vmatpush2.msra.mxu0 0.0
    %2670 = vmatprep.subr.mxu0 0.0
    %2671 = vmatpush2.msra.mxu0 0.0
    %2672 = vmatprep.subr.mxu0 0.0
    %2673 = vmatpush2.msra.mxu0 0.0
    %2674 = vmatprep.subr.mxu0 0.0
    %2675 = vmatpush2.msra.mxu0 0.0
    %2676 = vmatprep.subr.mxu0 0.0
    %2677 = vmatpush2.msra.mxu0 0.0
    %2678 = vmatprep.subr.mxu0 0.0
    %2679 = vmatpush2.msra.mxu0 0.0
    %2680 = vmatprep.subr.mxu0 0.0
    %2681 = vmatpush2.msra.mxu0 0.0
    %2682 = vmatprep.subr.mxu0 0.0
    %2683 = vmatpush2.msra.mxu0 0.0
    %2684 = vmatprep.subr.mxu0 0.0
    %2685 = vmatpush2.msra.mxu0 0.0
    %2686 = vmatprep.subr.mxu0 0.0
    %2687 = vmatpush2.msra.mxu0 0.0
    %2688 = vmatprep.subr.mxu0 0.0
    %2689 = vmatpush2.msra.mxu0 0.0
    %2690 = vmatprep.subr.mxu0 0.0
    %2691 = vmatpush2.msra.mxu0 0.0
    %2692 = vmatprep.subr.mxu0 0.0
    %2693 = vmatpush2.msra.mxu0 0.0
    %2694 = vmatprep.subr.mxu0 0.0
    %2695 = vmatpush2.msra.mxu0 0.0
    %2696 = vmatprep.subr.mxu0 0.0
    %2697 = vmatpush2.msra.mxu0 0.0
    %2698 = vmatprep.mubr.f32.mxu0 0.0
    %2699 = vmatmul.mubr.f32.gmra.mxu0 %v2626
    %v2700 = vpop.f32.mrf.mxu0
    %v2701 = vadd.f32 0.0, %v2700
    %v2702 = vpop.f32.mrf.mxu0
    %2703 = vmatprep.mubr.f32.mxu0 0.0
    %2704 = vmatmul.mubr.f32.gmra.mxu0 %v2628
    %v2705 = vpop.f32.mrf.mxu0
    %v2706 = vadd.f32 0.0, %v2705
    %v2707 = vpop.f32.mrf.mxu0
    %2708 = vmatprep.mubr.f32.mxu0 0.0
    %2709 = vmatmul.mubr.f32.gmra.mxu0 %v2630
    %v2710 = vpop.f32.mrf.mxu0
    %v2711 = vadd.f32 0.0, %v2710
    %v2712 = vpop.f32.mrf.mxu0
    %2713 = vmatprep.mubr.f32.mxu0 0.0
    %2714 = vmatmul.mubr.f32.gmra.mxu0 %v2632
    %v2715 = vpop.f32.mrf.mxu0
    %v2716 = vadd.f32 0.0, %v2715
    %v2717 = vpop.f32.mrf.mxu0
    %2718 = vdwg.mxu0
    %v2721 = vunpack.c.l.s4 1966171168
    %v2722 = vunpack.c.0.s8 %v2721
    %v2723 = vlaneseq
    %v2724 = vshrl.u32 %v2723, 7
    %v2725 = vsub.s32 %v2722, %v2724
    %v2726 = vrot.slane %v665, %v2725
    %v2727 = vcombine.high %v2726, %v2726
    %v2729 = vunpack.c.l.s4 1966171168
    %v2730 = vunpack.c.0.s8 %v2729
    %v2731 = vlaneseq
    %v2732 = vshrl.u32 %v2731, 7
    %v2733 = vsub.s32 %v2730, %v2732
    %v2734 = vrot.slane %v2726, %v2733
    %v2736 = vunpack.c.l.s4 1966171168
    %v2737 = vunpack.c.0.s8 %v2736
    %v2738 = vlaneseq
    %v2739 = vshrl.u32 %v2738, 7
    %v2740 = vsub.s32 %v2737, %v2739
    %v2741 = vrot.slane %v2727, %v2740
    %v2742 = vcombine.high %v2734, %v2734
    %v2743 = vcombine.high %v2741, %v2741
    %v2744 = vlaneseq
    %v2745 = vshrl.u32 %v2744, 7
    %v2746 = vsub.s32 0, %v2745
    %v2747 = vrot.slane %v2734, %v2746
    %v2748 = vlaneseq
    %v2749 = vshrl.u32 %v2748, 7
    %v2750 = vsub.s32 0, %v2749
    %v2751 = vrot.slane %v2741, %v2750
    %v2752 = vlaneseq
    %v2753 = vshrl.u32 %v2752, 7
    %v2754 = vsub.s32 0, %v2753
    %v2755 = vrot.slane %v2742, %v2754
    %v2756 = vlaneseq
    %v2757 = vshrl.u32 %v2756, 7
    %v2758 = vsub.s32 0, %v2757
    %v2759 = vrot.slane %v2743, %v2758
    %v2764 = vadd.f32 %v2701, %v2747
    %v2765 = vadd.f32 %v2706, %v2751
    %v2766 = vadd.f32 %v2711, %v2755
    %v2767 = vadd.f32 %v2716, %v2759
    %v2768 = vmax.f32 %v2764, 0.0
    %v2769 = vmax.f32 %v2765, 0.0
    %v2770 = vmax.f32 %v2766, 0.0
    %v2771 = vmax.f32 %v2767, 0.0
    %2772 = vst.msk [vmem:[#allocation8] sm:$0xff] %vm252, %v2768
    %2773 = vst.msk [vmem:[#allocation8 + $0x8] sm:$0xff] %vm252, %v2769
    %2774 = vst.msk [vmem:[#allocation8 + $0x10] sm:$0xff] %vm252, %v2770
    %2775 = vst.msk [vmem:[#allocation8 + $0x18] sm:$0xff] %vm252, %v2771
    %v2776 = vlaneseq
    %v2777 = vshrl.u32 %v2776, 7
    %v2778 = vsub.s32 0, %v2777
    %v2779 = vrot.slane %v91, %v2778
    %v2780 = vmul.f32 %v2768, %v2779
    %v2781 = vmul.f32 %v2769, %v2779
    %v2782 = vmul.f32 %v2770, %v2779
    %v2783 = vmul.f32 %v2771, %v2779
    %v2784 = vsel %vm252, %v2780, 0.0
    %2785 = vadd.xlane.f32.xlu0 %v2784
    %v2786 = vpop.xlane.xlu0 %2785
    %v2787 = vsel %vm252, %v2781, 0.0
    %2788 = vadd.xlane.f32.xlu0 %v2787
    %v2789 = vpop.xlane.xlu0 %2788
    %v2790 = vsel %vm252, %v2782, 0.0
    %2791 = vadd.xlane.f32.xlu0 %v2790
    %v2792 = vpop.xlane.xlu0 %2791
    %v2793 = vsel %vm252, %v2783, 0.0
    %2794 = vadd.xlane.f32.xlu0 %v2793
    %v2795 = vpop.xlane.xlu0 %2794
    %s2797 = vtos %v92
    %v2798 = vstv %s2797
    %v2800 = vadd.f32 %v2786, %v2798
    %v2801 = vadd.f32 %v2789, %v2798
    %v2802 = vadd.f32 %v2792, %v2798
    %v2803 = vadd.f32 %v2795, %v2798
    %v2804 = vxor.u32 %v2800, 2147483648
    %v2805 = vxor.u32 %v2801, 2147483648
    %v2806 = vxor.u32 %v2802, 2147483648
    %v2807 = vxor.u32 %v2803, 2147483648
    %v2808 = vmul.f32 %v2804, 1.442695
    %v2809 = vpow.pop %v2808
    %v2810 = vmul.f32 %v2805, 1.442695
    %v2811 = vpow.pop %v2810
    %v2812 = vmul.f32 %v2806, 1.442695
    %v2813 = vpow.pop %v2812
    %v2814 = vmul.f32 %v2807, 1.442695
    %v2815 = vpow.pop %v2814
    %v2816 = vadd.f32 %v2809, 1.0
    %v2817 = vadd.f32 %v2811, 1.0
    %v2818 = vadd.f32 %v2813, 1.0
    %v2819 = vadd.f32 %v2815, 1.0
    %v2820 = vrcp.pop %v2816
    %v2821 = vmul.f32 1.0, %v2820
    %v2822 = vrcp.pop %v2817
    %v2823 = vmul.f32 1.0, %v2822
    %v2824 = vrcp.pop %v2818
    %v2825 = vmul.f32 1.0, %v2824
    %v2826 = vrcp.pop %v2819
    %v2827 = vmul.f32 1.0, %v2826
    %v2832 = vlaneseq
    %v2833 = vshrl.u32 %v2832, 7
    %v2834 = vsub.s32 %v403, %v2833
    %v2835 = vrot.slane %v2821, %v2834
    %v2836 = vlaneseq
    %v2837 = vshrl.u32 %v2836, 7
    %v2838 = vsub.s32 %v403, %v2837
    %v2839 = vrot.slane %v2823, %v2838
    %v2840 = vlaneseq
    %v2841 = vshrl.u32 %v2840, 7
    %v2842 = vsub.s32 %v403, %v2841
    %v2843 = vrot.slane %v2825, %v2842
    %v2844 = vlaneseq
    %v2845 = vshrl.u32 %v2844, 7
    %v2846 = vsub.s32 %v403, %v2845
    %v2847 = vrot.slane %v2827, %v2846
    %v2848 = vsel %vm986, %v2839, %v2835
    %v2849 = vsel %vm989, %v2843, %v2848
    %v2850 = vsel %vm992, %v2847, %v2849
    %vm2852 = vcmask 60416
    %2853 = vst.msk [vmem:[#allocation7] sm:$0xf] %vm2852, %v2850
    // Predicated region
    $region46: #{patient_outcome_forward.1} parent=1 // pred_check
      _
    $region47: #{patient_outcome_forward.1} parent=1 // pred_check_branch
      %2855 = sbr.rel (0) target = $region49
    $region48: #{patient_outcome_forward.1} parent=1 // pred_region
      %s2857 = ssub.s32 64, 64
      %2858 = vsyncadd [#allocation3], %s2857
      %s2860 = sshll.u32 [#allocation7], 4
      %s2861 = int_to_ptr.vmem [resolvable:$true] %s2860
      %2863 = dma.vmem_to_hbm [thread:$0]  %s2861, 64, %s9, [#allocation3]
    $region49: #{patient_outcome_forward.1} parent=1 // pred_fallthru
      _
    // Predicated region
    $region50: #{patient_outcome_forward.1} parent=1 // pred_check
      _
    $region51: #{patient_outcome_forward.1} parent=1 // pred_check_branch
      %2865 = sbr.rel (0) target = $region53
    $region52: #{patient_outcome_forward.1} parent=1 // pred_region
      %s2867 = ssub.s32 512, 512
      %2868 = vsyncadd [#allocation9], %s2867
      %s2869 = sshll.u32 [#allocation8], 4
      %s2870 = int_to_ptr.vmem [resolvable:$true] %s2869
      %2875 = dma.vmem_to_hbm [thread:$0]  %s2870, 512, %s10, [#allocation9], 128, 128, 8
    $region53: #{patient_outcome_forward.1} parent=1 // pred_fallthru
      _
    // Predicated region
    $region54: #{patient_outcome_forward.1} parent=1 // pred_check
      _
    $region55: #{patient_outcome_forward.1} parent=1 // pred_check_branch
      %2877 = sbr.rel (0) target = $region57
    $region56: #{patient_outcome_forward.1} parent=1 // pred_region
      %2878 = dma.done [#allocation3], 64
    $region57: #{patient_outcome_forward.1} parent=1 // pred_fallthru
      _
    // Predicated region
    $region58: #{patient_outcome_forward.1} parent=1 // pred_check
      _
    $region59: #{patient_outcome_forward.1} parent=1 // pred_check_branch
      %2880 = sbr.rel (0) target = $region61
    $region60: #{patient_outcome_forward.1} parent=1 // pred_region
      %2881 = dma.done [#allocation9], 512
    $region61: #{patient_outcome_forward.1} parent=1 // pred_fallthru
      _
    %2882 = vsyncpa [#allocation3], 1
    %2883 = vsyncpa [#allocation9], 1
    %2884 = vsyncpa [#allocation4], 1
    %2885 = vsyncpa [#allocation6], 1

</llo_original>
